<compile_context>
chip_gen: v5e
topology: v5e:2x2
jax: 0.10.0
libtpu: 0.0.40
codegen_flags: <defaults>
</compile_context>

<pallas_src>
import functools

import numpy as np
import jax
import jax.numpy as jnp
from jax import lax
from jax.experimental import pallas as pl
from jax.experimental.pallas import tpu as pltpu


def _round_up(x, m):
    return (x + m - 1) // m * m


# --------------------------------------------------------------------------
# Kernel 1: fused 3x3 "same" conv (stride 1, padding 1) + spatial sum of x.
# Grid: one step per batch element (marked "parallel" for megacore sharding).
# TODO(synk): for large H (v7x: 64 MiB VMEM) add a row-tiled grid axis with a
#             halo (Element-offset index_map or manual DMA) instead of loading
#             the whole padded image as one block.
# --------------------------------------------------------------------------
def conv3x3_pool_kernel(x_ref, w_ref, b_ref, ram_ref, pool_ref, *, wp):
    # x_ref   : (1, (H+2)*wp, Cin)  bf16  zero-padded, row-flattened NHWC image
    # w_ref   : (3, Cin, 3*Cout)    bf16  w_ref[ky][:, kx*Cout:(kx+1)*Cout] = W[ky,kx]
    # b_ref   : (1, Cout)           f32
    # ram_ref : (1, H, W, Cout)     f32   conv3x3 output (NHWC)
    # pool_ref: (1, 1, Cin)         f32   sum of x over H*W (pad rows are zero)
    _, H, W, Cout = ram_ref.shape

    # Fused spatial pooling: zero padding does not change the sum.
    pool_ref[0] = jnp.sum(x_ref[0].astype(jnp.float32), axis=0, keepdims=True)

    bias = b_ref[...]                                        # (1, Cout) f32
    for ky in range(3):
        # Row slab covering padded rows [ky, ky + H): shape (H*wp, Cin), bf16.
        slab = x_ref[0, ky * wp:ky * wp + H * wp, :]
        # One fat MXU matmul per ky (N = 3*Cout), f32 accumulation.
        r = jnp.dot(slab, w_ref[ky], preferred_element_type=jnp.float32)
        r3 = r.reshape(H, wp, 3 * Cout)                      # no-op: wp % 8 == 0
        # Combine the three kx taps: out(h, w) += r3[h, w + kx, kx-th Cout group].
        contrib = (r3[:, 0:W, 0:Cout]
                   + r3[:, 1:W + 1, Cout:2 * Cout]
                   + r3[:, 2:W + 2, 2 * Cout:3 * Cout])      # (H, W, Cout) f32
        if ky == 0:
            ram_ref[0] = contrib + bias                      # init with bias
        else:
            ram_ref[0] = ram_ref[0] + contrib                # accumulate in VMEM


# --------------------------------------------------------------------------
# Kernel 2: regression head on the pooled vector only.
#   mean = pooled_sum / (H*W)  ->  conv1x1 (no bias, commutes with the mean)
#   -> 3-layer MLP with LeakyReLU(0.01) -> norm ('linear'/'softmax'/sigmoid).
# All operands are a few KB and live fully in VMEM; output last dim is
# lane-dense (256).
# --------------------------------------------------------------------------
def head_kernel(pool_ref, w1_ref, wa_ref, ba_ref, wb_ref, bb_ref, wc_ref, bc_ref,
                y_ref, *, norm, inv_hw):
    pooled = pool_ref[...] * inv_hw                          # (B, Cin) == mean over H,W
    z = jnp.dot(pooled, w1_ref[...], preferred_element_type=jnp.float32)
    h = jnp.dot(z, wa_ref[...], preferred_element_type=jnp.float32) + ba_ref[...]
    h = jnp.where(h > 0, h, 0.01 * h)                        # LeakyReLU(0.01)
    h = jnp.dot(h, wb_ref[...], preferred_element_type=jnp.float32) + bb_ref[...]
    h = jnp.where(h > 0, h, 0.01 * h)
    y = jnp.dot(h, wc_ref[...], preferred_element_type=jnp.float32) + bc_ref[...]
    if norm == 'linear':
        y = jnp.maximum(y, 0.0) + 0.1
        y = y / jnp.sum(y, axis=1, keepdims=True)
    elif norm == 'softmax':
        y = jax.nn.softmax(y, axis=1)
    else:
        y = jax.nn.sigmoid(y)
        y = y / jnp.sum(y, axis=1, keepdims=True)
    y_ref[...] = y.astype(y_ref.dtype)


# --------------------------------------------------------------------------
# Wrapper (layout prep, weight packing, pallas_call plumbing)
# --------------------------------------------------------------------------
def depth_regression_forward(x_nchw, params, norm='linear'):
    B, Cin, H, W = x_nchw.shape
    Cout = params['b3x3'].shape[-1]
    dim_out = params['bc'].shape[-1]
    Wp = _round_up(W + 2, 8)                 # padded width (>= W+2, sublane aligned)

    # NCHW -> NHWC, cast to bf16, zero-pad (1 row top/bottom, 1 col left,
    # Wp-W-1 cols right) and flatten rows.  XLA fuses this into one pass.
    x_nhwc = jnp.transpose(x_nchw, (0, 2, 3, 1)).astype(jnp.bfloat16)
    x_pad = jnp.pad(x_nhwc, ((0, 0), (1, 1), (1, Wp - W - 1), (0, 0)))
    x_flat = x_pad.reshape(B, (H + 2) * Wp, Cin)

    # Pack conv weights HWIO (3,3,Cin,Cout) -> (3, Cin, 3*Cout) bf16 so each ky
    # is a single fat matmul.
    w_cat = jnp.transpose(params['w3x3'], (0, 2, 1, 3)).reshape(3, Cin, 3 * Cout)
    w_cat = w_cat.astype(jnp.bfloat16)

    ram_nhwc, pool_sum3 = pl.pallas_call(
        functools.partial(conv3x3_pool_kernel, wp=Wp),
        out_shape=(jax.ShapeDtypeStruct((B, H, W, Cout), jnp.float32),
                   jax.ShapeDtypeStruct((B, 1, Cin), jnp.float32)),
        grid=(B,),
        in_specs=[
            pl.BlockSpec((1, (H + 2) * Wp, Cin), lambda b: (b, 0, 0)),
            pl.BlockSpec((3, Cin, 3 * Cout), lambda b: (0, 0, 0)),
            pl.BlockSpec((1, Cout), lambda b: (0, 0)),
        ],
        out_specs=(
            pl.BlockSpec((1, H, W, Cout), lambda b: (b, 0, 0, 0)),
            pl.BlockSpec((1, 1, Cin), lambda b: (b, 0, 0)),
        ),
        compiler_params=pltpu.CompilerParams(
            dimension_semantics=("parallel",),
            vmem_limit_bytes=32 * 1024 * 1024),
    )(x_flat, w_cat, params['b3x3'])

    range_attention_maps = jnp.transpose(ram_nhwc, (0, 3, 1, 2))   # back to NCHW
    pool_sum = pool_sum3[:, 0, :]                                  # (B, Cin)

    vmem = lambda: pl.BlockSpec(memory_space=pltpu.MemorySpace.VMEM)
    y = pl.pallas_call(
        functools.partial(head_kernel, norm=norm, inv_hw=1.0 / (H * W)),
        out_shape=jax.ShapeDtypeStruct((B, dim_out), jnp.float32),
        in_specs=[vmem() for _ in range(8)],
        out_specs=vmem(),
    )(pool_sum, params['w1x1'], params['wa'], params['ba'],
      params['wb'], params['bb'], params['wc'], params['bc'])
    return y, range_attention_maps


# --------------------------------------------------------------------------
# Deterministic parameter init (shapes from the module's __init__)
# --------------------------------------------------------------------------
def init_params(key, in_channels, embedding_dim=128, dim_out=256):
    ks = jax.random.split(key, 9)

    def u(k, shape, fan_in):
        bound = 1.0 / np.sqrt(fan_in)
        return jax.random.uniform(k, shape, jnp.float32, -bound, bound)

    return dict(
        # conv3x3 weights stored HWIO: (3, 3, Cin, Cout)
        w3x3=u(ks[0], (3, 3, in_channels, embedding_dim), 9 * in_channels),
        b3x3=u(ks[1], (1, embedding_dim), 9 * in_channels),
        # conv1x1, bias=False -> (Cin, Cemb)
        w1x1=u(ks[2], (in_channels, embedding_dim), in_channels),
        # regressor: Linear(Cemb,256) -> Linear(256,256) -> Linear(256,dim_out)
        wa=u(ks[3], (embedding_dim, 256), embedding_dim),
        ba=u(ks[4], (1, 256), embedding_dim),
        wb=u(ks[5], (256, 256), 256),
        bb=u(ks[6], (1, 256), 256),
        wc=u(ks[7], (256, dim_out), 256),
        bc=u(ks[8], (1, dim_out), 256),
    )


# --------------------------------------------------------------------------
# Pure-JAX reference (for the sanity check, f32 throughout)
# --------------------------------------------------------------------------
def reference_forward(x_nchw, params, norm='linear'):
    B, Cin, H, W = x_nchw.shape
    ram = lax.conv_general_dilated(
        x_nchw, params['w3x3'], window_strides=(1, 1), padding='SAME',
        dimension_numbers=('NCHW', 'HWIO', 'NCHW'))
    ram = ram + params['b3x3'][0][None, :, None, None]
    pooled = jnp.einsum('bchw->bc', x_nchw) / (H * W)
    reg = pooled @ params['w1x1']
    h = reg @ params['wa'] + params['ba']
    h = jnp.where(h > 0, h, 0.01 * h)
    h = h @ params['wb'] + params['bb']
    h = jnp.where(h > 0, h, 0.01 * h)
    y = h @ params['wc'] + params['bc']
    if norm == 'linear':
        y = jnp.maximum(y, 0.0) + 0.1
        y = y / jnp.sum(y, axis=1, keepdims=True)
    elif norm == 'softmax':
        y = jax.nn.softmax(y, axis=1)
    else:
        y = jax.nn.sigmoid(y)
        y = y / jnp.sum(y, axis=1, keepdims=True)
    return y, ram


if __name__ == "__main__":
    key = jax.random.PRNGKey(0)
    B, H, W = 2, 16, 16
    embedding_dim = 128
    in_channels = embedding_dim   # required by the module's own forward()
    dim_out = 256

    kx, kp = jax.random.split(key)
    x = jax.random.normal(kx, (B, in_channels, H, W), jnp.float32)
    params = init_params(kp, in_channels, embedding_dim, dim_out)

    fwd = jax.jit(depth_regression_forward, static_argnames=('norm',))

    for norm in ('linear', 'softmax', 'sigmoid'):
        y, ram = fwd(x, params, norm=norm)
        jax.block_until_ready((y, ram))
        y_ref, ram_ref = reference_forward(x, params, norm)
        np.testing.assert_allclose(np.asarray(ram), np.asarray(ram_ref),
                                   rtol=2e-2, atol=2e-2)
        np.testing.assert_allclose(np.asarray(y), np.asarray(y_ref),
                                   rtol=2e-2, atol=1e-4)
    print("KERNEL_OK")
</pallas_src>

<mosaic_0001>
module attributes {stable_mosaic.version = 11 : i64} {
  func.func @conv3x3_pool_kernel(%arg0: i32, %arg1: memref<1x432x128xbf16, #tpu.memory_space<vmem>>, %arg2: memref<3x128x384xbf16, #tpu.memory_space<vmem>>, %arg3: memref<1x128xf32, #tpu.memory_space<vmem>>, %arg4: memref<1x16x16x128xf32, #tpu.memory_space<vmem>>, %arg5: memref<1x1x128xf32, #tpu.memory_space<vmem>>) attributes {dimension_semantics = [#tpu.dimension_semantics<parallel>], iteration_bounds = array<i64: 2>, scalar_prefetch = 0 : i64, scratch_operands = 0 : i64, tpu.core_type = #tpu.core_type<tc>, window_params = [{transform_indices = @transform_0, window_bounds = array<i64: 1, 432, 128>}, {pipeline_mode = #tpu.pipeline_mode<synchronous>, transform_indices = @transform_1, window_bounds = array<i64: 3, 128, 384>}, {pipeline_mode = #tpu.pipeline_mode<synchronous>, transform_indices = @transform_2, window_bounds = array<i64: 1, 128>}, {transform_indices = @transform_3, window_bounds = array<i64: 1, 16, 16, 128>}, {transform_indices = @transform_4, window_bounds = array<i64: 1, 1, 128>}]} {
    %c0 = arith.constant 0 : index
    %c0_0 = arith.constant 0 : index
    %c0_1 = arith.constant 0 : index
    %0 = vector.load %arg1[%c0, %c0_0, %c0_1] : memref<1x432x128xbf16, #tpu.memory_space<vmem>>, vector<1x432x128xbf16>
    %1 = vector.shape_cast %0 : vector<1x432x128xbf16> to vector<432x128xbf16>
    %2 = arith.extf %1 : vector<432x128xbf16> to vector<432x128xf32>
    %cst = arith.constant dense<0.000000e+00> : vector<128xf32>
    %3 = vector.multi_reduction <add>, %2, %cst [0] : vector<432x128xf32> to vector<128xf32>
    %4 = vector.shape_cast %3 : vector<128xf32> to vector<1x128xf32>
    %c0_2 = arith.constant 0 : index
    %c0_3 = arith.constant 0 : index
    %c0_4 = arith.constant 0 : index
    %5 = vector.load %arg5[%c0_2, %c0_3, %c0_4] : memref<1x1x128xf32, #tpu.memory_space<vmem>>, vector<1x1x128xf32>
    %6 = vector.shape_cast %5 : vector<1x1x128xf32> to vector<1x128xf32>
    %7 = vector.shape_cast %4 : vector<1x128xf32> to vector<1x1x128xf32>
    tpu.vector_store %arg5[%c0_2, %c0_3, %c0_4], %7 {strides = array<i32>} : memref<1x1x128xf32, #tpu.memory_space<vmem>>, vector<1x1x128xf32>,
    %c0_5 = arith.constant 0 : index
    %c0_6 = arith.constant 0 : index
    %8 = vector.load %arg3[%c0_5, %c0_6] : memref<1x128xf32, #tpu.memory_space<vmem>>, vector<1x128xf32>
    %c0_7 = arith.constant 0 : index
    %c0_8 = arith.constant 0 : index
    %c0_9 = arith.constant 0 : index
    %9 = vector.load %arg1[%c0_7, %c0_8, %c0_9] : memref<1x432x128xbf16, #tpu.memory_space<vmem>>, vector<1x384x128xbf16>
    %10 = vector.shape_cast %9 : vector<1x384x128xbf16> to vector<384x128xbf16>
    %c0_10 = arith.constant 0 : index
    %c0_11 = arith.constant 0 : index
    %c0_12 = arith.constant 0 : index
    %11 = vector.load %arg2[%c0_10, %c0_11, %c0_12] : memref<3x128x384xbf16, #tpu.memory_space<vmem>>, vector<1x128x384xbf16>
    %12 = vector.shape_cast %11 : vector<1x128x384xbf16> to vector<128x384xbf16>
    %cst_13 = arith.constant dense<0.000000e+00> : vector<384x384xf32>
    %13 = tpu.matmul %10, %12, %cst_13 {dimension_numbers = #tpu.dot_dimension_numbers<[1], [0], [0], [1], [0, 0, 1, 1], [], []>} : vector<384x128xbf16>, vector<128x384xbf16>, vector<384x384xf32> -> vector<384x384xf32>
    %14 = vector.shape_cast %13 : vector<384x384xf32> to vector<16x24x384xf32>
    %15 = vector.extract_strided_slice %14 {offsets = [0, 0, 0], sizes = [16, 16, 128], strides = [1, 1, 1]} : vector<16x24x384xf32> to vector<16x16x128xf32>
    %16 = vector.extract_strided_slice %14 {offsets = [0, 1, 128], sizes = [16, 16, 128], strides = [1, 1, 1]} : vector<16x24x384xf32> to vector<16x16x128xf32>
    %17 = arith.addf %15, %16 : vector<16x16x128xf32>
    %18 = vector.extract_strided_slice %14 {offsets = [0, 2, 256], sizes = [16, 16, 128], strides = [1, 1, 1]} : vector<16x24x384xf32> to vector<16x16x128xf32>
    %19 = arith.addf %17, %18 : vector<16x16x128xf32>
    %20 = vector.shape_cast %8 : vector<1x128xf32> to vector<1x1x128xf32>
    %21 = vector.broadcast %20 : vector<1x1x128xf32> to vector<16x16x128xf32>
    %22 = arith.addf %19, %21 : vector<16x16x128xf32>
    %c0_14 = arith.constant 0 : index
    %c0_15 = arith.constant 0 : index
    %c0_16 = arith.constant 0 : index
    %c0_17 = arith.constant 0 : index
    %23 = vector.load %arg4[%c0_14, %c0_15, %c0_16, %c0_17] : memref<1x16x16x128xf32, #tpu.memory_space<vmem>>, vector<1x16x16x128xf32>
    %24 = vector.shape_cast %23 : vector<1x16x16x128xf32> to vector<16x16x128xf32>
    %25 = vector.shape_cast %22 : vector<16x16x128xf32> to vector<1x16x16x128xf32>
    tpu.vector_store %arg4[%c0_14, %c0_15, %c0_16, %c0_17], %25 {strides = array<i32>} : memref<1x16x16x128xf32, #tpu.memory_space<vmem>>, vector<1x16x16x128xf32>,
    %c0_18 = arith.constant 0 : index
    %c24 = arith.constant 24 : index
    %c0_19 = arith.constant 0 : index
    %26 = vector.load %arg1[%c0_18, %c24, %c0_19] : memref<1x432x128xbf16, #tpu.memory_space<vmem>>, vector<1x384x128xbf16>
    %27 = vector.shape_cast %26 : vector<1x384x128xbf16> to vector<384x128xbf16>
    %c1 = arith.constant 1 : index
    %c0_20 = arith.constant 0 : index
    %c0_21 = arith.constant 0 : index
    %28 = vector.load %arg2[%c1, %c0_20, %c0_21] : memref<3x128x384xbf16, #tpu.memory_space<vmem>>, vector<1x128x384xbf16>
    %29 = vector.shape_cast %28 : vector<1x128x384xbf16> to vector<128x384xbf16>
    %cst_22 = arith.constant dense<0.000000e+00> : vector<384x384xf32>
    %30 = tpu.matmul %27, %29, %cst_22 {dimension_numbers = #tpu.dot_dimension_numbers<[1], [0], [0], [1], [0, 0, 1, 1], [], []>} : vector<384x128xbf16>, vector<128x384xbf16>, vector<384x384xf32> -> vector<384x384xf32>
    %31 = vector.shape_cast %30 : vector<384x384xf32> to vector<16x24x384xf32>
    %32 = vector.extract_strided_slice %31 {offsets = [0, 0, 0], sizes = [16, 16, 128], strides = [1, 1, 1]} : vector<16x24x384xf32> to vector<16x16x128xf32>
    %33 = vector.extract_strided_slice %31 {offsets = [0, 1, 128], sizes = [16, 16, 128], strides = [1, 1, 1]} : vector<16x24x384xf32> to vector<16x16x128xf32>
    %34 = arith.addf %32, %33 : vector<16x16x128xf32>
    %35 = vector.extract_strided_slice %31 {offsets = [0, 2, 256], sizes = [16, 16, 128], strides = [1, 1, 1]} : vector<16x24x384xf32> to vector<16x16x128xf32>
    %36 = arith.addf %34, %35 : vector<16x16x128xf32>
    %c0_23 = arith.constant 0 : index
    %c0_24 = arith.constant 0 : index
    %c0_25 = arith.constant 0 : index
    %c0_26 = arith.constant 0 : index
    %37 = vector.load %arg4[%c0_23, %c0_24, %c0_25, %c0_26] : memref<1x16x16x128xf32, #tpu.memory_space<vmem>>, vector<1x16x16x128xf32>
    %38 = vector.shape_cast %37 : vector<1x16x16x128xf32> to vector<16x16x128xf32>
    %39 = arith.addf %38, %36 : vector<16x16x128xf32>
    %c0_27 = arith.constant 0 : index
    %c0_28 = arith.constant 0 : index
    %c0_29 = arith.constant 0 : index
    %c0_30 = arith.constant 0 : index
    %40 = vector.load %arg4[%c0_27, %c0_28, %c0_29, %c0_30] : memref<1x16x16x128xf32, #tpu.memory_space<vmem>>, vector<1x16x16x128xf32>
    %41 = vector.shape_cast %40 : vector<1x16x16x128xf32> to vector<16x16x128xf32>
    %42 = vector.shape_cast %39 : vector<16x16x128xf32> to vector<1x16x16x128xf32>
    tpu.vector_store %arg4[%c0_27, %c0_28, %c0_29, %c0_30], %42 {strides = array<i32>} : memref<1x16x16x128xf32, #tpu.memory_space<vmem>>, vector<1x16x16x128xf32>,
    %c0_31 = arith.constant 0 : index
    %c48 = arith.constant 48 : index
    %c0_32 = arith.constant 0 : index
    %43 = vector.load %arg1[%c0_31, %c48, %c0_32] : memref<1x432x128xbf16, #tpu.memory_space<vmem>>, vector<1x384x128xbf16>
    %44 = vector.shape_cast %43 : vector<1x384x128xbf16> to vector<384x128xbf16>
    %c2 = arith.constant 2 : index
    %c0_33 = arith.constant 0 : index
    %c0_34 = arith.constant 0 : index
    %45 = vector.load %arg2[%c2, %c0_33, %c0_34] : memref<3x128x384xbf16, #tpu.memory_space<vmem>>, vector<1x128x384xbf16>
    %46 = vector.shape_cast %45 : vector<1x128x384xbf16> to vector<128x384xbf16>
    %cst_35 = arith.constant dense<0.000000e+00> : vector<384x384xf32>
    %47 = tpu.matmul %44, %46, %cst_35 {dimension_numbers = #tpu.dot_dimension_numbers<[1], [0], [0], [1], [0, 0, 1, 1], [], []>} : vector<384x128xbf16>, vector<128x384xbf16>, vector<384x384xf32> -> vector<384x384xf32>
    %48 = vector.shape_cast %47 : vector<384x384xf32> to vector<16x24x384xf32>
    %49 = vector.extract_strided_slice %48 {offsets = [0, 0, 0], sizes = [16, 16, 128], strides = [1, 1, 1]} : vector<16x24x384xf32> to vector<16x16x128xf32>
    %50 = vector.extract_strided_slice %48 {offsets = [0, 1, 128], sizes = [16, 16, 128], strides = [1, 1, 1]} : vector<16x24x384xf32> to vector<16x16x128xf32>
    %51 = arith.addf %49, %50 : vector<16x16x128xf32>
    %52 = vector.extract_strided_slice %48 {offsets = [0, 2, 256], sizes = [16, 16, 128], strides = [1, 1, 1]} : vector<16x24x384xf32> to vector<16x16x128xf32>
    %53 = arith.addf %51, %52 : vector<16x16x128xf32>
    %c0_36 = arith.constant 0 : index
    %c0_37 = arith.constant 0 : index
    %c0_38 = arith.constant 0 : index
    %c0_39 = arith.constant 0 : index
    %54 = vector.load %arg4[%c0_36, %c0_37, %c0_38, %c0_39] : memref<1x16x16x128xf32, #tpu.memory_space<vmem>>, vector<1x16x16x128xf32>
    %55 = vector.shape_cast %54 : vector<1x16x16x128xf32> to vector<16x16x128xf32>
    %56 = arith.addf %55, %53 : vector<16x16x128xf32>
    %c0_40 = arith.constant 0 : index
    %c0_41 = arith.constant 0 : index
    %c0_42 = arith.constant 0 : index
    %c0_43 = arith.constant 0 : index
    %57 = vector.load %arg4[%c0_40, %c0_41, %c0_42, %c0_43] : memref<1x16x16x128xf32, #tpu.memory_space<vmem>>, vector<1x16x16x128xf32>
    %58 = vector.shape_cast %57 : vector<1x16x16x128xf32> to vector<16x16x128xf32>
    %59 = vector.shape_cast %56 : vector<16x16x128xf32> to vector<1x16x16x128xf32>
    tpu.vector_store %arg4[%c0_40, %c0_41, %c0_42, %c0_43], %59 {strides = array<i32>} : memref<1x16x16x128xf32, #tpu.memory_space<vmem>>, vector<1x16x16x128xf32>,
    return
  }
  func.func @transform_0(%arg0: i32) -> (i32, i32, i32) {
    %c0_i32 = arith.constant 0 : i32
    %c0_i32_0 = arith.constant 0 : i32
    %c0_i32_1 = arith.constant 0 : i32
    return %arg0, %c0_i32, %c0_i32_0 : i32, i32, i32
  }
  func.func @transform_1(%arg0: i32) -> (i32, i32, i32) {
    %c0_i32 = arith.constant 0 : i32
    %c0_i32_0 = arith.constant 0 : i32
    %c0_i32_1 = arith.constant 0 : i32
    %c0_i32_2 = arith.constant 0 : i32
    return %c0_i32, %c0_i32_0, %c0_i32_1 : i32, i32, i32
  }
  func.func @transform_2(%arg0: i32) -> (i32, i32) {
    %c0_i32 = arith.constant 0 : i32
    %c0_i32_0 = arith.constant 0 : i32
    %c0_i32_1 = arith.constant 0 : i32
    return %c0_i32, %c0_i32_0 : i32, i32
  }
  func.func @transform_3(%arg0: i32) -> (i32, i32, i32, i32) {
    %c0_i32 = arith.constant 0 : i32
    %c0_i32_0 = arith.constant 0 : i32
    %c0_i32_1 = arith.constant 0 : i32
    %c0_i32_2 = arith.constant 0 : i32
    return %arg0, %c0_i32, %c0_i32_0, %c0_i32_1 : i32, i32, i32, i32
  }
  func.func @transform_4(%arg0: i32) -> (i32, i32, i32) {
    %c0_i32 = arith.constant 0 : i32
    %c0_i32_0 = arith.constant 0 : i32
    %c0_i32_1 = arith.constant 0 : i32
    return %arg0, %c0_i32, %c0_i32_0 : i32, i32, i32
  }
}

module attributes {stable_mosaic.version = 11 : i64} {
  func.func @head_kernel(%arg0: memref<2x128xf32, #tpu.memory_space<vmem>>, %arg1: memref<128x128xf32, #tpu.memory_space<vmem>>, %arg2: memref<128x256xf32, #tpu.memory_space<vmem>>, %arg3: memref<1x256xf32, #tpu.memory_space<vmem>>, %arg4: memref<256x256xf32, #tpu.memory_space<vmem>>, %arg5: memref<1x256xf32, #tpu.memory_space<vmem>>, %arg6: memref<256x256xf32, #tpu.memory_space<vmem>>, %arg7: memref<1x256xf32, #tpu.memory_space<vmem>>, %arg8: memref<2x256xf32, #tpu.memory_space<vmem>>) attributes {dimension_semantics = [], scalar_prefetch = 0 : i64, scratch_operands = 0 : i64, tpu.core_type = #tpu.core_type<tc>} {
    %c0 = arith.constant 0 : index
    %c0_0 = arith.constant 0 : index
    %0 = vector.load %arg0[%c0, %c0_0] : memref<2x128xf32, #tpu.memory_space<vmem>>, vector<2x128xf32>
    %cst = arith.constant 3.906250e-03 : f32
    %1 = vector.broadcast %cst : f32 to vector<2x128xf32>
    %2 = arith.mulf %0, %1 : vector<2x128xf32>
    %c0_1 = arith.constant 0 : index
    %c0_2 = arith.constant 0 : index
    %3 = vector.load %arg1[%c0_1, %c0_2] : memref<128x128xf32, #tpu.memory_space<vmem>>, vector<128x128xf32>
    %cst_3 = arith.constant dense<0.000000e+00> : vector<2x128xf32>
    %4 = tpu.matmul %2, %3, %cst_3 {dimension_numbers = #tpu.dot_dimension_numbers<[1], [0], [0], [1], [0, 0, 1, 1], [], []>} : vector<2x128xf32>, vector<128x128xf32>, vector<2x128xf32> -> vector<2x128xf32>
    %c0_4 = arith.constant 0 : index
    %c0_5 = arith.constant 0 : index
    %5 = vector.load %arg2[%c0_4, %c0_5] : memref<128x256xf32, #tpu.memory_space<vmem>>, vector<128x256xf32>
    %cst_6 = arith.constant dense<0.000000e+00> : vector<2x256xf32>
    %6 = tpu.matmul %4, %5, %cst_6 {dimension_numbers = #tpu.dot_dimension_numbers<[1], [0], [0], [1], [0, 0, 1, 1], [], []>} : vector<2x128xf32>, vector<128x256xf32>, vector<2x256xf32> -> vector<2x256xf32>
    %c0_7 = arith.constant 0 : index
    %c0_8 = arith.constant 0 : index
    %7 = vector.load %arg3[%c0_7, %c0_8] : memref<1x256xf32, #tpu.memory_space<vmem>>, vector<1x256xf32>
    %8 = vector.broadcast %7 : vector<1x256xf32> to vector<2x256xf32>
    %9 = arith.addf %6, %8 : vector<2x256xf32>
    %cst_9 = arith.constant 0.000000e+00 : f32
    %10 = vector.broadcast %cst_9 : f32 to vector<2x256xf32>
    %11 = arith.cmpf ogt, %9, %10 : vector<2x256xf32>
    %cst_10 = arith.constant 0.00999999977 : f32
    %12 = vector.broadcast %cst_10 : f32 to vector<2x256xf32>
    %13 = arith.mulf %12, %9 : vector<2x256xf32>
    %14 = arith.select %11, %9, %13 : vector<2x256xi1>, vector<2x256xf32>
    %c0_11 = arith.constant 0 : index
    %c0_12 = arith.constant 0 : index
    %15 = vector.load %arg4[%c0_11, %c0_12] : memref<256x256xf32, #tpu.memory_space<vmem>>, vector<256x256xf32>
    %cst_13 = arith.constant dense<0.000000e+00> : vector<2x256xf32>
    %16 = tpu.matmul %14, %15, %cst_13 {dimension_numbers = #tpu.dot_dimension_numbers<[1], [0], [0], [1], [0, 0, 1, 1], [], []>} : vector<2x256xf32>, vector<256x256xf32>, vector<2x256xf32> -> vector<2x256xf32>
    %c0_14 = arith.constant 0 : index
    %c0_15 = arith.constant 0 : index
    %17 = vector.load %arg5[%c0_14, %c0_15] : memref<1x256xf32, #tpu.memory_space<vmem>>, vector<1x256xf32>
    %18 = vector.broadcast %17 : vector<1x256xf32> to vector<2x256xf32>
    %19 = arith.addf %16, %18 : vector<2x256xf32>
    %cst_16 = arith.constant 0.000000e+00 : f32
    %20 = vector.broadcast %cst_16 : f32 to vector<2x256xf32>
    %21 = arith.cmpf ogt, %19, %20 : vector<2x256xf32>
    %cst_17 = arith.constant 0.00999999977 : f32
    %22 = vector.broadcast %cst_17 : f32 to vector<2x256xf32>
    %23 = arith.mulf %22, %19 : vector<2x256xf32>
    %24 = arith.select %21, %19, %23 : vector<2x256xi1>, vector<2x256xf32>
    %c0_18 = arith.constant 0 : index
    %c0_19 = arith.constant 0 : index
    %25 = vector.load %arg6[%c0_18, %c0_19] : memref<256x256xf32, #tpu.memory_space<vmem>>, vector<256x256xf32>
    %cst_20 = arith.constant dense<0.000000e+00> : vector<2x256xf32>
    %26 = tpu.matmul %24, %25, %cst_20 {dimension_numbers = #tpu.dot_dimension_numbers<[1], [0], [0], [1], [0, 0, 1, 1], [], []>} : vector<2x256xf32>, vector<256x256xf32>, vector<2x256xf32> -> vector<2x256xf32>
    %c0_21 = arith.constant 0 : index
    %c0_22 = arith.constant 0 : index
    %27 = vector.load %arg7[%c0_21, %c0_22] : memref<1x256xf32, #tpu.memory_space<vmem>>, vector<1x256xf32>
    %28 = vector.broadcast %27 : vector<1x256xf32> to vector<2x256xf32>
    %29 = arith.addf %26, %28 : vector<2x256xf32>
    %cst_23 = arith.constant 0.000000e+00 : f32
    %30 = vector.broadcast %cst_23 : f32 to vector<2x256xf32>
    %31 = arith.maximumf %29, %30 : vector<2x256xf32>
    %cst_24 = arith.constant 1.000000e-01 : f32
    %32 = vector.broadcast %cst_24 : f32 to vector<2x256xf32>
    %33 = arith.addf %31, %32 : vector<2x256xf32>
    %cst_25 = arith.constant dense<0.000000e+00> : vector<2xf32>
    %34 = vector.multi_reduction <add>, %33, %cst_25 [1] : vector<2x256xf32> to vector<2xf32>
    %35 = vector.shape_cast %34 : vector<2xf32> to vector<2x1xf32>
    %36 = vector.broadcast %35 : vector<2x1xf32> to vector<2x256xf32>
    %37 = arith.divf %33, %36 : vector<2x256xf32>
    %c0_26 = arith.constant 0 : index
    %c0_27 = arith.constant 0 : index
    %38 = vector.load %arg8[%c0_26, %c0_27] : memref<2x256xf32, #tpu.memory_space<vmem>>, vector<2x256xf32>
    tpu.vector_store %arg8[%c0_26, %c0_27], %37 {strides = array<i32>} : memref<2x256xf32, #tpu.memory_space<vmem>>, vector<2x256xf32>,
    return
  }
}

</mosaic_0001>

<llo_original>
// kernel: depth_regression_forward.3
$region0: #{depth_regression_forward.3}
  #allocation0 [shape = 'u32[]', space=smem, size = 0x4, offset = 0x4, fixed_abs, tag = 'smem constant byte address 0x4 - core index']
  #allocation1 [shape = 'u32[72,128]{1,0:T(1,128)}', space=vmem, size = 0x9000, scoped, tag = 'internal scratch']
  %s0 = inlined_call_operand.vmem [shape: f32[2,128], index: 0, kind: input, shape index: {}]
  %s1 = inlined_call_operand.vmem [shape: f32[128,128], index: 1, kind: input, shape index: {}]
  %s2 = inlined_call_operand.vmem [shape: f32[128,256], index: 2, kind: input, shape index: {}]
  %s3 = inlined_call_operand.vmem [shape: f32[1,256], index: 3, kind: input, shape index: {}]
  %s4 = inlined_call_operand.vmem [shape: f32[256,256], index: 4, kind: input, shape index: {}]
  %s5 = inlined_call_operand.vmem [shape: f32[1,256], index: 5, kind: input, shape index: {}]
  %s6 = inlined_call_operand.vmem [shape: f32[256,256], index: 6, kind: input, shape index: {}]
  %s7 = inlined_call_operand.vmem [shape: f32[1,256], index: 7, kind: input, shape index: {}]
  %s8 = inlined_call_operand.hbm [shape: f32[2,256], index: 8, kind: output, shape index: {}]
  %s9 = sld [smem:[#allocation0]]
  $region42: #{depth_regression_forward.3} parent=0
    _
  %s11 = ssub.s32 1, %s9
  %s12 = scalar_select 0, %s11, %s9
  $region1: #{depth_regression_forward.3} parent=0
    #allocation2 [shape = 'u8[2048]{0}', space=vmem, size = 0x800, scoped, tag = 'output window, operand 0, single buffered']
    #allocation3 [shape = 's32[1]{0}', space=sflag, size = 0x4, scoped, tag = 'scoped memory for depth_regression_forward.3']
    %13 = vsyncpa [#allocation3], 0
    // Predicated region
    $region2: #{depth_regression_forward.3} parent=1 // pred_check
      _
    $region3: #{depth_regression_forward.3} parent=1 // pred_check_branch
      %15 = sbr.rel (0) target = $region5
    $region4: #{depth_regression_forward.3} parent=1 // pred_region
      _
    $region5: #{depth_regression_forward.3} parent=1 // pred_fallthru
      _
    // Predicated region
    $region6: #{depth_regression_forward.3} parent=1 // pred_check
      _
    $region7: #{depth_regression_forward.3} parent=1 // pred_check_branch
      %17 = sbr.rel (0) target = $region9
    $region8: #{depth_regression_forward.3} parent=1 // pred_region
      _
    $region9: #{depth_regression_forward.3} parent=1 // pred_fallthru
      _
    // Predicated region
    $region10: #{depth_regression_forward.3} parent=1 // pred_check
      _
    $region11: #{depth_regression_forward.3} parent=1 // pred_check_branch
      %19 = sbr.rel (0) target = $region13
    $region12: #{depth_regression_forward.3} parent=1 // pred_region
      _
    $region13: #{depth_regression_forward.3} parent=1 // pred_fallthru
      _
    // Predicated region
    $region14: #{depth_regression_forward.3} parent=1 // pred_check
      _
    $region15: #{depth_regression_forward.3} parent=1 // pred_check_branch
      %21 = sbr.rel (0) target = $region17
    $region16: #{depth_regression_forward.3} parent=1 // pred_region
      _
    $region17: #{depth_regression_forward.3} parent=1 // pred_fallthru
      _
    // Predicated region
    $region18: #{depth_regression_forward.3} parent=1 // pred_check
      _
    $region19: #{depth_regression_forward.3} parent=1 // pred_check_branch
      %23 = sbr.rel (0) target = $region21
    $region20: #{depth_regression_forward.3} parent=1 // pred_region
      _
    $region21: #{depth_regression_forward.3} parent=1 // pred_fallthru
      _
    // Predicated region
    $region22: #{depth_regression_forward.3} parent=1 // pred_check
      _
    $region23: #{depth_regression_forward.3} parent=1 // pred_check_branch
      %25 = sbr.rel (0) target = $region25
    $region24: #{depth_regression_forward.3} parent=1 // pred_region
      _
    $region25: #{depth_regression_forward.3} parent=1 // pred_fallthru
      _
    // Predicated region
    $region26: #{depth_regression_forward.3} parent=1 // pred_check
      _
    $region27: #{depth_regression_forward.3} parent=1 // pred_check_branch
      %27 = sbr.rel (0) target = $region29
    $region28: #{depth_regression_forward.3} parent=1 // pred_region
      _
    $region29: #{depth_regression_forward.3} parent=1 // pred_fallthru
      _
    // Predicated region
    $region30: #{depth_regression_forward.3} parent=1 // pred_check
      _
    $region31: #{depth_regression_forward.3} parent=1 // pred_check_branch
      %29 = sbr.rel (0) target = $region33
    $region32: #{depth_regression_forward.3} parent=1 // pred_region
      _
    $region33: #{depth_regression_forward.3} parent=1 // pred_fallthru
      _
    %v30 = vld [vmem:[%s0] sm:$0x3]
    %v31 = vmul.f32 %v30, 0.00390625
    %v32 = vld [vmem:[%s1] sm:$0xff]
    %v33 = vld [vmem:[%s1 + $0x8] sm:$0xff]
    %v34 = vld [vmem:[%s1 + $0x10] sm:$0xff]
    %v35 = vld [vmem:[%s1 + $0x18] sm:$0xff]
    %v36 = vld [vmem:[%s1 + $0x20] sm:$0xff]
    %v37 = vld [vmem:[%s1 + $0x28] sm:$0xff]
    %v38 = vld [vmem:[%s1 + $0x30] sm:$0xff]
    %v39 = vld [vmem:[%s1 + $0x38] sm:$0xff]
    %v40 = vld [vmem:[%s1 + $0x40] sm:$0xff]
    %v41 = vld [vmem:[%s1 + $0x48] sm:$0xff]
    %v42 = vld [vmem:[%s1 + $0x50] sm:$0xff]
    %v43 = vld [vmem:[%s1 + $0x58] sm:$0xff]
    %v44 = vld [vmem:[%s1 + $0x60] sm:$0xff]
    %v45 = vld [vmem:[%s1 + $0x68] sm:$0xff]
    %v46 = vld [vmem:[%s1 + $0x70] sm:$0xff]
    %v47 = vld [vmem:[%s1 + $0x78] sm:$0xff]
    %48 = vmatpush.msra.mxu0 %v47
    %49 = vmatpush.msra.mxu0 %v46
    %50 = vmatpush.msra.mxu0 %v45
    %51 = vmatpush.msra.mxu0 %v44
    %52 = vmatpush.msra.mxu0 %v43
    %53 = vmatpush.msra.mxu0 %v42
    %54 = vmatpush.msra.mxu0 %v41
    %55 = vmatpush.msra.mxu0 %v40
    %56 = vmatpush.msra.mxu0 %v39
    %57 = vmatpush.msra.mxu0 %v38
    %58 = vmatpush.msra.mxu0 %v37
    %59 = vmatpush.msra.mxu0 %v36
    %60 = vmatpush.msra.mxu0 %v35
    %61 = vmatpush.msra.mxu0 %v34
    %62 = vmatpush.msra.mxu0 %v33
    %63 = vmatpush.msra.mxu0 %v32
    %64 = vmatmul.f32.gmra.mxu0 %v31
    %v65 = vpop.f32.mrf.mxu0
    %v66 = vadd.f32 0.0, %v65
    %67 = vdwg.mxu0
    %v68 = vld [vmem:[%s2] sm:$0xff]
    %v69 = vld [vmem:[%s2 + $0x8] sm:$0xff]
    %v70 = vld [vmem:[%s2 + $0x10] sm:$0xff]
    %v71 = vld [vmem:[%s2 + $0x18] sm:$0xff]
    %v72 = vld [vmem:[%s2 + $0x20] sm:$0xff]
    %v73 = vld [vmem:[%s2 + $0x28] sm:$0xff]
    %v74 = vld [vmem:[%s2 + $0x30] sm:$0xff]
    %v75 = vld [vmem:[%s2 + $0x38] sm:$0xff]
    %v76 = vld [vmem:[%s2 + $0x40] sm:$0xff]
    %v77 = vld [vmem:[%s2 + $0x48] sm:$0xff]
    %v78 = vld [vmem:[%s2 + $0x50] sm:$0xff]
    %v79 = vld [vmem:[%s2 + $0x58] sm:$0xff]
    %v80 = vld [vmem:[%s2 + $0x60] sm:$0xff]
    %v81 = vld [vmem:[%s2 + $0x68] sm:$0xff]
    %v82 = vld [vmem:[%s2 + $0x70] sm:$0xff]
    %v83 = vld [vmem:[%s2 + $0x78] sm:$0xff]
    %v84 = vld [vmem:[%s2 + $0x80] sm:$0xff]
    %v85 = vld [vmem:[%s2 + $0x88] sm:$0xff]
    %v86 = vld [vmem:[%s2 + $0x90] sm:$0xff]
    %v87 = vld [vmem:[%s2 + $0x98] sm:$0xff]
    %v88 = vld [vmem:[%s2 + $0xa0] sm:$0xff]
    %v89 = vld [vmem:[%s2 + $0xa8] sm:$0xff]
    %v90 = vld [vmem:[%s2 + $0xb0] sm:$0xff]
    %v91 = vld [vmem:[%s2 + $0xb8] sm:$0xff]
    %v92 = vld [vmem:[%s2 + $0xc0] sm:$0xff]
    %v93 = vld [vmem:[%s2 + $0xc8] sm:$0xff]
    %v94 = vld [vmem:[%s2 + $0xd0] sm:$0xff]
    %v95 = vld [vmem:[%s2 + $0xd8] sm:$0xff]
    %v96 = vld [vmem:[%s2 + $0xe0] sm:$0xff]
    %v97 = vld [vmem:[%s2 + $0xe8] sm:$0xff]
    %v98 = vld [vmem:[%s2 + $0xf0] sm:$0xff]
    %v99 = vld [vmem:[%s2 + $0xf8] sm:$0xff]
    %v100 = vld [vmem:[%s3] sm:$0x3]
    %v102 = vperm.slane %v100, 0
    %v103 = vperm.slane %v100, 1
    %106 = vmatpush.msra.mxu0 %v98
    %107 = vmatpush.msra.mxu0 %v96
    %108 = vmatpush.msra.mxu0 %v94
    %109 = vmatpush.msra.mxu0 %v92
    %110 = vmatpush.msra.mxu0 %v90
    %111 = vmatpush.msra.mxu0 %v88
    %112 = vmatpush.msra.mxu0 %v86
    %113 = vmatpush.msra.mxu0 %v84
    %114 = vmatpush.msra.mxu0 %v82
    %115 = vmatpush.msra.mxu0 %v80
    %116 = vmatpush.msra.mxu0 %v78
    %117 = vmatpush.msra.mxu0 %v76
    %118 = vmatpush.msra.mxu0 %v74
    %119 = vmatpush.msra.mxu0 %v72
    %120 = vmatpush.msra.mxu0 %v70
    %121 = vmatpush.msra.mxu0 %v68
    %122 = vmatmul.f32.gmra.mxu0 %v66
    %v123 = vpop.f32.mrf.mxu0
    %v124 = vadd.f32 %v102, %v123
    %125 = vdwg.mxu0
    %126 = vmatpush.msra.mxu0 %v99
    %127 = vmatpush.msra.mxu0 %v97
    %128 = vmatpush.msra.mxu0 %v95
    %129 = vmatpush.msra.mxu0 %v93
    %130 = vmatpush.msra.mxu0 %v91
    %131 = vmatpush.msra.mxu0 %v89
    %132 = vmatpush.msra.mxu0 %v87
    %133 = vmatpush.msra.mxu0 %v85
    %134 = vmatpush.msra.mxu0 %v83
    %135 = vmatpush.msra.mxu0 %v81
    %136 = vmatpush.msra.mxu0 %v79
    %137 = vmatpush.msra.mxu0 %v77
    %138 = vmatpush.msra.mxu0 %v75
    %139 = vmatpush.msra.mxu0 %v73
    %140 = vmatpush.msra.mxu0 %v71
    %141 = vmatpush.msra.mxu0 %v69
    %142 = vmatmul.f32.gmra.mxu0 %v66
    %v143 = vpop.f32.mrf.mxu0
    %v144 = vadd.f32 %v103, %v143
    %145 = vdwg.mxu0
    %vm146 = vcmp.gt.f32.partialorder %v124, 0.0
    %vm147 = vcmp.gt.f32.partialorder %v144, 0.0
    %v148 = vmul.f32 %v124, 0.01
    %v149 = vmul.f32 %v144, 0.01
    %v150 = vsel %vm146, %v124, %v148
    %v151 = vsel %vm147, %v144, %v149
    %v152 = vld [vmem:[%s4] sm:$0xff]
    %v153 = vld [vmem:[%s4 + $0x8] sm:$0xff]
    %v154 = vld [vmem:[%s4 + $0x10] sm:$0xff]
    %v155 = vld [vmem:[%s4 + $0x18] sm:$0xff]
    %v156 = vld [vmem:[%s4 + $0x20] sm:$0xff]
    %v157 = vld [vmem:[%s4 + $0x28] sm:$0xff]
    %v158 = vld [vmem:[%s4 + $0x30] sm:$0xff]
    %v159 = vld [vmem:[%s4 + $0x38] sm:$0xff]
    %v160 = vld [vmem:[%s4 + $0x40] sm:$0xff]
    %v161 = vld [vmem:[%s4 + $0x48] sm:$0xff]
    %v162 = vld [vmem:[%s4 + $0x50] sm:$0xff]
    %v163 = vld [vmem:[%s4 + $0x58] sm:$0xff]
    %v164 = vld [vmem:[%s4 + $0x60] sm:$0xff]
    %v165 = vld [vmem:[%s4 + $0x68] sm:$0xff]
    %v166 = vld [vmem:[%s4 + $0x70] sm:$0xff]
    %v167 = vld [vmem:[%s4 + $0x78] sm:$0xff]
    %v168 = vld [vmem:[%s4 + $0x80] sm:$0xff]
    %v169 = vld [vmem:[%s4 + $0x88] sm:$0xff]
    %v170 = vld [vmem:[%s4 + $0x90] sm:$0xff]
    %v171 = vld [vmem:[%s4 + $0x98] sm:$0xff]
    %v172 = vld [vmem:[%s4 + $0xa0] sm:$0xff]
    %v173 = vld [vmem:[%s4 + $0xa8] sm:$0xff]
    %v174 = vld [vmem:[%s4 + $0xb0] sm:$0xff]
    %v175 = vld [vmem:[%s4 + $0xb8] sm:$0xff]
    %v176 = vld [vmem:[%s4 + $0xc0] sm:$0xff]
    %v177 = vld [vmem:[%s4 + $0xc8] sm:$0xff]
    %v178 = vld [vmem:[%s4 + $0xd0] sm:$0xff]
    %v179 = vld [vmem:[%s4 + $0xd8] sm:$0xff]
    %v180 = vld [vmem:[%s4 + $0xe0] sm:$0xff]
    %v181 = vld [vmem:[%s4 + $0xe8] sm:$0xff]
    %v182 = vld [vmem:[%s4 + $0xf0] sm:$0xff]
    %v183 = vld [vmem:[%s4 + $0xf8] sm:$0xff]
    %v184 = vld [vmem:[%s4 + $0x100] sm:$0xff]
    %v185 = vld [vmem:[%s4 + $0x108] sm:$0xff]
    %v186 = vld [vmem:[%s4 + $0x110] sm:$0xff]
    %v187 = vld [vmem:[%s4 + $0x118] sm:$0xff]
    %v188 = vld [vmem:[%s4 + $0x120] sm:$0xff]
    %v189 = vld [vmem:[%s4 + $0x128] sm:$0xff]
    %v190 = vld [vmem:[%s4 + $0x130] sm:$0xff]
    %v191 = vld [vmem:[%s4 + $0x138] sm:$0xff]
    %v192 = vld [vmem:[%s4 + $0x140] sm:$0xff]
    %v193 = vld [vmem:[%s4 + $0x148] sm:$0xff]
    %v194 = vld [vmem:[%s4 + $0x150] sm:$0xff]
    %v195 = vld [vmem:[%s4 + $0x158] sm:$0xff]
    %v196 = vld [vmem:[%s4 + $0x160] sm:$0xff]
    %v197 = vld [vmem:[%s4 + $0x168] sm:$0xff]
    %v198 = vld [vmem:[%s4 + $0x170] sm:$0xff]
    %v199 = vld [vmem:[%s4 + $0x178] sm:$0xff]
    %v200 = vld [vmem:[%s4 + $0x180] sm:$0xff]
    %v201 = vld [vmem:[%s4 + $0x188] sm:$0xff]
    %v202 = vld [vmem:[%s4 + $0x190] sm:$0xff]
    %v203 = vld [vmem:[%s4 + $0x198] sm:$0xff]
    %v204 = vld [vmem:[%s4 + $0x1a0] sm:$0xff]
    %v205 = vld [vmem:[%s4 + $0x1a8] sm:$0xff]
    %v206 = vld [vmem:[%s4 + $0x1b0] sm:$0xff]
    %v207 = vld [vmem:[%s4 + $0x1b8] sm:$0xff]
    %v208 = vld [vmem:[%s4 + $0x1c0] sm:$0xff]
    %v209 = vld [vmem:[%s4 + $0x1c8] sm:$0xff]
    %v210 = vld [vmem:[%s4 + $0x1d0] sm:$0xff]
    %v211 = vld [vmem:[%s4 + $0x1d8] sm:$0xff]
    %v212 = vld [vmem:[%s4 + $0x1e0] sm:$0xff]
    %v213 = vld [vmem:[%s4 + $0x1e8] sm:$0xff]
    %v214 = vld [vmem:[%s4 + $0x1f0] sm:$0xff]
    %v215 = vld [vmem:[%s4 + $0x1f8] sm:$0xff]
    %v216 = vld [vmem:[%s5] sm:$0x3]
    %v218 = vperm.slane %v216, 0
    %v219 = vperm.slane %v216, 1
    %222 = vmatpush.msra.mxu0 %v182
    %223 = vmatpush.msra.mxu0 %v180
    %224 = vmatpush.msra.mxu0 %v178
    %225 = vmatpush.msra.mxu0 %v176
    %226 = vmatpush.msra.mxu0 %v174
    %227 = vmatpush.msra.mxu0 %v172
    %228 = vmatpush.msra.mxu0 %v170
    %229 = vmatpush.msra.mxu0 %v168
    %230 = vmatpush.msra.mxu0 %v166
    %231 = vmatpush.msra.mxu0 %v164
    %232 = vmatpush.msra.mxu0 %v162
    %233 = vmatpush.msra.mxu0 %v160
    %234 = vmatpush.msra.mxu0 %v158
    %235 = vmatpush.msra.mxu0 %v156
    %236 = vmatpush.msra.mxu0 %v154
    %237 = vmatpush.msra.mxu0 %v152
    %238 = vmatmul.f32.gmra.mxu0 %v150
    %v239 = vpop.f32.mrf.mxu0
    %v240 = vadd.f32 %v218, %v239
    %241 = vdwg.mxu0
    %242 = vmatpush.msra.mxu0 %v214
    %243 = vmatpush.msra.mxu0 %v212
    %244 = vmatpush.msra.mxu0 %v210
    %245 = vmatpush.msra.mxu0 %v208
    %246 = vmatpush.msra.mxu0 %v206
    %247 = vmatpush.msra.mxu0 %v204
    %248 = vmatpush.msra.mxu0 %v202
    %249 = vmatpush.msra.mxu0 %v200
    %250 = vmatpush.msra.mxu0 %v198
    %251 = vmatpush.msra.mxu0 %v196
    %252 = vmatpush.msra.mxu0 %v194
    %253 = vmatpush.msra.mxu0 %v192
    %254 = vmatpush.msra.mxu0 %v190
    %255 = vmatpush.msra.mxu0 %v188
    %256 = vmatpush.msra.mxu0 %v186
    %257 = vmatpush.msra.mxu0 %v184
    %258 = vmatmul.f32.gmra.mxu0 %v151
    %v259 = vpop.f32.mrf.mxu0
    %v260 = vadd.f32 %v240, %v259
    %261 = vdwg.mxu0
    %262 = vmatpush.msra.mxu0 %v183
    %263 = vmatpush.msra.mxu0 %v181
    %264 = vmatpush.msra.mxu0 %v179
    %265 = vmatpush.msra.mxu0 %v177
    %266 = vmatpush.msra.mxu0 %v175
    %267 = vmatpush.msra.mxu0 %v173
    %268 = vmatpush.msra.mxu0 %v171
    %269 = vmatpush.msra.mxu0 %v169
    %270 = vmatpush.msra.mxu0 %v167
    %271 = vmatpush.msra.mxu0 %v165
    %272 = vmatpush.msra.mxu0 %v163
    %273 = vmatpush.msra.mxu0 %v161
    %274 = vmatpush.msra.mxu0 %v159
    %275 = vmatpush.msra.mxu0 %v157
    %276 = vmatpush.msra.mxu0 %v155
    %277 = vmatpush.msra.mxu0 %v153
    %278 = vmatmul.f32.gmra.mxu0 %v150
    %v279 = vpop.f32.mrf.mxu0
    %v280 = vadd.f32 %v219, %v279
    %281 = vdwg.mxu0
    %282 = vmatpush.msra.mxu0 %v215
    %283 = vmatpush.msra.mxu0 %v213
    %284 = vmatpush.msra.mxu0 %v211
    %285 = vmatpush.msra.mxu0 %v209
    %286 = vmatpush.msra.mxu0 %v207
    %287 = vmatpush.msra.mxu0 %v205
    %288 = vmatpush.msra.mxu0 %v203
    %289 = vmatpush.msra.mxu0 %v201
    %290 = vmatpush.msra.mxu0 %v199
    %291 = vmatpush.msra.mxu0 %v197
    %292 = vmatpush.msra.mxu0 %v195
    %293 = vmatpush.msra.mxu0 %v193
    %294 = vmatpush.msra.mxu0 %v191
    %295 = vmatpush.msra.mxu0 %v189
    %296 = vmatpush.msra.mxu0 %v187
    %297 = vmatpush.msra.mxu0 %v185
    %298 = vmatmul.f32.gmra.mxu0 %v151
    %v299 = vpop.f32.mrf.mxu0
    %v300 = vadd.f32 %v280, %v299
    %301 = vdwg.mxu0
    %vm302 = vcmp.gt.f32.partialorder %v260, 0.0
    %vm303 = vcmp.gt.f32.partialorder %v300, 0.0
    %v304 = vmul.f32 %v260, 0.01
    %v305 = vmul.f32 %v300, 0.01
    %v306 = vsel %vm302, %v260, %v304
    %v307 = vsel %vm303, %v300, %v305
    %v308 = vld [vmem:[%s6] sm:$0xff]
    %v309 = vld [vmem:[%s6 + $0x8] sm:$0xff]
    %v310 = vld [vmem:[%s6 + $0x10] sm:$0xff]
    %v311 = vld [vmem:[%s6 + $0x18] sm:$0xff]
    %v312 = vld [vmem:[%s6 + $0x20] sm:$0xff]
    %v313 = vld [vmem:[%s6 + $0x28] sm:$0xff]
    %v314 = vld [vmem:[%s6 + $0x30] sm:$0xff]
    %v315 = vld [vmem:[%s6 + $0x38] sm:$0xff]
    %v316 = vld [vmem:[%s6 + $0x40] sm:$0xff]
    %v317 = vld [vmem:[%s6 + $0x48] sm:$0xff]
    %v318 = vld [vmem:[%s6 + $0x50] sm:$0xff]
    %v319 = vld [vmem:[%s6 + $0x58] sm:$0xff]
    %v320 = vld [vmem:[%s6 + $0x60] sm:$0xff]
    %v321 = vld [vmem:[%s6 + $0x68] sm:$0xff]
    %v322 = vld [vmem:[%s6 + $0x70] sm:$0xff]
    %v323 = vld [vmem:[%s6 + $0x78] sm:$0xff]
    %v324 = vld [vmem:[%s6 + $0x80] sm:$0xff]
    %v325 = vld [vmem:[%s6 + $0x88] sm:$0xff]
    %v326 = vld [vmem:[%s6 + $0x90] sm:$0xff]
    %v327 = vld [vmem:[%s6 + $0x98] sm:$0xff]
    %v328 = vld [vmem:[%s6 + $0xa0] sm:$0xff]
    %v329 = vld [vmem:[%s6 + $0xa8] sm:$0xff]
    %v330 = vld [vmem:[%s6 + $0xb0] sm:$0xff]
    %v331 = vld [vmem:[%s6 + $0xb8] sm:$0xff]
    %v332 = vld [vmem:[%s6 + $0xc0] sm:$0xff]
    %v333 = vld [vmem:[%s6 + $0xc8] sm:$0xff]
    %v334 = vld [vmem:[%s6 + $0xd0] sm:$0xff]
    %v335 = vld [vmem:[%s6 + $0xd8] sm:$0xff]
    %v336 = vld [vmem:[%s6 + $0xe0] sm:$0xff]
    %v337 = vld [vmem:[%s6 + $0xe8] sm:$0xff]
    %v338 = vld [vmem:[%s6 + $0xf0] sm:$0xff]
    %v339 = vld [vmem:[%s6 + $0xf8] sm:$0xff]
    %v340 = vld [vmem:[%s6 + $0x100] sm:$0xff]
    %v341 = vld [vmem:[%s6 + $0x108] sm:$0xff]
    %v342 = vld [vmem:[%s6 + $0x110] sm:$0xff]
    %v343 = vld [vmem:[%s6 + $0x118] sm:$0xff]
    %v344 = vld [vmem:[%s6 + $0x120] sm:$0xff]
    %v345 = vld [vmem:[%s6 + $0x128] sm:$0xff]
    %v346 = vld [vmem:[%s6 + $0x130] sm:$0xff]
    %v347 = vld [vmem:[%s6 + $0x138] sm:$0xff]
    %v348 = vld [vmem:[%s6 + $0x140] sm:$0xff]
    %v349 = vld [vmem:[%s6 + $0x148] sm:$0xff]
    %v350 = vld [vmem:[%s6 + $0x150] sm:$0xff]
    %v351 = vld [vmem:[%s6 + $0x158] sm:$0xff]
    %v352 = vld [vmem:[%s6 + $0x160] sm:$0xff]
    %v353 = vld [vmem:[%s6 + $0x168] sm:$0xff]
    %v354 = vld [vmem:[%s6 + $0x170] sm:$0xff]
    %v355 = vld [vmem:[%s6 + $0x178] sm:$0xff]
    %v356 = vld [vmem:[%s6 + $0x180] sm:$0xff]
    %v357 = vld [vmem:[%s6 + $0x188] sm:$0xff]
    %v358 = vld [vmem:[%s6 + $0x190] sm:$0xff]
    %v359 = vld [vmem:[%s6 + $0x198] sm:$0xff]
    %v360 = vld [vmem:[%s6 + $0x1a0] sm:$0xff]
    %v361 = vld [vmem:[%s6 + $0x1a8] sm:$0xff]
    %v362 = vld [vmem:[%s6 + $0x1b0] sm:$0xff]
    %v363 = vld [vmem:[%s6 + $0x1b8] sm:$0xff]
    %v364 = vld [vmem:[%s6 + $0x1c0] sm:$0xff]
    %v365 = vld [vmem:[%s6 + $0x1c8] sm:$0xff]
    %v366 = vld [vmem:[%s6 + $0x1d0] sm:$0xff]
    %v367 = vld [vmem:[%s6 + $0x1d8] sm:$0xff]
    %v368 = vld [vmem:[%s6 + $0x1e0] sm:$0xff]
    %v369 = vld [vmem:[%s6 + $0x1e8] sm:$0xff]
    %v370 = vld [vmem:[%s6 + $0x1f0] sm:$0xff]
    %v371 = vld [vmem:[%s6 + $0x1f8] sm:$0xff]
    %v372 = vld [vmem:[%s7] sm:$0x3]
    %v374 = vperm.slane %v372, 0
    %v375 = vperm.slane %v372, 1
    %378 = vmatpush.msra.mxu0 %v338
    %379 = vmatpush.msra.mxu0 %v336
    %380 = vmatpush.msra.mxu0 %v334
    %381 = vmatpush.msra.mxu0 %v332
    %382 = vmatpush.msra.mxu0 %v330
    %383 = vmatpush.msra.mxu0 %v328
    %384 = vmatpush.msra.mxu0 %v326
    %385 = vmatpush.msra.mxu0 %v324
    %386 = vmatpush.msra.mxu0 %v322
    %387 = vmatpush.msra.mxu0 %v320
    %388 = vmatpush.msra.mxu0 %v318
    %389 = vmatpush.msra.mxu0 %v316
    %390 = vmatpush.msra.mxu0 %v314
    %391 = vmatpush.msra.mxu0 %v312
    %392 = vmatpush.msra.mxu0 %v310
    %393 = vmatpush.msra.mxu0 %v308
    %394 = vmatmul.f32.gmra.mxu0 %v306
    %v395 = vpop.f32.mrf.mxu0
    %v396 = vadd.f32 %v374, %v395
    %397 = vdwg.mxu0
    %398 = vmatpush.msra.mxu0 %v370
    %399 = vmatpush.msra.mxu0 %v368
    %400 = vmatpush.msra.mxu0 %v366
    %401 = vmatpush.msra.mxu0 %v364
    %402 = vmatpush.msra.mxu0 %v362
    %403 = vmatpush.msra.mxu0 %v360
    %404 = vmatpush.msra.mxu0 %v358
    %405 = vmatpush.msra.mxu0 %v356
    %406 = vmatpush.msra.mxu0 %v354
    %407 = vmatpush.msra.mxu0 %v352
    %408 = vmatpush.msra.mxu0 %v350
    %409 = vmatpush.msra.mxu0 %v348
    %410 = vmatpush.msra.mxu0 %v346
    %411 = vmatpush.msra.mxu0 %v344
    %412 = vmatpush.msra.mxu0 %v342
    %413 = vmatpush.msra.mxu0 %v340
    %414 = vmatmul.f32.gmra.mxu0 %v307
    %v415 = vpop.f32.mrf.mxu0
    %v416 = vadd.f32 %v396, %v415
    %417 = vdwg.mxu0
    %418 = vmatpush.msra.mxu0 %v339
    %419 = vmatpush.msra.mxu0 %v337
    %420 = vmatpush.msra.mxu0 %v335
    %421 = vmatpush.msra.mxu0 %v333
    %422 = vmatpush.msra.mxu0 %v331
    %423 = vmatpush.msra.mxu0 %v329
    %424 = vmatpush.msra.mxu0 %v327
    %425 = vmatpush.msra.mxu0 %v325
    %426 = vmatpush.msra.mxu0 %v323
    %427 = vmatpush.msra.mxu0 %v321
    %428 = vmatpush.msra.mxu0 %v319
    %429 = vmatpush.msra.mxu0 %v317
    %430 = vmatpush.msra.mxu0 %v315
    %431 = vmatpush.msra.mxu0 %v313
    %432 = vmatpush.msra.mxu0 %v311
    %433 = vmatpush.msra.mxu0 %v309
    %434 = vmatmul.f32.gmra.mxu0 %v306
    %v435 = vpop.f32.mrf.mxu0
    %v436 = vadd.f32 %v375, %v435
    %437 = vdwg.mxu0
    %438 = vmatpush.msra.mxu0 %v371
    %439 = vmatpush.msra.mxu0 %v369
    %440 = vmatpush.msra.mxu0 %v367
    %441 = vmatpush.msra.mxu0 %v365
    %442 = vmatpush.msra.mxu0 %v363
    %443 = vmatpush.msra.mxu0 %v361
    %444 = vmatpush.msra.mxu0 %v359
    %445 = vmatpush.msra.mxu0 %v357
    %446 = vmatpush.msra.mxu0 %v355
    %447 = vmatpush.msra.mxu0 %v353
    %448 = vmatpush.msra.mxu0 %v351
    %449 = vmatpush.msra.mxu0 %v349
    %450 = vmatpush.msra.mxu0 %v347
    %451 = vmatpush.msra.mxu0 %v345
    %452 = vmatpush.msra.mxu0 %v343
    %453 = vmatpush.msra.mxu0 %v341
    %454 = vmatmul.f32.gmra.mxu0 %v307
    %v455 = vpop.f32.mrf.mxu0
    %v456 = vadd.f32 %v436, %v455
    %457 = vdwg.mxu0
    %v458 = vmax.f32 %v416, 0.0
    %v459 = vmax.f32 %v456, 0.0
    %v460 = vadd.f32 %v458, 0.1
    %v461 = vadd.f32 %v459, 0.1
    %vm462 = vcmask 1041408
    %v463 = vsel %vm462, %v460, 0.0
    %v464 = vsel %vm462, %v461, 0.0
    %v465 = vadd.f32 %v463, %v464
    %466 = vadd.xlane.f32.xlu0 %v465
    %v467 = vpop.xlane.xlu0 %466
    %v468 = vrcp.pop %v467
    %v469 = vmul.f32 %v467, %v468
    %v470 = vsub.f32 1.0, %v469
    %v471 = vmul.f32 %v468, %v470
    %v472 = vadd.f32 %v468, %v471
    %vm473 = vweird.f32 %v467
    %vm474 = vweird.f32 %v468
    %vm475 = vmor %vm473, %vm474
    %v476 = vsel %vm475, %v468, %v472
    %v477 = vand.u32 2147483647, %v467
    %vm478 = vcmp.eq.f32.partialorder %v477, 8.507059e+37
    %v479 = vand.u32 %v467, 2147483648
    %v480 = vor.u32 1.1754944e-38, %v479
    %v481 = vsel %vm478, %v480, %v476
    %v482 = vmul.f32 %v460, %v481
    %v483 = vmul.f32 %v461, %v481
    %v486 = vrot.slane %v483, 6
    %v487 = vsel %vm462, %v482, %v486
    %489 = vst [vmem:[#allocation2] sm:$0xf] %v487
    // Predicated region
    $region34: #{depth_regression_forward.3} parent=1 // pred_check
      _
    $region35: #{depth_regression_forward.3} parent=1 // pred_check_branch
      %491 = sbr.rel (0) target = $region37
    $region36: #{depth_regression_forward.3} parent=1 // pred_region
      %493 = vsyncadd [#allocation3], 0
      %s495 = sshll.u32 [#allocation2], 4
      %s496 = int_to_ptr.vmem [resolvable:$true] %s495
      %s497 = sshll.u32 %s8, 4
      %s498 = int_to_ptr.hbm [resolvable:$true] %s497
      %500 = dma.vmem_to_hbm [thread:$0]  %s496, 64, %s498, [#allocation3]
    $region37: #{depth_regression_forward.3} parent=1 // pred_fallthru
      _
    // Predicated region
    $region38: #{depth_regression_forward.3} parent=1 // pred_check
      _
    $region39: #{depth_regression_forward.3} parent=1 // pred_check_branch
      %502 = sbr.rel (0) target = $region41
    $region40: #{depth_regression_forward.3} parent=1 // pred_region
      %504 = dma.done [#allocation3], 64
    $region41: #{depth_regression_forward.3} parent=1 // pred_fallthru
      _
    %505 = vsyncpa [#allocation3], 1

// kernel: depth_regression_forward.2
$region0: #{depth_regression_forward.2}
  #allocation0 [shape = 'u32[]', space=smem, size = 0x4, offset = 0x4, fixed_abs, tag = 'smem constant byte address 0x4 - core index']
  #allocation1 [shape = 'u32[72,128]{1,0:T(1,128)}', space=vmem, size = 0x9000, scoped, tag = 'internal scratch']
  %s0 = inlined_call_operand.vmem [shape: bf16[2,432,128], index: 0, kind: input, shape index: {}]
  %s1 = inlined_call_operand.vmem [shape: bf16[3,128,384], index: 1, kind: input, shape index: {}]
  %s2 = inlined_call_operand.vmem [shape: f32[1,128], index: 2, kind: input, shape index: {}]
  %s3 = inlined_call_operand.hbm [shape: f32[2,16,16,128], index: 3, kind: output, shape index: {0}]
  %s4 = inlined_call_operand.vmem [shape: f32[2,1,128], index: 4, kind: output, shape index: {1}]
  %5 = xla_tuple %s3, %s4
  %s6 = sld [smem:[#allocation0]]
  $region53: #{depth_regression_forward.2} parent=0
    _
  %s8 = ssub.s32 1, %s6
  %s9 = scalar_select 0, %s8, %s6
  $region1: #{depth_regression_forward.2} parent=0
    #allocation2 [shape = 'u8[262144]{0}', space=vmem, size = 0x40000, scoped, tag = 'output window, operand 0']
    #allocation3 [shape = 's32[2]{0}', space=sflag, size = 0x8, scoped, tag = 'scoped memory for depth_regression_forward.2']
    %10 = vsyncpa [#allocation3], 0
    %s11 = scalar_lea.sflag [#allocation3], 1
    %12 = vsyncpa %s11, 0
    loop: start=0, step=1, limit=4
    $region2: #{depth_regression_forward.2} parent=1 // loop_pre_header
      _
    $region3: #{depth_regression_forward.2} parent=1 // loop_header
      %s14 = sphi 0, %s18
      %p15 = scmp.ge.s32.totalorder %s14, 4
      %s24 = sphi 0, %s26
      %s27 = sphi 0, %s24
      %s28 = sphi 0, %s27
      %s44 = sphi 0, %s28
      %s48 = sphi 0, %s48
      %s50 = sphi 0, %s48
      %s51 = sphi 0, %s50
      %s65 = sphi 0, %s51
      %s69 = sphi 0, %s69
      %s71 = sphi 0, %s69
      %s72 = sphi 0, %s71
      %s86 = sphi 0, %s72
      %s92 = sphi 0, %s94
      %s95 = sphi 0, %s92
      %s96 = sphi 0, %s95
      %s112 = sphi 0, %s96
      %s118 = sphi 0, %s120
      %s121 = sphi 0, %s118
      %s122 = sphi 0, %s121
      %s138 = sphi 0, %s122
    $region4: #{depth_regression_forward.2} parent=1 // loop_header_branch
      %17 = sbr.rel (%p15) target = $region8
    $region5: #{depth_regression_forward.2} parent=1 // loop_body
      %s19 = ssub.s32 %s14, 1
      %s20 = ssub.s32 %s14, 2
      %s21 = sadd.s32 %s14, 1
      %s22 = ssub.s32 %s14, %s21
      %p23 = scmp.eq.s32.totalorder %s22, 0
      %s25 = sadd.s32 %s24, 1
      %s26 = scalar_select %p23, %s24, %s25
      %p29 = pneg %p23
      %p30 = scmp.eq.s32.totalorder %s14, 1
      %p31 = por %p29, %p30
      %p32 = scmp.ne.s32.totalorder %s24, %s27
      %p33 = scmp.eq.s32.totalorder %s14, 0
      %p34 = por %p32, %p33
      %p35 = scmp.ne.s32.totalorder %s24, %s27
      %p36 = scmp.eq.s32.totalorder %s19, 1
      %p37 = por %p35, %p36
      %p38 = scmp.ne.s32.totalorder %s27, %s28
      %p39 = scmp.eq.s32.totalorder %s19, 0
      %p40 = por %p38, %p39
      %p41 = scmp.ne.s32.totalorder %s27, %s28
      %p42 = scmp.eq.s32.totalorder %s20, 1
      %p43 = por %p41, %p42
      %p45 = scmp.ne.s32.totalorder %s28, %s44
      %p46 = scmp.eq.s32.totalorder %s20, 0
      %p47 = por %p45, %p46
      %s49 = sadd.s32 %s48, 1
      %p52 = scmp.eq.s32.totalorder %s14, 1
      %p53 = scmp.ne.s32.totalorder %s48, %s50
      %p54 = scmp.eq.s32.totalorder %s14, 0
      %p55 = por %p53, %p54
      %p56 = scmp.ne.s32.totalorder %s48, %s50
      %p57 = scmp.eq.s32.totalorder %s19, 1
      %p58 = por %p56, %p57
      %p59 = scmp.ne.s32.totalorder %s50, %s51
      %p60 = scmp.eq.s32.totalorder %s19, 0
      %p61 = por %p59, %p60
      %p62 = scmp.ne.s32.totalorder %s50, %s51
      %p63 = scmp.eq.s32.totalorder %s20, 1
      %p64 = por %p62, %p63
      %p66 = scmp.ne.s32.totalorder %s51, %s65
      %p67 = scmp.eq.s32.totalorder %s20, 0
      %p68 = por %p66, %p67
      %s70 = sadd.s32 %s69, 1
      %p73 = scmp.eq.s32.totalorder %s14, 1
      %p74 = scmp.ne.s32.totalorder %s69, %s71
      %p75 = scmp.eq.s32.totalorder %s14, 0
      %p76 = por %p74, %p75
      %p77 = scmp.ne.s32.totalorder %s69, %s71
      %p78 = scmp.eq.s32.totalorder %s19, 1
      %p79 = por %p77, %p78
      %p80 = scmp.ne.s32.totalorder %s71, %s72
      %p81 = scmp.eq.s32.totalorder %s19, 0
      %p82 = por %p80, %p81
      %p83 = scmp.ne.s32.totalorder %s71, %s72
      %p84 = scmp.eq.s32.totalorder %s20, 1
      %p85 = por %p83, %p84
      %p87 = scmp.ne.s32.totalorder %s72, %s86
      %p88 = scmp.eq.s32.totalorder %s20, 0
      %p89 = por %p87, %p88
      %s90 = ssub.s32 %s14, %s21
      %p91 = scmp.eq.s32.totalorder %s90, 0
      %s93 = sadd.s32 %s92, 1
      %s94 = scalar_select %p91, %s92, %s93
      %p97 = pneg %p91
      %p98 = scmp.eq.s32.totalorder %s14, 1
      %p99 = por %p97, %p98
      %p100 = scmp.ne.s32.totalorder %s92, %s95
      %p101 = scmp.eq.s32.totalorder %s14, 0
      %p102 = por %p100, %p101
      %p103 = scmp.ne.s32.totalorder %s92, %s95
      %p104 = scmp.eq.s32.totalorder %s19, 1
      %p105 = por %p103, %p104
      %p106 = scmp.ne.s32.totalorder %s95, %s96
      %p107 = scmp.eq.s32.totalorder %s19, 0
      %p108 = por %p106, %p107
      %p109 = scmp.ne.s32.totalorder %s95, %s96
      %p110 = scmp.eq.s32.totalorder %s20, 1
      %p111 = por %p109, %p110
      %p113 = scmp.ne.s32.totalorder %s96, %s112
      %p114 = scmp.eq.s32.totalorder %s20, 0
      %p115 = por %p113, %p114
      %s116 = ssub.s32 %s14, %s21
      %p117 = scmp.eq.s32.totalorder %s116, 0
      %s119 = sadd.s32 %s118, 1
      %s120 = scalar_select %p117, %s118, %s119
      %p123 = pneg %p117
      %p124 = scmp.eq.s32.totalorder %s14, 1
      %p125 = por %p123, %p124
      %p126 = scmp.ne.s32.totalorder %s118, %s121
      %p127 = scmp.eq.s32.totalorder %s14, 0
      %p128 = por %p126, %p127
      %p129 = scmp.ne.s32.totalorder %s118, %s121
      %p130 = scmp.eq.s32.totalorder %s19, 1
      %p131 = por %p129, %p130
      %p132 = scmp.ne.s32.totalorder %s121, %s122
      %p133 = scmp.eq.s32.totalorder %s19, 0
      %p134 = por %p132, %p133
      %p135 = scmp.ne.s32.totalorder %s121, %s122
      %p136 = scmp.eq.s32.totalorder %s20, 1
      %p137 = por %p135, %p136
      %p139 = scmp.ne.s32.totalorder %s122, %s138
      %p140 = scmp.eq.s32.totalorder %s20, 0
      %p141 = por %p139, %p140
      %p142 = scmp.le.s32.totalorder 1, %s14
      %p143 = scmp.lt.s32.totalorder %s14, 3
      %p144 = pnand %p142, %p143
      %p145 = pneg %p144
      // Predicated region
      $region9: #{depth_regression_forward.2} parent=5 // pred_check
        _
      $region10: #{depth_regression_forward.2} parent=5 // pred_check_branch
        %147 = sbr.rel (%p144) target = $region12
      $region11: #{depth_regression_forward.2} parent=5 // pred_region
        %s148 = ssub.s32 %s14, 1
        // Predicated region
        $region13: #{depth_regression_forward.2} parent=11 // pred_check
          %p149 = pneg %p61
        $region14: #{depth_regression_forward.2} parent=11 // pred_check_branch
          %151 = sbr.rel (%p149) target = $region16
        $region15: #{depth_regression_forward.2} parent=11 // pred_region
          _
        $region16: #{depth_regression_forward.2} parent=11 // pred_fallthru
          _
        // Predicated region
        $region17: #{depth_regression_forward.2} parent=11 // pred_check
          %p152 = pneg %p82
        $region18: #{depth_regression_forward.2} parent=11 // pred_check_branch
          %154 = sbr.rel (%p152) target = $region20
        $region19: #{depth_regression_forward.2} parent=11 // pred_region
          _
        $region20: #{depth_regression_forward.2} parent=11 // pred_fallthru
          _
      $region12: #{depth_regression_forward.2} parent=5 // pred_fallthru
        _
      %p155 = scmp.lt.s32.totalorder %s14, 2
      // Predicated region
      $region21: #{depth_regression_forward.2} parent=5 // pred_check
        %p156 = pneg %p155
      $region22: #{depth_regression_forward.2} parent=5 // pred_check_branch
        %158 = sbr.rel (%p156) target = $region24
      $region23: #{depth_regression_forward.2} parent=5 // pred_region
        // Predicated region
        $region25: #{depth_regression_forward.2} parent=23 // pred_check
          %p159 = pneg %p34
        $region26: #{depth_regression_forward.2} parent=23 // pred_check_branch
          %161 = sbr.rel (%p159) target = $region28
        $region27: #{depth_regression_forward.2} parent=23 // pred_region
          %p162 = scmp.lt.s32.totalorder %s14, 1
          %s163 = scalar_select %p162, %s14, 1
          %s164 = smul.addr %s163, 54
          %s165 = smul.addr %s164, 4
          %s166 = scalar_lea.vmem %s0, %s165
        $region28: #{depth_regression_forward.2} parent=23 // pred_fallthru
          _
      $region24: #{depth_regression_forward.2} parent=5 // pred_fallthru
        _
      %p167 = scmp.le.s32.totalorder 1, %s14
      %p168 = scmp.lt.s32.totalorder %s14, 3
      %p169 = pnand %p167, %p168
      %p170 = pneg %p169
      // Predicated region
      $region29: #{depth_regression_forward.2} parent=5 // pred_check
        _
      $region30: #{depth_regression_forward.2} parent=5 // pred_check_branch
        %172 = sbr.rel (%p169) target = $region32
      $region31: #{depth_regression_forward.2} parent=5 // pred_region
        %s173 = ssub.s32 %s14, 1
        %p174 = scmp.lt.s32.totalorder %s19, 1
        %s175 = scalar_select %p174, %s19, 1
        %s176 = smul.addr %s175, 54
        %s177 = smul.addr %s176, 4
        %s178 = scalar_lea.vmem %s0, %s177
        %p179 = pneg %p40
        %p180 = pneg %p37
        %p181 = pneg %p61
        %p182 = pneg %p58
        %p183 = pneg %p82
        %p184 = pneg %p79
        %p185 = pneg %p108
        %p186 = pneg %p105
        %s187 = sand.u32 %s95, 1
        %s188 = scalar_lea.sflag [#allocation3], %s187
        %s189 = sand.u32 %s95, 1
        %s190 = smul.addr %s189, 256
        %s191 = scalar_lea.vmem [#allocation2], %s190
        %p192 = pneg %p134
        %p193 = pneg %p131
        %p194 = scmp.lt.s32.totalorder %s19, 1
        %s195 = scalar_select %p194, %s19, 1
        %s196 = scalar_lea.vmem %s4, %s195
        %p197 = scmp.lt.s32.totalorder %s19, 1
        %s198 = scalar_select %p197, %s19, 1
        %s199 = smul.addr %s198, 54
        %s200 = smul.addr %s199, 4
        %s201 = scalar_lea.vmem %s0, %s200
        %p202 = scmp.lt.s32.totalorder %s19, 1
        %s203 = scalar_select %p202, %s19, 1
        %s204 = scalar_lea.vmem %s4, %s203
        %v205 = vld [vmem:[%s201] sm:$0xf]
        %v206 = vld [vmem:[%s201 + $0x4] sm:$0xf]
        %v207 = vld [vmem:[%s201 + $0x8] sm:$0xf]
        %v208 = vld [vmem:[%s201 + $0xc] sm:$0xf]
        %v209 = vld [vmem:[%s201 + $0x10] sm:$0xf]
        %v210 = vld [vmem:[%s201 + $0x14] sm:$0xf]
        %v211 = vld [vmem:[%s201 + $0x18] sm:$0xf]
        %v212 = vld [vmem:[%s201 + $0x1c] sm:$0xf]
        %v213 = vld [vmem:[%s201 + $0x20] sm:$0xf]
        %v214 = vld [vmem:[%s201 + $0x24] sm:$0xf]
        %v215 = vld [vmem:[%s201 + $0x28] sm:$0xf]
        %v216 = vld [vmem:[%s201 + $0x2c] sm:$0xf]
        %v217 = vld [vmem:[%s201 + $0x30] sm:$0xf]
        %v218 = vld [vmem:[%s201 + $0x34] sm:$0xf]
        %v219 = vld [vmem:[%s201 + $0x38] sm:$0xf]
        %v220 = vld [vmem:[%s201 + $0x3c] sm:$0xf]
        %v221 = vld [vmem:[%s201 + $0x40] sm:$0xf]
        %v222 = vld [vmem:[%s201 + $0x44] sm:$0xf]
        %v223 = vld [vmem:[%s201 + $0x48] sm:$0xf]
        %v224 = vld [vmem:[%s201 + $0x4c] sm:$0xf]
        %v225 = vld [vmem:[%s201 + $0x50] sm:$0xf]
        %v226 = vld [vmem:[%s201 + $0x54] sm:$0xf]
        %v227 = vld [vmem:[%s201 + $0x58] sm:$0xf]
        %v228 = vld [vmem:[%s201 + $0x5c] sm:$0xf]
        %v229 = vld [vmem:[%s201 + $0x60] sm:$0xf]
        %v230 = vld [vmem:[%s201 + $0x64] sm:$0xf]
        %v231 = vld [vmem:[%s201 + $0x68] sm:$0xf]
        %v232 = vld [vmem:[%s201 + $0x6c] sm:$0xf]
        %v233 = vld [vmem:[%s201 + $0x70] sm:$0xf]
        %v234 = vld [vmem:[%s201 + $0x74] sm:$0xf]
        %v235 = vld [vmem:[%s201 + $0x78] sm:$0xf]
        %v236 = vld [vmem:[%s201 + $0x7c] sm:$0xf]
        %v237 = vld [vmem:[%s201 + $0x80] sm:$0xf]
        %v238 = vld [vmem:[%s201 + $0x84] sm:$0xf]
        %v239 = vld [vmem:[%s201 + $0x88] sm:$0xf]
        %v240 = vld [vmem:[%s201 + $0x8c] sm:$0xf]
        %v241 = vld [vmem:[%s201 + $0x90] sm:$0xf]
        %v242 = vld [vmem:[%s201 + $0x94] sm:$0xf]
        %v243 = vld [vmem:[%s201 + $0x98] sm:$0xf]
        %v244 = vld [vmem:[%s201 + $0x9c] sm:$0xf]
        %v245 = vld [vmem:[%s201 + $0xa0] sm:$0xf]
        %v246 = vld [vmem:[%s201 + $0xa4] sm:$0xf]
        %v247 = vld [vmem:[%s201 + $0xa8] sm:$0xf]
        %v248 = vld [vmem:[%s201 + $0xac] sm:$0xf]
        %v249 = vld [vmem:[%s201 + $0xb0] sm:$0xf]
        %v250 = vld [vmem:[%s201 + $0xb4] sm:$0xf]
        %v251 = vld [vmem:[%s201 + $0xb8] sm:$0xf]
        %v252 = vld [vmem:[%s201 + $0xbc] sm:$0xf]
        %v253 = vld [vmem:[%s201 + $0xc0] sm:$0xf]
        %v254 = vld [vmem:[%s201 + $0xc4] sm:$0xf]
        %v255 = vld [vmem:[%s201 + $0xc8] sm:$0xf]
        %v256 = vld [vmem:[%s201 + $0xcc] sm:$0xf]
        %v257 = vld [vmem:[%s201 + $0xd0] sm:$0xf]
        %v258 = vld [vmem:[%s201 + $0xd4] sm:$0xf]
        %v259 = vunpack.c.l.bf16 %v205
        %v260 = vunpack.c.l.bf16 %v206
        %v261 = vunpack.c.l.bf16 %v207
        %v262 = vunpack.c.l.bf16 %v208
        %v263 = vunpack.c.l.bf16 %v209
        %v264 = vunpack.c.l.bf16 %v210
        %v265 = vunpack.c.l.bf16 %v211
        %v266 = vunpack.c.l.bf16 %v212
        %v267 = vunpack.c.l.bf16 %v213
        %v268 = vunpack.c.l.bf16 %v214
        %v269 = vunpack.c.l.bf16 %v215
        %v270 = vunpack.c.l.bf16 %v216
        %v271 = vunpack.c.l.bf16 %v217
        %v272 = vunpack.c.l.bf16 %v218
        %v273 = vunpack.c.l.bf16 %v219
        %v274 = vunpack.c.l.bf16 %v220
        %v275 = vunpack.c.l.bf16 %v221
        %v276 = vunpack.c.l.bf16 %v222
        %v277 = vunpack.c.l.bf16 %v223
        %v278 = vunpack.c.l.bf16 %v224
        %v279 = vunpack.c.l.bf16 %v225
        %v280 = vunpack.c.l.bf16 %v226
        %v281 = vunpack.c.l.bf16 %v227
        %v282 = vunpack.c.l.bf16 %v228
        %v283 = vunpack.c.l.bf16 %v229
        %v284 = vunpack.c.l.bf16 %v230
        %v285 = vunpack.c.l.bf16 %v231
        %v286 = vunpack.c.l.bf16 %v232
        %v287 = vunpack.c.l.bf16 %v233
        %v288 = vunpack.c.l.bf16 %v234
        %v289 = vunpack.c.l.bf16 %v235
        %v290 = vunpack.c.l.bf16 %v236
        %v291 = vunpack.c.l.bf16 %v237
        %v292 = vunpack.c.l.bf16 %v238
        %v293 = vunpack.c.l.bf16 %v239
        %v294 = vunpack.c.l.bf16 %v240
        %v295 = vunpack.c.l.bf16 %v241
        %v296 = vunpack.c.l.bf16 %v242
        %v297 = vunpack.c.l.bf16 %v243
        %v298 = vunpack.c.l.bf16 %v244
        %v299 = vunpack.c.l.bf16 %v245
        %v300 = vunpack.c.l.bf16 %v246
        %v301 = vunpack.c.l.bf16 %v247
        %v302 = vunpack.c.l.bf16 %v248
        %v303 = vunpack.c.l.bf16 %v249
        %v304 = vunpack.c.l.bf16 %v250
        %v305 = vunpack.c.l.bf16 %v251
        %v306 = vunpack.c.l.bf16 %v252
        %v307 = vunpack.c.l.bf16 %v253
        %v308 = vunpack.c.l.bf16 %v254
        %v309 = vunpack.c.l.bf16 %v255
        %v310 = vunpack.c.l.bf16 %v256
        %v311 = vunpack.c.l.bf16 %v257
        %v312 = vunpack.c.l.bf16 %v258
        %v313 = vadd.f32 %v259, %v260
        %v314 = vadd.f32 %v313, %v261
        %v315 = vadd.f32 %v314, %v262
        %v316 = vadd.f32 %v315, %v263
        %v317 = vadd.f32 %v316, %v264
        %v318 = vadd.f32 %v317, %v265
        %v319 = vadd.f32 %v318, %v266
        %v320 = vadd.f32 %v319, %v267
        %v321 = vadd.f32 %v320, %v268
        %v322 = vadd.f32 %v321, %v269
        %v323 = vadd.f32 %v322, %v270
        %v324 = vadd.f32 %v323, %v271
        %v325 = vadd.f32 %v324, %v272
        %v326 = vadd.f32 %v325, %v273
        %v327 = vadd.f32 %v326, %v274
        %v328 = vadd.f32 %v327, %v275
        %v329 = vadd.f32 %v328, %v276
        %v330 = vadd.f32 %v329, %v277
        %v331 = vadd.f32 %v330, %v278
        %v332 = vadd.f32 %v331, %v279
        %v333 = vadd.f32 %v332, %v280
        %v334 = vadd.f32 %v333, %v281
        %v335 = vadd.f32 %v334, %v282
        %v336 = vadd.f32 %v335, %v283
        %v337 = vadd.f32 %v336, %v284
        %v338 = vadd.f32 %v337, %v285
        %v339 = vadd.f32 %v338, %v286
        %v340 = vadd.f32 %v339, %v287
        %v341 = vadd.f32 %v340, %v288
        %v342 = vadd.f32 %v341, %v289
        %v343 = vadd.f32 %v342, %v290
        %v344 = vadd.f32 %v343, %v291
        %v345 = vadd.f32 %v344, %v292
        %v346 = vadd.f32 %v345, %v293
        %v347 = vadd.f32 %v346, %v294
        %v348 = vadd.f32 %v347, %v295
        %v349 = vadd.f32 %v348, %v296
        %v350 = vadd.f32 %v349, %v297
        %v351 = vadd.f32 %v350, %v298
        %v352 = vadd.f32 %v351, %v299
        %v353 = vadd.f32 %v352, %v300
        %v354 = vadd.f32 %v353, %v301
        %v355 = vadd.f32 %v354, %v302
        %v356 = vadd.f32 %v355, %v303
        %v357 = vadd.f32 %v356, %v304
        %v358 = vadd.f32 %v357, %v305
        %v359 = vadd.f32 %v358, %v306
        %v360 = vadd.f32 %v359, %v307
        %v361 = vadd.f32 %v360, %v308
        %v362 = vadd.f32 %v361, %v309
        %v363 = vadd.f32 %v362, %v310
        %v364 = vadd.f32 %v363, %v311
        %v365 = vadd.f32 %v364, %v312
        %v366 = vrot.slane %v365, 4
        %v367 = vadd.f32 %v365, %v366
        %v368 = vrot.slane %v367, 2
        %v369 = vadd.f32 %v367, %v368
        %v370 = vrot.slane %v369, 1
        %v371 = vadd.f32 %v369, %v370
        %372 = vst [vmem:[%s204] sm:$0x1] %v371
        %v373 = vld [vmem:[%s2] sm:$0x1]
        %v374 = vld [vmem:[%s201] sm:$0xf]
        %v375 = vld [vmem:[%s201 + $0x4] sm:$0xf]
        %v376 = vld [vmem:[%s201 + $0x8] sm:$0xf]
        %v377 = vld [vmem:[%s201 + $0xc] sm:$0xf]
        %v378 = vld [vmem:[%s201 + $0x10] sm:$0xf]
        %v379 = vld [vmem:[%s201 + $0x14] sm:$0xf]
        %v380 = vld [vmem:[%s201 + $0x18] sm:$0xf]
        %v381 = vld [vmem:[%s201 + $0x1c] sm:$0xf]
        %v382 = vld [vmem:[%s201 + $0x20] sm:$0xf]
        %v383 = vld [vmem:[%s201 + $0x24] sm:$0xf]
        %v384 = vld [vmem:[%s201 + $0x28] sm:$0xf]
        %v385 = vld [vmem:[%s201 + $0x2c] sm:$0xf]
        %v386 = vld [vmem:[%s201 + $0x30] sm:$0xf]
        %v387 = vld [vmem:[%s201 + $0x34] sm:$0xf]
        %v388 = vld [vmem:[%s201 + $0x38] sm:$0xf]
        %v389 = vld [vmem:[%s201 + $0x3c] sm:$0xf]
        %v390 = vld [vmem:[%s201 + $0x40] sm:$0xf]
        %v391 = vld [vmem:[%s201 + $0x44] sm:$0xf]
        %v392 = vld [vmem:[%s201 + $0x48] sm:$0xf]
        %v393 = vld [vmem:[%s201 + $0x4c] sm:$0xf]
        %v394 = vld [vmem:[%s201 + $0x50] sm:$0xf]
        %v395 = vld [vmem:[%s201 + $0x54] sm:$0xf]
        %v396 = vld [vmem:[%s201 + $0x58] sm:$0xf]
        %v397 = vld [vmem:[%s201 + $0x5c] sm:$0xf]
        %v398 = vld [vmem:[%s201 + $0x60] sm:$0xf]
        %v399 = vld [vmem:[%s201 + $0x64] sm:$0xf]
        %v400 = vld [vmem:[%s201 + $0x68] sm:$0xf]
        %v401 = vld [vmem:[%s201 + $0x6c] sm:$0xf]
        %v402 = vld [vmem:[%s201 + $0x70] sm:$0xf]
        %v403 = vld [vmem:[%s201 + $0x74] sm:$0xf]
        %v404 = vld [vmem:[%s201 + $0x78] sm:$0xf]
        %v405 = vld [vmem:[%s201 + $0x7c] sm:$0xf]
        %v406 = vld [vmem:[%s201 + $0x80] sm:$0xf]
        %v407 = vld [vmem:[%s201 + $0x84] sm:$0xf]
        %v408 = vld [vmem:[%s201 + $0x88] sm:$0xf]
        %v409 = vld [vmem:[%s201 + $0x8c] sm:$0xf]
        %v410 = vld [vmem:[%s201 + $0x90] sm:$0xf]
        %v411 = vld [vmem:[%s201 + $0x94] sm:$0xf]
        %v412 = vld [vmem:[%s201 + $0x98] sm:$0xf]
        %v413 = vld [vmem:[%s201 + $0x9c] sm:$0xf]
        %v414 = vld [vmem:[%s201 + $0xa0] sm:$0xf]
        %v415 = vld [vmem:[%s201 + $0xa4] sm:$0xf]
        %v416 = vld [vmem:[%s201 + $0xa8] sm:$0xf]
        %v417 = vld [vmem:[%s201 + $0xac] sm:$0xf]
        %v418 = vld [vmem:[%s201 + $0xb0] sm:$0xf]
        %v419 = vld [vmem:[%s201 + $0xb4] sm:$0xf]
        %v420 = vld [vmem:[%s201 + $0xb8] sm:$0xf]
        %v421 = vld [vmem:[%s201 + $0xbc] sm:$0xf]
        %v422 = vld [vmem:[%s1] sm:$0xff]
        %v423 = vld [vmem:[%s1 + $0x8] sm:$0xf]
        %v424 = vld [vmem:[%s1 + $0xc] sm:$0xff]
        %v425 = vld [vmem:[%s1 + $0x14] sm:$0xf]
        %v426 = vld [vmem:[%s1 + $0x18] sm:$0xff]
        %v427 = vld [vmem:[%s1 + $0x20] sm:$0xf]
        %v428 = vld [vmem:[%s1 + $0x24] sm:$0xff]
        %v429 = vld [vmem:[%s1 + $0x2c] sm:$0xf]
        %v430 = vld [vmem:[%s1 + $0x30] sm:$0xff]
        %v431 = vld [vmem:[%s1 + $0x38] sm:$0xf]
        %v432 = vld [vmem:[%s1 + $0x3c] sm:$0xff]
        %v433 = vld [vmem:[%s1 + $0x44] sm:$0xf]
        %v434 = vld [vmem:[%s1 + $0x48] sm:$0xff]
        %v435 = vld [vmem:[%s1 + $0x50] sm:$0xf]
        %v436 = vld [vmem:[%s1 + $0x54] sm:$0xff]
        %v437 = vld [vmem:[%s1 + $0x5c] sm:$0xf]
        %v438 = vld [vmem:[%s1 + $0x60] sm:$0xff]
        %v439 = vld [vmem:[%s1 + $0x68] sm:$0xf]
        %v440 = vld [vmem:[%s1 + $0x6c] sm:$0xff]
        %v441 = vld [vmem:[%s1 + $0x74] sm:$0xf]
        %v442 = vld [vmem:[%s1 + $0x78] sm:$0xff]
        %v443 = vld [vmem:[%s1 + $0x80] sm:$0xf]
        %v444 = vld [vmem:[%s1 + $0x84] sm:$0xff]
        %v445 = vld [vmem:[%s1 + $0x8c] sm:$0xf]
        %v446 = vld [vmem:[%s1 + $0x90] sm:$0xff]
        %v447 = vld [vmem:[%s1 + $0x98] sm:$0xf]
        %v448 = vld [vmem:[%s1 + $0x9c] sm:$0xff]
        %v449 = vld [vmem:[%s1 + $0xa4] sm:$0xf]
        %v450 = vld [vmem:[%s1 + $0xa8] sm:$0xff]
        %v451 = vld [vmem:[%s1 + $0xb0] sm:$0xf]
        %v452 = vld [vmem:[%s1 + $0xb4] sm:$0xff]
        %v453 = vld [vmem:[%s1 + $0xbc] sm:$0xf]
        %v502 = vunpack.c.l.b16 %v374
        %v503 = vunpack.c.l.b16 %v375
        %v504 = vunpack.c.l.b16 %v376
        %v505 = vunpack.c.l.b16 %v377
        %v506 = vunpack.c.l.b16 %v378
        %v507 = vunpack.c.l.b16 %v379
        %v508 = vunpack.c.l.b16 %v380
        %v509 = vunpack.c.l.b16 %v381
        %v510 = vunpack.c.l.b16 %v382
        %v511 = vunpack.c.l.b16 %v383
        %v512 = vunpack.c.l.b16 %v384
        %v513 = vunpack.c.l.b16 %v385
        %v514 = vunpack.c.l.b16 %v386
        %v515 = vunpack.c.l.b16 %v387
        %v516 = vunpack.c.l.b16 %v388
        %v517 = vunpack.c.l.b16 %v389
        %v518 = vunpack.c.l.b16 %v390
        %v519 = vunpack.c.l.b16 %v391
        %v520 = vunpack.c.l.b16 %v392
        %v521 = vunpack.c.l.b16 %v393
        %v522 = vunpack.c.l.b16 %v394
        %v523 = vunpack.c.l.b16 %v395
        %v524 = vunpack.c.l.b16 %v396
        %v525 = vunpack.c.l.b16 %v397
        %v526 = vunpack.c.l.b16 %v398
        %v527 = vunpack.c.l.b16 %v399
        %v528 = vunpack.c.l.b16 %v400
        %v529 = vunpack.c.l.b16 %v401
        %v530 = vunpack.c.l.b16 %v402
        %v531 = vunpack.c.l.b16 %v403
        %v532 = vunpack.c.l.b16 %v404
        %v533 = vunpack.c.l.b16 %v405
        %v534 = vunpack.c.l.b16 %v406
        %v535 = vunpack.c.l.b16 %v407
        %v536 = vunpack.c.l.b16 %v408
        %v537 = vunpack.c.l.b16 %v409
        %v538 = vunpack.c.l.b16 %v410
        %v539 = vunpack.c.l.b16 %v411
        %v540 = vunpack.c.l.b16 %v412
        %v541 = vunpack.c.l.b16 %v413
        %v542 = vunpack.c.l.b16 %v414
        %v543 = vunpack.c.l.b16 %v415
        %v544 = vunpack.c.l.b16 %v416
        %v545 = vunpack.c.l.b16 %v417
        %v546 = vunpack.c.l.b16 %v418
        %v547 = vunpack.c.l.b16 %v419
        %v548 = vunpack.c.l.b16 %v420
        %v549 = vunpack.c.l.b16 %v421
        %v550 = vpack.c.b16 %v503, %v502
        %v551 = vpack.c.b16 %v505, %v504
        %v552 = vpack.c.b16 %v507, %v506
        %v553 = vpack.c.b16 %v509, %v508
        %v554 = vpack.c.b16 %v511, %v510
        %v555 = vpack.c.b16 %v513, %v512
        %v556 = vpack.c.b16 %v515, %v514
        %v557 = vpack.c.b16 %v517, %v516
        %v558 = vpack.c.b16 %v519, %v518
        %v559 = vpack.c.b16 %v521, %v520
        %v560 = vpack.c.b16 %v523, %v522
        %v561 = vpack.c.b16 %v525, %v524
        %v562 = vpack.c.b16 %v527, %v526
        %v563 = vpack.c.b16 %v529, %v528
        %v564 = vpack.c.b16 %v531, %v530
        %v565 = vpack.c.b16 %v533, %v532
        %v566 = vpack.c.b16 %v535, %v534
        %v567 = vpack.c.b16 %v537, %v536
        %v568 = vpack.c.b16 %v539, %v538
        %v569 = vpack.c.b16 %v541, %v540
        %v570 = vpack.c.b16 %v543, %v542
        %v571 = vpack.c.b16 %v545, %v544
        %v572 = vpack.c.b16 %v547, %v546
        %v573 = vpack.c.b16 %v549, %v548
        %v630 = vunpack.c.l.b16 %v422
        %v631 = vunpack.c.h.b16 %v422
        %v632 = vunpack.c.l.b16 %v423
        %v633 = vunpack.c.l.b16 %v424
        %v634 = vunpack.c.h.b16 %v424
        %v635 = vunpack.c.l.b16 %v425
        %v636 = vunpack.c.l.b16 %v426
        %v637 = vunpack.c.h.b16 %v426
        %v638 = vunpack.c.l.b16 %v427
        %v639 = vunpack.c.l.b16 %v428
        %v640 = vunpack.c.h.b16 %v428
        %v641 = vunpack.c.l.b16 %v429
        %v642 = vunpack.c.l.b16 %v430
        %v643 = vunpack.c.h.b16 %v430
        %v644 = vunpack.c.l.b16 %v431
        %v645 = vunpack.c.l.b16 %v432
        %v646 = vunpack.c.h.b16 %v432
        %v647 = vunpack.c.l.b16 %v433
        %v648 = vunpack.c.l.b16 %v434
        %v649 = vunpack.c.h.b16 %v434
        %v650 = vunpack.c.l.b16 %v435
        %v651 = vunpack.c.l.b16 %v436
        %v652 = vunpack.c.h.b16 %v436
        %v653 = vunpack.c.l.b16 %v437
        %v654 = vunpack.c.l.b16 %v438
        %v655 = vunpack.c.h.b16 %v438
        %v656 = vunpack.c.l.b16 %v439
        %v657 = vunpack.c.l.b16 %v440
        %v658 = vunpack.c.h.b16 %v440
        %v659 = vunpack.c.l.b16 %v441
        %v660 = vunpack.c.l.b16 %v442
        %v661 = vunpack.c.h.b16 %v442
        %v662 = vunpack.c.l.b16 %v443
        %v663 = vunpack.c.l.b16 %v444
        %v664 = vunpack.c.h.b16 %v444
        %v665 = vunpack.c.l.b16 %v445
        %v666 = vunpack.c.l.b16 %v446
        %v667 = vunpack.c.h.b16 %v446
        %v668 = vunpack.c.l.b16 %v447
        %v669 = vunpack.c.l.b16 %v448
        %v670 = vunpack.c.h.b16 %v448
        %v671 = vunpack.c.l.b16 %v449
        %v672 = vunpack.c.l.b16 %v450
        %v673 = vunpack.c.h.b16 %v450
        %v674 = vunpack.c.l.b16 %v451
        %v675 = vunpack.c.l.b16 %v452
        %v676 = vunpack.c.h.b16 %v452
        %v677 = vunpack.c.l.b16 %v453
        %v678 = vpack.c.b16 %v633, %v630
        %v679 = vpack.c.b16 %v634, %v631
        %v680 = vpack.c.b16 %v635, %v632
        %v681 = vpack.c.b16 %v639, %v636
        %v682 = vpack.c.b16 %v640, %v637
        %v683 = vpack.c.b16 %v641, %v638
        %v684 = vpack.c.b16 %v645, %v642
        %v685 = vpack.c.b16 %v646, %v643
        %v686 = vpack.c.b16 %v647, %v644
        %v687 = vpack.c.b16 %v651, %v648
        %v688 = vpack.c.b16 %v652, %v649
        %v689 = vpack.c.b16 %v653, %v650
        %v690 = vpack.c.b16 %v657, %v654
        %v691 = vpack.c.b16 %v658, %v655
        %v692 = vpack.c.b16 %v659, %v656
        %v693 = vpack.c.b16 %v663, %v660
        %v694 = vpack.c.b16 %v664, %v661
        %v695 = vpack.c.b16 %v665, %v662
        %v696 = vpack.c.b16 %v669, %v666
        %v697 = vpack.c.b16 %v670, %v667
        %v698 = vpack.c.b16 %v671, %v668
        %v699 = vpack.c.b16 %v675, %v672
        %v700 = vpack.c.b16 %v676, %v673
        %v701 = vpack.c.b16 %v677, %v674
        %726 = vmatpush.bf16.msra.mxu0 %v699
        %727 = vmatpush.bf16.msra.mxu0 %v696
        %728 = vmatpush.bf16.msra.mxu0 %v693
        %729 = vmatpush.bf16.msra.mxu0 %v690
        %730 = vmatpush.bf16.msra.mxu0 %v687
        %731 = vmatpush.bf16.msra.mxu0 %v684
        %732 = vmatpush.bf16.msra.mxu0 %v681
        %733 = vmatpush.bf16.msra.mxu0 %v678
        %734 = vmatmul.bf16.gmra.mxu0 %v550
        %v735 = vpop.f32.mrf.mxu0
        %v736 = vadd.f32 0.0, %v735
        %v737 = vpop.f32.mrf.mxu0
        %v738 = vadd.f32 0.0, %v737
        %739 = vmatmul.bf16.gmra.mxu0 %v551
        %v740 = vpop.f32.mrf.mxu0
        %v741 = vpop.f32.mrf.mxu0
        %v742 = vadd.f32 0.0, %v741
        %743 = vmatmul.bf16.gmra.mxu0 %v552
        %v744 = vpop.f32.mrf.mxu0
        %v745 = vadd.f32 0.0, %v744
        %v746 = vpop.f32.mrf.mxu0
        %747 = vmatmul.bf16.gmra.mxu0 %v553
        %v748 = vpop.f32.mrf.mxu0
        %v749 = vadd.f32 0.0, %v748
        %v750 = vpop.f32.mrf.mxu0
        %v751 = vadd.f32 0.0, %v750
        %752 = vmatmul.bf16.gmra.mxu0 %v554
        %v753 = vpop.f32.mrf.mxu0
        %v754 = vpop.f32.mrf.mxu0
        %v755 = vadd.f32 0.0, %v754
        %756 = vmatmul.bf16.gmra.mxu0 %v555
        %v757 = vpop.f32.mrf.mxu0
        %v758 = vadd.f32 0.0, %v757
        %v759 = vpop.f32.mrf.mxu0
        %760 = vmatmul.bf16.gmra.mxu0 %v556
        %v761 = vpop.f32.mrf.mxu0
        %v762 = vadd.f32 0.0, %v761
        %v763 = vpop.f32.mrf.mxu0
        %v764 = vadd.f32 0.0, %v763
        %765 = vmatmul.bf16.gmra.mxu0 %v557
        %v766 = vpop.f32.mrf.mxu0
        %v767 = vpop.f32.mrf.mxu0
        %v768 = vadd.f32 0.0, %v767
        %769 = vmatmul.bf16.gmra.mxu0 %v558
        %v770 = vpop.f32.mrf.mxu0
        %v771 = vadd.f32 0.0, %v770
        %v772 = vpop.f32.mrf.mxu0
        %773 = vmatmul.bf16.gmra.mxu0 %v559
        %v774 = vpop.f32.mrf.mxu0
        %v775 = vadd.f32 0.0, %v774
        %v776 = vpop.f32.mrf.mxu0
        %v777 = vadd.f32 0.0, %v776
        %778 = vmatmul.bf16.gmra.mxu0 %v560
        %v779 = vpop.f32.mrf.mxu0
        %v780 = vpop.f32.mrf.mxu0
        %v781 = vadd.f32 0.0, %v780
        %782 = vmatmul.bf16.gmra.mxu0 %v561
        %v783 = vpop.f32.mrf.mxu0
        %v784 = vadd.f32 0.0, %v783
        %v785 = vpop.f32.mrf.mxu0
        %786 = vmatmul.bf16.gmra.mxu0 %v562
        %v787 = vpop.f32.mrf.mxu0
        %v788 = vadd.f32 0.0, %v787
        %v789 = vpop.f32.mrf.mxu0
        %v790 = vadd.f32 0.0, %v789
        %791 = vmatmul.bf16.gmra.mxu0 %v563
        %v792 = vpop.f32.mrf.mxu0
        %v793 = vpop.f32.mrf.mxu0
        %v794 = vadd.f32 0.0, %v793
        %795 = vmatmul.bf16.gmra.mxu0 %v564
        %v796 = vpop.f32.mrf.mxu0
        %v797 = vadd.f32 0.0, %v796
        %v798 = vpop.f32.mrf.mxu0
        %799 = vmatmul.bf16.gmra.mxu0 %v565
        %v800 = vpop.f32.mrf.mxu0
        %v801 = vadd.f32 0.0, %v800
        %v802 = vpop.f32.mrf.mxu0
        %v803 = vadd.f32 0.0, %v802
        %804 = vmatmul.bf16.gmra.mxu0 %v566
        %v805 = vpop.f32.mrf.mxu0
        %v806 = vpop.f32.mrf.mxu0
        %v807 = vadd.f32 0.0, %v806
        %808 = vmatmul.bf16.gmra.mxu0 %v567
        %v809 = vpop.f32.mrf.mxu0
        %v810 = vadd.f32 0.0, %v809
        %v811 = vpop.f32.mrf.mxu0
        %812 = vmatmul.bf16.gmra.mxu0 %v568
        %v813 = vpop.f32.mrf.mxu0
        %v814 = vadd.f32 0.0, %v813
        %v815 = vpop.f32.mrf.mxu0
        %v816 = vadd.f32 0.0, %v815
        %817 = vmatmul.bf16.gmra.mxu0 %v569
        %v818 = vpop.f32.mrf.mxu0
        %v819 = vpop.f32.mrf.mxu0
        %v820 = vadd.f32 0.0, %v819
        %821 = vmatmul.bf16.gmra.mxu0 %v570
        %v822 = vpop.f32.mrf.mxu0
        %v823 = vadd.f32 0.0, %v822
        %v824 = vpop.f32.mrf.mxu0
        %825 = vmatmul.bf16.gmra.mxu0 %v571
        %v826 = vpop.f32.mrf.mxu0
        %v827 = vadd.f32 0.0, %v826
        %v828 = vpop.f32.mrf.mxu0
        %v829 = vadd.f32 0.0, %v828
        %830 = vmatmul.bf16.gmra.mxu0 %v572
        %v831 = vpop.f32.mrf.mxu0
        %v832 = vpop.f32.mrf.mxu0
        %v833 = vadd.f32 0.0, %v832
        %834 = vmatmul.bf16.gmra.mxu0 %v573
        %v835 = vpop.f32.mrf.mxu0
        %v836 = vadd.f32 0.0, %v835
        %v837 = vpop.f32.mrf.mxu0
        %838 = vdwg.mxu0
        %839 = vmatpush.bf16.msra.mxu0 %v700
        %840 = vmatpush.bf16.msra.mxu0 %v697
        %841 = vmatpush.bf16.msra.mxu0 %v694
        %842 = vmatpush.bf16.msra.mxu0 %v691
        %843 = vmatpush.bf16.msra.mxu0 %v688
        %844 = vmatpush.bf16.msra.mxu0 %v685
        %845 = vmatpush.bf16.msra.mxu0 %v682
        %846 = vmatpush.bf16.msra.mxu0 %v679
        %847 = vmatmul.bf16.gmra.mxu0 %v550
        %v848 = vpop.f32.mrf.mxu0
        %v849 = vadd.f32 0.0, %v848
        %v850 = vpop.f32.mrf.mxu0
        %v851 = vadd.f32 0.0, %v850
        %852 = vmatmul.bf16.gmra.mxu0 %v551
        %v853 = vpop.f32.mrf.mxu0
        %v854 = vadd.f32 0.0, %v853
        %v855 = vpop.f32.mrf.mxu0
        %v856 = vadd.f32 0.0, %v855
        %857 = vmatmul.bf16.gmra.mxu0 %v552
        %v858 = vpop.f32.mrf.mxu0
        %v859 = vadd.f32 0.0, %v858
        %v860 = vpop.f32.mrf.mxu0
        %v861 = vadd.f32 0.0, %v860
        %862 = vmatmul.bf16.gmra.mxu0 %v553
        %v863 = vpop.f32.mrf.mxu0
        %v864 = vadd.f32 0.0, %v863
        %v865 = vpop.f32.mrf.mxu0
        %v866 = vadd.f32 0.0, %v865
        %867 = vmatmul.bf16.gmra.mxu0 %v554
        %v868 = vpop.f32.mrf.mxu0
        %v869 = vadd.f32 0.0, %v868
        %v870 = vpop.f32.mrf.mxu0
        %v871 = vadd.f32 0.0, %v870
        %872 = vmatmul.bf16.gmra.mxu0 %v555
        %v873 = vpop.f32.mrf.mxu0
        %v874 = vadd.f32 0.0, %v873
        %v875 = vpop.f32.mrf.mxu0
        %v876 = vadd.f32 0.0, %v875
        %877 = vmatmul.bf16.gmra.mxu0 %v556
        %v878 = vpop.f32.mrf.mxu0
        %v879 = vadd.f32 0.0, %v878
        %v880 = vpop.f32.mrf.mxu0
        %v881 = vadd.f32 0.0, %v880
        %882 = vmatmul.bf16.gmra.mxu0 %v557
        %v883 = vpop.f32.mrf.mxu0
        %v884 = vadd.f32 0.0, %v883
        %v885 = vpop.f32.mrf.mxu0
        %v886 = vadd.f32 0.0, %v885
        %887 = vmatmul.bf16.gmra.mxu0 %v558
        %v888 = vpop.f32.mrf.mxu0
        %v889 = vadd.f32 0.0, %v888
        %v890 = vpop.f32.mrf.mxu0
        %v891 = vadd.f32 0.0, %v890
        %892 = vmatmul.bf16.gmra.mxu0 %v559
        %v893 = vpop.f32.mrf.mxu0
        %v894 = vadd.f32 0.0, %v893
        %v895 = vpop.f32.mrf.mxu0
        %v896 = vadd.f32 0.0, %v895
        %897 = vmatmul.bf16.gmra.mxu0 %v560
        %v898 = vpop.f32.mrf.mxu0
        %v899 = vadd.f32 0.0, %v898
        %v900 = vpop.f32.mrf.mxu0
        %v901 = vadd.f32 0.0, %v900
        %902 = vmatmul.bf16.gmra.mxu0 %v561
        %v903 = vpop.f32.mrf.mxu0
        %v904 = vadd.f32 0.0, %v903
        %v905 = vpop.f32.mrf.mxu0
        %v906 = vadd.f32 0.0, %v905
        %907 = vmatmul.bf16.gmra.mxu0 %v562
        %v908 = vpop.f32.mrf.mxu0
        %v909 = vadd.f32 0.0, %v908
        %v910 = vpop.f32.mrf.mxu0
        %v911 = vadd.f32 0.0, %v910
        %912 = vmatmul.bf16.gmra.mxu0 %v563
        %v913 = vpop.f32.mrf.mxu0
        %v914 = vadd.f32 0.0, %v913
        %v915 = vpop.f32.mrf.mxu0
        %v916 = vadd.f32 0.0, %v915
        %917 = vmatmul.bf16.gmra.mxu0 %v564
        %v918 = vpop.f32.mrf.mxu0
        %v919 = vadd.f32 0.0, %v918
        %v920 = vpop.f32.mrf.mxu0
        %v921 = vadd.f32 0.0, %v920
        %922 = vmatmul.bf16.gmra.mxu0 %v565
        %v923 = vpop.f32.mrf.mxu0
        %v924 = vadd.f32 0.0, %v923
        %v925 = vpop.f32.mrf.mxu0
        %v926 = vadd.f32 0.0, %v925
        %927 = vmatmul.bf16.gmra.mxu0 %v566
        %v928 = vpop.f32.mrf.mxu0
        %v929 = vadd.f32 0.0, %v928
        %v930 = vpop.f32.mrf.mxu0
        %v931 = vadd.f32 0.0, %v930
        %932 = vmatmul.bf16.gmra.mxu0 %v567
        %v933 = vpop.f32.mrf.mxu0
        %v934 = vadd.f32 0.0, %v933
        %v935 = vpop.f32.mrf.mxu0
        %v936 = vadd.f32 0.0, %v935
        %937 = vmatmul.bf16.gmra.mxu0 %v568
        %v938 = vpop.f32.mrf.mxu0
        %v939 = vadd.f32 0.0, %v938
        %v940 = vpop.f32.mrf.mxu0
        %v941 = vadd.f32 0.0, %v940
        %942 = vmatmul.bf16.gmra.mxu0 %v569
        %v943 = vpop.f32.mrf.mxu0
        %v944 = vadd.f32 0.0, %v943
        %v945 = vpop.f32.mrf.mxu0
        %v946 = vadd.f32 0.0, %v945
        %947 = vmatmul.bf16.gmra.mxu0 %v570
        %v948 = vpop.f32.mrf.mxu0
        %v949 = vadd.f32 0.0, %v948
        %v950 = vpop.f32.mrf.mxu0
        %v951 = vadd.f32 0.0, %v950
        %952 = vmatmul.bf16.gmra.mxu0 %v571
        %v953 = vpop.f32.mrf.mxu0
        %v954 = vadd.f32 0.0, %v953
        %v955 = vpop.f32.mrf.mxu0
        %v956 = vadd.f32 0.0, %v955
        %957 = vmatmul.bf16.gmra.mxu0 %v572
        %v958 = vpop.f32.mrf.mxu0
        %v959 = vadd.f32 0.0, %v958
        %v960 = vpop.f32.mrf.mxu0
        %v961 = vadd.f32 0.0, %v960
        %962 = vmatmul.bf16.gmra.mxu0 %v573
        %v963 = vpop.f32.mrf.mxu0
        %v964 = vadd.f32 0.0, %v963
        %v965 = vpop.f32.mrf.mxu0
        %v966 = vadd.f32 0.0, %v965
        %967 = vdwg.mxu0
        %968 = vmatpush.bf16.msra.mxu0 %v701
        %969 = vmatpush.bf16.msra.mxu0 %v698
        %970 = vmatpush.bf16.msra.mxu0 %v695
        %971 = vmatpush.bf16.msra.mxu0 %v692
        %972 = vmatpush.bf16.msra.mxu0 %v689
        %973 = vmatpush.bf16.msra.mxu0 %v686
        %974 = vmatpush.bf16.msra.mxu0 %v683
        %975 = vmatpush.bf16.msra.mxu0 %v680
        %976 = vmatmul.bf16.gmra.mxu0 %v550
        %v977 = vpop.f32.mrf.mxu0
        %v978 = vadd.f32 0.0, %v977
        %v979 = vpop.f32.mrf.mxu0
        %v980 = vadd.f32 0.0, %v979
        %981 = vmatmul.bf16.gmra.mxu0 %v551
        %v982 = vpop.f32.mrf.mxu0
        %v983 = vadd.f32 0.0, %v982
        %v984 = vpop.f32.mrf.mxu0
        %v985 = vadd.f32 0.0, %v984
        %986 = vmatmul.bf16.gmra.mxu0 %v552
        %v987 = vpop.f32.mrf.mxu0
        %v988 = vadd.f32 0.0, %v987
        %v989 = vpop.f32.mrf.mxu0
        %v990 = vadd.f32 0.0, %v989
        %991 = vmatmul.bf16.gmra.mxu0 %v553
        %v992 = vpop.f32.mrf.mxu0
        %v993 = vadd.f32 0.0, %v992
        %v994 = vpop.f32.mrf.mxu0
        %v995 = vadd.f32 0.0, %v994
        %996 = vmatmul.bf16.gmra.mxu0 %v554
        %v997 = vpop.f32.mrf.mxu0
        %v998 = vadd.f32 0.0, %v997
        %v999 = vpop.f32.mrf.mxu0
        %v1000 = vadd.f32 0.0, %v999
        %1001 = vmatmul.bf16.gmra.mxu0 %v555
        %v1002 = vpop.f32.mrf.mxu0
        %v1003 = vadd.f32 0.0, %v1002
        %v1004 = vpop.f32.mrf.mxu0
        %v1005 = vadd.f32 0.0, %v1004
        %1006 = vmatmul.bf16.gmra.mxu0 %v556
        %v1007 = vpop.f32.mrf.mxu0
        %v1008 = vadd.f32 0.0, %v1007
        %v1009 = vpop.f32.mrf.mxu0
        %v1010 = vadd.f32 0.0, %v1009
        %1011 = vmatmul.bf16.gmra.mxu0 %v557
        %v1012 = vpop.f32.mrf.mxu0
        %v1013 = vadd.f32 0.0, %v1012
        %v1014 = vpop.f32.mrf.mxu0
        %v1015 = vadd.f32 0.0, %v1014
        %1016 = vmatmul.bf16.gmra.mxu0 %v558
        %v1017 = vpop.f32.mrf.mxu0
        %v1018 = vadd.f32 0.0, %v1017
        %v1019 = vpop.f32.mrf.mxu0
        %v1020 = vadd.f32 0.0, %v1019
        %1021 = vmatmul.bf16.gmra.mxu0 %v559
        %v1022 = vpop.f32.mrf.mxu0
        %v1023 = vadd.f32 0.0, %v1022
        %v1024 = vpop.f32.mrf.mxu0
        %v1025 = vadd.f32 0.0, %v1024
        %1026 = vmatmul.bf16.gmra.mxu0 %v560
        %v1027 = vpop.f32.mrf.mxu0
        %v1028 = vadd.f32 0.0, %v1027
        %v1029 = vpop.f32.mrf.mxu0
        %v1030 = vadd.f32 0.0, %v1029
        %1031 = vmatmul.bf16.gmra.mxu0 %v561
        %v1032 = vpop.f32.mrf.mxu0
        %v1033 = vadd.f32 0.0, %v1032
        %v1034 = vpop.f32.mrf.mxu0
        %v1035 = vadd.f32 0.0, %v1034
        %1036 = vmatmul.bf16.gmra.mxu0 %v562
        %v1037 = vpop.f32.mrf.mxu0
        %v1038 = vadd.f32 0.0, %v1037
        %v1039 = vpop.f32.mrf.mxu0
        %v1040 = vadd.f32 0.0, %v1039
        %1041 = vmatmul.bf16.gmra.mxu0 %v563
        %v1042 = vpop.f32.mrf.mxu0
        %v1043 = vadd.f32 0.0, %v1042
        %v1044 = vpop.f32.mrf.mxu0
        %v1045 = vadd.f32 0.0, %v1044
        %1046 = vmatmul.bf16.gmra.mxu0 %v564
        %v1047 = vpop.f32.mrf.mxu0
        %v1048 = vadd.f32 0.0, %v1047
        %v1049 = vpop.f32.mrf.mxu0
        %v1050 = vadd.f32 0.0, %v1049
        %1051 = vmatmul.bf16.gmra.mxu0 %v565
        %v1052 = vpop.f32.mrf.mxu0
        %v1053 = vadd.f32 0.0, %v1052
        %v1054 = vpop.f32.mrf.mxu0
        %v1055 = vadd.f32 0.0, %v1054
        %1056 = vmatmul.bf16.gmra.mxu0 %v566
        %v1057 = vpop.f32.mrf.mxu0
        %v1058 = vadd.f32 0.0, %v1057
        %v1059 = vpop.f32.mrf.mxu0
        %v1060 = vadd.f32 0.0, %v1059
        %1061 = vmatmul.bf16.gmra.mxu0 %v567
        %v1062 = vpop.f32.mrf.mxu0
        %v1063 = vadd.f32 0.0, %v1062
        %v1064 = vpop.f32.mrf.mxu0
        %v1065 = vadd.f32 0.0, %v1064
        %1066 = vmatmul.bf16.gmra.mxu0 %v568
        %v1067 = vpop.f32.mrf.mxu0
        %v1068 = vadd.f32 0.0, %v1067
        %v1069 = vpop.f32.mrf.mxu0
        %v1070 = vadd.f32 0.0, %v1069
        %1071 = vmatmul.bf16.gmra.mxu0 %v569
        %v1072 = vpop.f32.mrf.mxu0
        %v1073 = vadd.f32 0.0, %v1072
        %v1074 = vpop.f32.mrf.mxu0
        %v1075 = vadd.f32 0.0, %v1074
        %1076 = vmatmul.bf16.gmra.mxu0 %v570
        %v1077 = vpop.f32.mrf.mxu0
        %v1078 = vadd.f32 0.0, %v1077
        %v1079 = vpop.f32.mrf.mxu0
        %v1080 = vadd.f32 0.0, %v1079
        %1081 = vmatmul.bf16.gmra.mxu0 %v571
        %v1082 = vpop.f32.mrf.mxu0
        %v1083 = vadd.f32 0.0, %v1082
        %v1084 = vpop.f32.mrf.mxu0
        %v1085 = vadd.f32 0.0, %v1084
        %1086 = vmatmul.bf16.gmra.mxu0 %v572
        %v1087 = vpop.f32.mrf.mxu0
        %v1088 = vadd.f32 0.0, %v1087
        %v1089 = vpop.f32.mrf.mxu0
        %v1090 = vadd.f32 0.0, %v1089
        %1091 = vmatmul.bf16.gmra.mxu0 %v573
        %v1092 = vpop.f32.mrf.mxu0
        %v1093 = vadd.f32 0.0, %v1092
        %v1094 = vpop.f32.mrf.mxu0
        %v1095 = vadd.f32 0.0, %v1094
        %1096 = vdwg.mxu0
        %vm1145 = vcmask 1046528
        %v1146 = vrot.slane %v849, 1
        %v1147 = vrot.slane %v851, 1
        %v1148 = vsel %vm1145, %v1146, %v1147
        %v1149 = vrot.slane %v854, 1
        %v1150 = vsel %vm1145, %v1147, %v1149
        %v1151 = vrot.slane %v856, 1
        %v1152 = vrot.slane %v859, 1
        %v1153 = vsel %vm1145, %v1151, %v1152
        %v1154 = vrot.slane %v861, 1
        %v1155 = vsel %vm1145, %v1152, %v1154
        %v1156 = vrot.slane %v864, 1
        %v1157 = vrot.slane %v866, 1
        %v1158 = vsel %vm1145, %v1156, %v1157
        %v1159 = vrot.slane %v869, 1
        %v1160 = vsel %vm1145, %v1157, %v1159
        %v1161 = vrot.slane %v871, 1
        %v1162 = vrot.slane %v874, 1
        %v1163 = vsel %vm1145, %v1161, %v1162
        %v1164 = vrot.slane %v876, 1
        %v1165 = vsel %vm1145, %v1162, %v1164
        %v1166 = vrot.slane %v879, 1
        %v1167 = vrot.slane %v881, 1
        %v1168 = vsel %vm1145, %v1166, %v1167
        %v1169 = vrot.slane %v884, 1
        %v1170 = vsel %vm1145, %v1167, %v1169
        %v1171 = vrot.slane %v886, 1
        %v1172 = vrot.slane %v889, 1
        %v1173 = vsel %vm1145, %v1171, %v1172
        %v1174 = vrot.slane %v891, 1
        %v1175 = vsel %vm1145, %v1172, %v1174
        %v1176 = vrot.slane %v894, 1
        %v1177 = vrot.slane %v896, 1
        %v1178 = vsel %vm1145, %v1176, %v1177
        %v1179 = vrot.slane %v899, 1
        %v1180 = vsel %vm1145, %v1177, %v1179
        %v1181 = vrot.slane %v901, 1
        %v1182 = vrot.slane %v904, 1
        %v1183 = vsel %vm1145, %v1181, %v1182
        %v1184 = vrot.slane %v906, 1
        %v1185 = vsel %vm1145, %v1182, %v1184
        %v1186 = vrot.slane %v909, 1
        %v1187 = vrot.slane %v911, 1
        %v1188 = vsel %vm1145, %v1186, %v1187
        %v1189 = vrot.slane %v914, 1
        %v1190 = vsel %vm1145, %v1187, %v1189
        %v1191 = vrot.slane %v916, 1
        %v1192 = vrot.slane %v919, 1
        %v1193 = vsel %vm1145, %v1191, %v1192
        %v1194 = vrot.slane %v921, 1
        %v1195 = vsel %vm1145, %v1192, %v1194
        %v1196 = vrot.slane %v924, 1
        %v1197 = vrot.slane %v926, 1
        %v1198 = vsel %vm1145, %v1196, %v1197
        %v1199 = vrot.slane %v929, 1
        %v1200 = vsel %vm1145, %v1197, %v1199
        %v1201 = vrot.slane %v931, 1
        %v1202 = vrot.slane %v934, 1
        %v1203 = vsel %vm1145, %v1201, %v1202
        %v1204 = vrot.slane %v936, 1
        %v1205 = vsel %vm1145, %v1202, %v1204
        %v1206 = vrot.slane %v939, 1
        %v1207 = vrot.slane %v941, 1
        %v1208 = vsel %vm1145, %v1206, %v1207
        %v1209 = vrot.slane %v944, 1
        %v1210 = vsel %vm1145, %v1207, %v1209
        %v1211 = vrot.slane %v946, 1
        %v1212 = vrot.slane %v949, 1
        %v1213 = vsel %vm1145, %v1211, %v1212
        %v1214 = vrot.slane %v951, 1
        %v1215 = vsel %vm1145, %v1212, %v1214
        %v1216 = vrot.slane %v954, 1
        %v1217 = vrot.slane %v956, 1
        %v1218 = vsel %vm1145, %v1216, %v1217
        %v1219 = vrot.slane %v959, 1
        %v1220 = vsel %vm1145, %v1217, %v1219
        %v1221 = vrot.slane %v961, 1
        %v1222 = vrot.slane %v964, 1
        %v1223 = vsel %vm1145, %v1221, %v1222
        %v1224 = vrot.slane %v966, 1
        %v1225 = vsel %vm1145, %v1222, %v1224
        %v1258 = vadd.f32 %v736, %v1148
        %v1259 = vadd.f32 %v738, %v1150
        %v1260 = vadd.f32 %v742, %v1153
        %v1261 = vadd.f32 %v745, %v1155
        %v1262 = vadd.f32 %v749, %v1158
        %v1263 = vadd.f32 %v751, %v1160
        %v1264 = vadd.f32 %v755, %v1163
        %v1265 = vadd.f32 %v758, %v1165
        %v1266 = vadd.f32 %v762, %v1168
        %v1267 = vadd.f32 %v764, %v1170
        %v1268 = vadd.f32 %v768, %v1173
        %v1269 = vadd.f32 %v771, %v1175
        %v1270 = vadd.f32 %v775, %v1178
        %v1271 = vadd.f32 %v777, %v1180
        %v1272 = vadd.f32 %v781, %v1183
        %v1273 = vadd.f32 %v784, %v1185
        %v1274 = vadd.f32 %v788, %v1188
        %v1275 = vadd.f32 %v790, %v1190
        %v1276 = vadd.f32 %v794, %v1193
        %v1277 = vadd.f32 %v797, %v1195
        %v1278 = vadd.f32 %v801, %v1198
        %v1279 = vadd.f32 %v803, %v1200
        %v1280 = vadd.f32 %v807, %v1203
        %v1281 = vadd.f32 %v810, %v1205
        %v1282 = vadd.f32 %v814, %v1208
        %v1283 = vadd.f32 %v816, %v1210
        %v1284 = vadd.f32 %v820, %v1213
        %v1285 = vadd.f32 %v823, %v1215
        %v1286 = vadd.f32 %v827, %v1218
        %v1287 = vadd.f32 %v829, %v1220
        %v1288 = vadd.f32 %v833, %v1223
        %v1289 = vadd.f32 %v836, %v1225
        %vm1338 = vcmask 1045504
        %v1339 = vrot.slane %v978, 2
        %v1340 = vrot.slane %v980, 2
        %v1341 = vsel %vm1338, %v1339, %v1340
        %v1342 = vrot.slane %v983, 2
        %v1343 = vsel %vm1338, %v1340, %v1342
        %v1344 = vrot.slane %v985, 2
        %v1345 = vrot.slane %v988, 2
        %v1346 = vsel %vm1338, %v1344, %v1345
        %v1347 = vrot.slane %v990, 2
        %v1348 = vsel %vm1338, %v1345, %v1347
        %v1349 = vrot.slane %v993, 2
        %v1350 = vrot.slane %v995, 2
        %v1351 = vsel %vm1338, %v1349, %v1350
        %v1352 = vrot.slane %v998, 2
        %v1353 = vsel %vm1338, %v1350, %v1352
        %v1354 = vrot.slane %v1000, 2
        %v1355 = vrot.slane %v1003, 2
        %v1356 = vsel %vm1338, %v1354, %v1355
        %v1357 = vrot.slane %v1005, 2
        %v1358 = vsel %vm1338, %v1355, %v1357
        %v1359 = vrot.slane %v1008, 2
        %v1360 = vrot.slane %v1010, 2
        %v1361 = vsel %vm1338, %v1359, %v1360
        %v1362 = vrot.slane %v1013, 2
        %v1363 = vsel %vm1338, %v1360, %v1362
        %v1364 = vrot.slane %v1015, 2
        %v1365 = vrot.slane %v1018, 2
        %v1366 = vsel %vm1338, %v1364, %v1365
        %v1367 = vrot.slane %v1020, 2
        %v1368 = vsel %vm1338, %v1365, %v1367
        %v1369 = vrot.slane %v1023, 2
        %v1370 = vrot.slane %v1025, 2
        %v1371 = vsel %vm1338, %v1369, %v1370
        %v1372 = vrot.slane %v1028, 2
        %v1373 = vsel %vm1338, %v1370, %v1372
        %v1374 = vrot.slane %v1030, 2
        %v1375 = vrot.slane %v1033, 2
        %v1376 = vsel %vm1338, %v1374, %v1375
        %v1377 = vrot.slane %v1035, 2
        %v1378 = vsel %vm1338, %v1375, %v1377
        %v1379 = vrot.slane %v1038, 2
        %v1380 = vrot.slane %v1040, 2
        %v1381 = vsel %vm1338, %v1379, %v1380
        %v1382 = vrot.slane %v1043, 2
        %v1383 = vsel %vm1338, %v1380, %v1382
        %v1384 = vrot.slane %v1045, 2
        %v1385 = vrot.slane %v1048, 2
        %v1386 = vsel %vm1338, %v1384, %v1385
        %v1387 = vrot.slane %v1050, 2
        %v1388 = vsel %vm1338, %v1385, %v1387
        %v1389 = vrot.slane %v1053, 2
        %v1390 = vrot.slane %v1055, 2
        %v1391 = vsel %vm1338, %v1389, %v1390
        %v1392 = vrot.slane %v1058, 2
        %v1393 = vsel %vm1338, %v1390, %v1392
        %v1394 = vrot.slane %v1060, 2
        %v1395 = vrot.slane %v1063, 2
        %v1396 = vsel %vm1338, %v1394, %v1395
        %v1397 = vrot.slane %v1065, 2
        %v1398 = vsel %vm1338, %v1395, %v1397
        %v1399 = vrot.slane %v1068, 2
        %v1400 = vrot.slane %v1070, 2
        %v1401 = vsel %vm1338, %v1399, %v1400
        %v1402 = vrot.slane %v1073, 2
        %v1403 = vsel %vm1338, %v1400, %v1402
        %v1404 = vrot.slane %v1075, 2
        %v1405 = vrot.slane %v1078, 2
        %v1406 = vsel %vm1338, %v1404, %v1405
        %v1407 = vrot.slane %v1080, 2
        %v1408 = vsel %vm1338, %v1405, %v1407
        %v1409 = vrot.slane %v1083, 2
        %v1410 = vrot.slane %v1085, 2
        %v1411 = vsel %vm1338, %v1409, %v1410
        %v1412 = vrot.slane %v1088, 2
        %v1413 = vsel %vm1338, %v1410, %v1412
        %v1414 = vrot.slane %v1090, 2
        %v1415 = vrot.slane %v1093, 2
        %v1416 = vsel %vm1338, %v1414, %v1415
        %v1417 = vrot.slane %v1095, 2
        %v1418 = vsel %vm1338, %v1415, %v1417
        %v1451 = vadd.f32 %v1258, %v1341
        %v1452 = vadd.f32 %v1259, %v1343
        %v1453 = vadd.f32 %v1260, %v1346
        %v1454 = vadd.f32 %v1261, %v1348
        %v1455 = vadd.f32 %v1262, %v1351
        %v1456 = vadd.f32 %v1263, %v1353
        %v1457 = vadd.f32 %v1264, %v1356
        %v1458 = vadd.f32 %v1265, %v1358
        %v1459 = vadd.f32 %v1266, %v1361
        %v1460 = vadd.f32 %v1267, %v1363
        %v1461 = vadd.f32 %v1268, %v1366
        %v1462 = vadd.f32 %v1269, %v1368
        %v1463 = vadd.f32 %v1270, %v1371
        %v1464 = vadd.f32 %v1271, %v1373
        %v1465 = vadd.f32 %v1272, %v1376
        %v1466 = vadd.f32 %v1273, %v1378
        %v1467 = vadd.f32 %v1274, %v1381
        %v1468 = vadd.f32 %v1275, %v1383
        %v1469 = vadd.f32 %v1276, %v1386
        %v1470 = vadd.f32 %v1277, %v1388
        %v1471 = vadd.f32 %v1278, %v1391
        %v1472 = vadd.f32 %v1279, %v1393
        %v1473 = vadd.f32 %v1280, %v1396
        %v1474 = vadd.f32 %v1281, %v1398
        %v1475 = vadd.f32 %v1282, %v1401
        %v1476 = vadd.f32 %v1283, %v1403
        %v1477 = vadd.f32 %v1284, %v1406
        %v1478 = vadd.f32 %v1285, %v1408
        %v1479 = vadd.f32 %v1286, %v1411
        %v1480 = vadd.f32 %v1287, %v1413
        %v1481 = vadd.f32 %v1288, %v1416
        %v1482 = vadd.f32 %v1289, %v1418
        %v1484 = vperm.slane %v373, 0
        %v1486 = vadd.f32 %v1451, %v1484
        %v1487 = vadd.f32 %v1452, %v1484
        %v1488 = vadd.f32 %v1453, %v1484
        %v1489 = vadd.f32 %v1454, %v1484
        %v1490 = vadd.f32 %v1455, %v1484
        %v1491 = vadd.f32 %v1456, %v1484
        %v1492 = vadd.f32 %v1457, %v1484
        %v1493 = vadd.f32 %v1458, %v1484
        %v1494 = vadd.f32 %v1459, %v1484
        %v1495 = vadd.f32 %v1460, %v1484
        %v1496 = vadd.f32 %v1461, %v1484
        %v1497 = vadd.f32 %v1462, %v1484
        %v1498 = vadd.f32 %v1463, %v1484
        %v1499 = vadd.f32 %v1464, %v1484
        %v1500 = vadd.f32 %v1465, %v1484
        %v1501 = vadd.f32 %v1466, %v1484
        %v1502 = vadd.f32 %v1467, %v1484
        %v1503 = vadd.f32 %v1468, %v1484
        %v1504 = vadd.f32 %v1469, %v1484
        %v1505 = vadd.f32 %v1470, %v1484
        %v1506 = vadd.f32 %v1471, %v1484
        %v1507 = vadd.f32 %v1472, %v1484
        %v1508 = vadd.f32 %v1473, %v1484
        %v1509 = vadd.f32 %v1474, %v1484
        %v1510 = vadd.f32 %v1475, %v1484
        %v1511 = vadd.f32 %v1476, %v1484
        %v1512 = vadd.f32 %v1477, %v1484
        %v1513 = vadd.f32 %v1478, %v1484
        %v1514 = vadd.f32 %v1479, %v1484
        %v1515 = vadd.f32 %v1480, %v1484
        %v1516 = vadd.f32 %v1481, %v1484
        %v1517 = vadd.f32 %v1482, %v1484
        %1518 = vst [vmem:[%s191] sm:$0xff] %v1486
        %1519 = vst [vmem:[%s191 + $0x8] sm:$0xff] %v1487
        %1520 = vst [vmem:[%s191 + $0x10] sm:$0xff] %v1488
        %1521 = vst [vmem:[%s191 + $0x18] sm:$0xff] %v1489
        %1522 = vst [vmem:[%s191 + $0x20] sm:$0xff] %v1490
        %1523 = vst [vmem:[%s191 + $0x28] sm:$0xff] %v1491
        %1524 = vst [vmem:[%s191 + $0x30] sm:$0xff] %v1492
        %1525 = vst [vmem:[%s191 + $0x38] sm:$0xff] %v1493
        %1526 = vst [vmem:[%s191 + $0x40] sm:$0xff] %v1494
        %1527 = vst [vmem:[%s191 + $0x48] sm:$0xff] %v1495
        %1528 = vst [vmem:[%s191 + $0x50] sm:$0xff] %v1496
        %1529 = vst [vmem:[%s191 + $0x58] sm:$0xff] %v1497
        %1530 = vst [vmem:[%s191 + $0x60] sm:$0xff] %v1498
        %1531 = vst [vmem:[%s191 + $0x68] sm:$0xff] %v1499
        %1532 = vst [vmem:[%s191 + $0x70] sm:$0xff] %v1500
        %1533 = vst [vmem:[%s191 + $0x78] sm:$0xff] %v1501
        %1534 = vst [vmem:[%s191 + $0x80] sm:$0xff] %v1502
        %1535 = vst [vmem:[%s191 + $0x88] sm:$0xff] %v1503
        %1536 = vst [vmem:[%s191 + $0x90] sm:$0xff] %v1504
        %1537 = vst [vmem:[%s191 + $0x98] sm:$0xff] %v1505
        %1538 = vst [vmem:[%s191 + $0xa0] sm:$0xff] %v1506
        %1539 = vst [vmem:[%s191 + $0xa8] sm:$0xff] %v1507
        %1540 = vst [vmem:[%s191 + $0xb0] sm:$0xff] %v1508
        %1541 = vst [vmem:[%s191 + $0xb8] sm:$0xff] %v1509
        %1542 = vst [vmem:[%s191 + $0xc0] sm:$0xff] %v1510
        %1543 = vst [vmem:[%s191 + $0xc8] sm:$0xff] %v1511
        %1544 = vst [vmem:[%s191 + $0xd0] sm:$0xff] %v1512
        %1545 = vst [vmem:[%s191 + $0xd8] sm:$0xff] %v1513
        %1546 = vst [vmem:[%s191 + $0xe0] sm:$0xff] %v1514
        %1547 = vst [vmem:[%s191 + $0xe8] sm:$0xff] %v1515
        %1548 = vst [vmem:[%s191 + $0xf0] sm:$0xff] %v1516
        %1549 = vst [vmem:[%s191 + $0xf8] sm:$0xff] %v1517
        %v1550 = vld [vmem:[%s201 + $0xc] sm:$0xf]
        %v1551 = vld [vmem:[%s201 + $0x10] sm:$0xf]
        %v1552 = vld [vmem:[%s201 + $0x14] sm:$0xf]
        %v1553 = vld [vmem:[%s201 + $0x18] sm:$0xf]
        %v1554 = vld [vmem:[%s201 + $0x1c] sm:$0xf]
        %v1555 = vld [vmem:[%s201 + $0x20] sm:$0xf]
        %v1556 = vld [vmem:[%s201 + $0x24] sm:$0xf]
        %v1557 = vld [vmem:[%s201 + $0x28] sm:$0xf]
        %v1558 = vld [vmem:[%s201 + $0x2c] sm:$0xf]
        %v1559 = vld [vmem:[%s201 + $0x30] sm:$0xf]
        %v1560 = vld [vmem:[%s201 + $0x34] sm:$0xf]
        %v1561 = vld [vmem:[%s201 + $0x38] sm:$0xf]
        %v1562 = vld [vmem:[%s201 + $0x3c] sm:$0xf]
        %v1563 = vld [vmem:[%s201 + $0x40] sm:$0xf]
        %v1564 = vld [vmem:[%s201 + $0x44] sm:$0xf]
        %v1565 = vld [vmem:[%s201 + $0x48] sm:$0xf]
        %v1566 = vld [vmem:[%s201 + $0x4c] sm:$0xf]
        %v1567 = vld [vmem:[%s201 + $0x50] sm:$0xf]
        %v1568 = vld [vmem:[%s201 + $0x54] sm:$0xf]
        %v1569 = vld [vmem:[%s201 + $0x58] sm:$0xf]
        %v1570 = vld [vmem:[%s201 + $0x5c] sm:$0xf]
        %v1571 = vld [vmem:[%s201 + $0x60] sm:$0xf]
        %v1572 = vld [vmem:[%s201 + $0x64] sm:$0xf]
        %v1573 = vld [vmem:[%s201 + $0x68] sm:$0xf]
        %v1574 = vld [vmem:[%s201 + $0x6c] sm:$0xf]
        %v1575 = vld [vmem:[%s201 + $0x70] sm:$0xf]
        %v1576 = vld [vmem:[%s201 + $0x74] sm:$0xf]
        %v1577 = vld [vmem:[%s201 + $0x78] sm:$0xf]
        %v1578 = vld [vmem:[%s201 + $0x7c] sm:$0xf]
        %v1579 = vld [vmem:[%s201 + $0x80] sm:$0xf]
        %v1580 = vld [vmem:[%s201 + $0x84] sm:$0xf]
        %v1581 = vld [vmem:[%s201 + $0x88] sm:$0xf]
        %v1582 = vld [vmem:[%s201 + $0x8c] sm:$0xf]
        %v1583 = vld [vmem:[%s201 + $0x90] sm:$0xf]
        %v1584 = vld [vmem:[%s201 + $0x94] sm:$0xf]
        %v1585 = vld [vmem:[%s201 + $0x98] sm:$0xf]
        %v1586 = vld [vmem:[%s201 + $0x9c] sm:$0xf]
        %v1587 = vld [vmem:[%s201 + $0xa0] sm:$0xf]
        %v1588 = vld [vmem:[%s201 + $0xa4] sm:$0xf]
        %v1589 = vld [vmem:[%s201 + $0xa8] sm:$0xf]
        %v1590 = vld [vmem:[%s201 + $0xac] sm:$0xf]
        %v1591 = vld [vmem:[%s201 + $0xb0] sm:$0xf]
        %v1592 = vld [vmem:[%s201 + $0xb4] sm:$0xf]
        %v1593 = vld [vmem:[%s201 + $0xb8] sm:$0xf]
        %v1594 = vld [vmem:[%s201 + $0xbc] sm:$0xf]
        %v1595 = vld [vmem:[%s201 + $0xc0] sm:$0xf]
        %v1596 = vld [vmem:[%s201 + $0xc4] sm:$0xf]
        %v1597 = vld [vmem:[%s201 + $0xc8] sm:$0xf]
        %s1598 = scalar_lea.vmem %s1, 192
        %v1599 = vld [vmem:[%s1598] sm:$0xff]
        %v1600 = vld [vmem:[%s1598 + $0x8] sm:$0xf]
        %v1601 = vld [vmem:[%s1598 + $0xc] sm:$0xff]
        %v1602 = vld [vmem:[%s1598 + $0x14] sm:$0xf]
        %v1603 = vld [vmem:[%s1598 + $0x18] sm:$0xff]
        %v1604 = vld [vmem:[%s1598 + $0x20] sm:$0xf]
        %v1605 = vld [vmem:[%s1598 + $0x24] sm:$0xff]
        %v1606 = vld [vmem:[%s1598 + $0x2c] sm:$0xf]
        %v1607 = vld [vmem:[%s1598 + $0x30] sm:$0xff]
        %v1608 = vld [vmem:[%s1598 + $0x38] sm:$0xf]
        %v1609 = vld [vmem:[%s1598 + $0x3c] sm:$0xff]
        %v1610 = vld [vmem:[%s1598 + $0x44] sm:$0xf]
        %v1611 = vld [vmem:[%s1598 + $0x48] sm:$0xff]
        %v1612 = vld [vmem:[%s1598 + $0x50] sm:$0xf]
        %v1613 = vld [vmem:[%s1598 + $0x54] sm:$0xff]
        %v1614 = vld [vmem:[%s1598 + $0x5c] sm:$0xf]
        %v1615 = vld [vmem:[%s1598 + $0x60] sm:$0xff]
        %v1616 = vld [vmem:[%s1598 + $0x68] sm:$0xf]
        %v1617 = vld [vmem:[%s1598 + $0x6c] sm:$0xff]
        %v1618 = vld [vmem:[%s1598 + $0x74] sm:$0xf]
        %v1619 = vld [vmem:[%s1598 + $0x78] sm:$0xff]
        %v1620 = vld [vmem:[%s1598 + $0x80] sm:$0xf]
        %v1621 = vld [vmem:[%s1598 + $0x84] sm:$0xff]
        %v1622 = vld [vmem:[%s1598 + $0x8c] sm:$0xf]
        %v1623 = vld [vmem:[%s1598 + $0x90] sm:$0xff]
        %v1624 = vld [vmem:[%s1598 + $0x98] sm:$0xf]
        %v1625 = vld [vmem:[%s1598 + $0x9c] sm:$0xff]
        %v1626 = vld [vmem:[%s1598 + $0xa4] sm:$0xf]
        %v1627 = vld [vmem:[%s1598 + $0xa8] sm:$0xff]
        %v1628 = vld [vmem:[%s1598 + $0xb0] sm:$0xf]
        %v1629 = vld [vmem:[%s1598 + $0xb4] sm:$0xff]
        %v1630 = vld [vmem:[%s1598 + $0xbc] sm:$0xf]
        %v1679 = vunpack.c.l.b16 %v1550
        %v1680 = vunpack.c.l.b16 %v1551
        %v1681 = vunpack.c.l.b16 %v1552
        %v1682 = vunpack.c.l.b16 %v1553
        %v1683 = vunpack.c.l.b16 %v1554
        %v1684 = vunpack.c.l.b16 %v1555
        %v1685 = vunpack.c.l.b16 %v1556
        %v1686 = vunpack.c.l.b16 %v1557
        %v1687 = vunpack.c.l.b16 %v1558
        %v1688 = vunpack.c.l.b16 %v1559
        %v1689 = vunpack.c.l.b16 %v1560
        %v1690 = vunpack.c.l.b16 %v1561
        %v1691 = vunpack.c.l.b16 %v1562
        %v1692 = vunpack.c.l.b16 %v1563
        %v1693 = vunpack.c.l.b16 %v1564
        %v1694 = vunpack.c.l.b16 %v1565
        %v1695 = vunpack.c.l.b16 %v1566
        %v1696 = vunpack.c.l.b16 %v1567
        %v1697 = vunpack.c.l.b16 %v1568
        %v1698 = vunpack.c.l.b16 %v1569
        %v1699 = vunpack.c.l.b16 %v1570
        %v1700 = vunpack.c.l.b16 %v1571
        %v1701 = vunpack.c.l.b16 %v1572
        %v1702 = vunpack.c.l.b16 %v1573
        %v1703 = vunpack.c.l.b16 %v1574
        %v1704 = vunpack.c.l.b16 %v1575
        %v1705 = vunpack.c.l.b16 %v1576
        %v1706 = vunpack.c.l.b16 %v1577
        %v1707 = vunpack.c.l.b16 %v1578
        %v1708 = vunpack.c.l.b16 %v1579
        %v1709 = vunpack.c.l.b16 %v1580
        %v1710 = vunpack.c.l.b16 %v1581
        %v1711 = vunpack.c.l.b16 %v1582
        %v1712 = vunpack.c.l.b16 %v1583
        %v1713 = vunpack.c.l.b16 %v1584
        %v1714 = vunpack.c.l.b16 %v1585
        %v1715 = vunpack.c.l.b16 %v1586
        %v1716 = vunpack.c.l.b16 %v1587
        %v1717 = vunpack.c.l.b16 %v1588
        %v1718 = vunpack.c.l.b16 %v1589
        %v1719 = vunpack.c.l.b16 %v1590
        %v1720 = vunpack.c.l.b16 %v1591
        %v1721 = vunpack.c.l.b16 %v1592
        %v1722 = vunpack.c.l.b16 %v1593
        %v1723 = vunpack.c.l.b16 %v1594
        %v1724 = vunpack.c.l.b16 %v1595
        %v1725 = vunpack.c.l.b16 %v1596
        %v1726 = vunpack.c.l.b16 %v1597
        %v1727 = vpack.c.b16 %v1680, %v1679
        %v1728 = vpack.c.b16 %v1682, %v1681
        %v1729 = vpack.c.b16 %v1684, %v1683
        %v1730 = vpack.c.b16 %v1686, %v1685
        %v1731 = vpack.c.b16 %v1688, %v1687
        %v1732 = vpack.c.b16 %v1690, %v1689
        %v1733 = vpack.c.b16 %v1692, %v1691
        %v1734 = vpack.c.b16 %v1694, %v1693
        %v1735 = vpack.c.b16 %v1696, %v1695
        %v1736 = vpack.c.b16 %v1698, %v1697
        %v1737 = vpack.c.b16 %v1700, %v1699
        %v1738 = vpack.c.b16 %v1702, %v1701
        %v1739 = vpack.c.b16 %v1704, %v1703
        %v1740 = vpack.c.b16 %v1706, %v1705
        %v1741 = vpack.c.b16 %v1708, %v1707
        %v1742 = vpack.c.b16 %v1710, %v1709
        %v1743 = vpack.c.b16 %v1712, %v1711
        %v1744 = vpack.c.b16 %v1714, %v1713
        %v1745 = vpack.c.b16 %v1716, %v1715
        %v1746 = vpack.c.b16 %v1718, %v1717
        %v1747 = vpack.c.b16 %v1720, %v1719
        %v1748 = vpack.c.b16 %v1722, %v1721
        %v1749 = vpack.c.b16 %v1724, %v1723
        %v1750 = vpack.c.b16 %v1726, %v1725
        %v1807 = vunpack.c.l.b16 %v1599
        %v1808 = vunpack.c.h.b16 %v1599
        %v1809 = vunpack.c.l.b16 %v1600
        %v1810 = vunpack.c.l.b16 %v1601
        %v1811 = vunpack.c.h.b16 %v1601
        %v1812 = vunpack.c.l.b16 %v1602
        %v1813 = vunpack.c.l.b16 %v1603
        %v1814 = vunpack.c.h.b16 %v1603
        %v1815 = vunpack.c.l.b16 %v1604
        %v1816 = vunpack.c.l.b16 %v1605
        %v1817 = vunpack.c.h.b16 %v1605
        %v1818 = vunpack.c.l.b16 %v1606
        %v1819 = vunpack.c.l.b16 %v1607
        %v1820 = vunpack.c.h.b16 %v1607
        %v1821 = vunpack.c.l.b16 %v1608
        %v1822 = vunpack.c.l.b16 %v1609
        %v1823 = vunpack.c.h.b16 %v1609
        %v1824 = vunpack.c.l.b16 %v1610
        %v1825 = vunpack.c.l.b16 %v1611
        %v1826 = vunpack.c.h.b16 %v1611
        %v1827 = vunpack.c.l.b16 %v1612
        %v1828 = vunpack.c.l.b16 %v1613
        %v1829 = vunpack.c.h.b16 %v1613
        %v1830 = vunpack.c.l.b16 %v1614
        %v1831 = vunpack.c.l.b16 %v1615
        %v1832 = vunpack.c.h.b16 %v1615
        %v1833 = vunpack.c.l.b16 %v1616
        %v1834 = vunpack.c.l.b16 %v1617
        %v1835 = vunpack.c.h.b16 %v1617
        %v1836 = vunpack.c.l.b16 %v1618
        %v1837 = vunpack.c.l.b16 %v1619
        %v1838 = vunpack.c.h.b16 %v1619
        %v1839 = vunpack.c.l.b16 %v1620
        %v1840 = vunpack.c.l.b16 %v1621
        %v1841 = vunpack.c.h.b16 %v1621
        %v1842 = vunpack.c.l.b16 %v1622
        %v1843 = vunpack.c.l.b16 %v1623
        %v1844 = vunpack.c.h.b16 %v1623
        %v1845 = vunpack.c.l.b16 %v1624
        %v1846 = vunpack.c.l.b16 %v1625
        %v1847 = vunpack.c.h.b16 %v1625
        %v1848 = vunpack.c.l.b16 %v1626
        %v1849 = vunpack.c.l.b16 %v1627
        %v1850 = vunpack.c.h.b16 %v1627
        %v1851 = vunpack.c.l.b16 %v1628
        %v1852 = vunpack.c.l.b16 %v1629
        %v1853 = vunpack.c.h.b16 %v1629
        %v1854 = vunpack.c.l.b16 %v1630
        %v1855 = vpack.c.b16 %v1810, %v1807
        %v1856 = vpack.c.b16 %v1811, %v1808
        %v1857 = vpack.c.b16 %v1812, %v1809
        %v1858 = vpack.c.b16 %v1816, %v1813
        %v1859 = vpack.c.b16 %v1817, %v1814
        %v1860 = vpack.c.b16 %v1818, %v1815
        %v1861 = vpack.c.b16 %v1822, %v1819
        %v1862 = vpack.c.b16 %v1823, %v1820
        %v1863 = vpack.c.b16 %v1824, %v1821
        %v1864 = vpack.c.b16 %v1828, %v1825
        %v1865 = vpack.c.b16 %v1829, %v1826
        %v1866 = vpack.c.b16 %v1830, %v1827
        %v1867 = vpack.c.b16 %v1834, %v1831
        %v1868 = vpack.c.b16 %v1835, %v1832
        %v1869 = vpack.c.b16 %v1836, %v1833
        %v1870 = vpack.c.b16 %v1840, %v1837
        %v1871 = vpack.c.b16 %v1841, %v1838
        %v1872 = vpack.c.b16 %v1842, %v1839
        %v1873 = vpack.c.b16 %v1846, %v1843
        %v1874 = vpack.c.b16 %v1847, %v1844
        %v1875 = vpack.c.b16 %v1848, %v1845
        %v1876 = vpack.c.b16 %v1852, %v1849
        %v1877 = vpack.c.b16 %v1853, %v1850
        %v1878 = vpack.c.b16 %v1854, %v1851
        %1903 = vmatpush.bf16.msra.mxu0 %v1876
        %1904 = vmatpush.bf16.msra.mxu0 %v1873
        %1905 = vmatpush.bf16.msra.mxu0 %v1870
        %1906 = vmatpush.bf16.msra.mxu0 %v1867
        %1907 = vmatpush.bf16.msra.mxu0 %v1864
        %1908 = vmatpush.bf16.msra.mxu0 %v1861
        %1909 = vmatpush.bf16.msra.mxu0 %v1858
        %1910 = vmatpush.bf16.msra.mxu0 %v1855
        %1911 = vmatmul.bf16.gmra.mxu0 %v1727
        %v1912 = vpop.f32.mrf.mxu0
        %v1913 = vadd.f32 0.0, %v1912
        %v1914 = vpop.f32.mrf.mxu0
        %v1915 = vadd.f32 0.0, %v1914
        %1916 = vmatmul.bf16.gmra.mxu0 %v1728
        %v1917 = vpop.f32.mrf.mxu0
        %v1918 = vpop.f32.mrf.mxu0
        %v1919 = vadd.f32 0.0, %v1918
        %1920 = vmatmul.bf16.gmra.mxu0 %v1729
        %v1921 = vpop.f32.mrf.mxu0
        %v1922 = vadd.f32 0.0, %v1921
        %v1923 = vpop.f32.mrf.mxu0
        %1924 = vmatmul.bf16.gmra.mxu0 %v1730
        %v1925 = vpop.f32.mrf.mxu0
        %v1926 = vadd.f32 0.0, %v1925
        %v1927 = vpop.f32.mrf.mxu0
        %v1928 = vadd.f32 0.0, %v1927
        %1929 = vmatmul.bf16.gmra.mxu0 %v1731
        %v1930 = vpop.f32.mrf.mxu0
        %v1931 = vpop.f32.mrf.mxu0
        %v1932 = vadd.f32 0.0, %v1931
        %1933 = vmatmul.bf16.gmra.mxu0 %v1732
        %v1934 = vpop.f32.mrf.mxu0
        %v1935 = vadd.f32 0.0, %v1934
        %v1936 = vpop.f32.mrf.mxu0
        %1937 = vmatmul.bf16.gmra.mxu0 %v1733
        %v1938 = vpop.f32.mrf.mxu0
        %v1939 = vadd.f32 0.0, %v1938
        %v1940 = vpop.f32.mrf.mxu0
        %v1941 = vadd.f32 0.0, %v1940
        %1942 = vmatmul.bf16.gmra.mxu0 %v1734
        %v1943 = vpop.f32.mrf.mxu0
        %v1944 = vpop.f32.mrf.mxu0
        %v1945 = vadd.f32 0.0, %v1944
        %1946 = vmatmul.bf16.gmra.mxu0 %v1735
        %v1947 = vpop.f32.mrf.mxu0
        %v1948 = vadd.f32 0.0, %v1947
        %v1949 = vpop.f32.mrf.mxu0
        %1950 = vmatmul.bf16.gmra.mxu0 %v1736
        %v1951 = vpop.f32.mrf.mxu0
        %v1952 = vadd.f32 0.0, %v1951
        %v1953 = vpop.f32.mrf.mxu0
        %v1954 = vadd.f32 0.0, %v1953
        %1955 = vmatmul.bf16.gmra.mxu0 %v1737
        %v1956 = vpop.f32.mrf.mxu0
        %v1957 = vpop.f32.mrf.mxu0
        %v1958 = vadd.f32 0.0, %v1957
        %1959 = vmatmul.bf16.gmra.mxu0 %v1738
        %v1960 = vpop.f32.mrf.mxu0
        %v1961 = vadd.f32 0.0, %v1960
        %v1962 = vpop.f32.mrf.mxu0
        %1963 = vmatmul.bf16.gmra.mxu0 %v1739
        %v1964 = vpop.f32.mrf.mxu0
        %v1965 = vadd.f32 0.0, %v1964
        %v1966 = vpop.f32.mrf.mxu0
        %v1967 = vadd.f32 0.0, %v1966
        %1968 = vmatmul.bf16.gmra.mxu0 %v1740
        %v1969 = vpop.f32.mrf.mxu0
        %v1970 = vpop.f32.mrf.mxu0
        %v1971 = vadd.f32 0.0, %v1970
        %1972 = vmatmul.bf16.gmra.mxu0 %v1741
        %v1973 = vpop.f32.mrf.mxu0
        %v1974 = vadd.f32 0.0, %v1973
        %v1975 = vpop.f32.mrf.mxu0
        %1976 = vmatmul.bf16.gmra.mxu0 %v1742
        %v1977 = vpop.f32.mrf.mxu0
        %v1978 = vadd.f32 0.0, %v1977
        %v1979 = vpop.f32.mrf.mxu0
        %v1980 = vadd.f32 0.0, %v1979
        %1981 = vmatmul.bf16.gmra.mxu0 %v1743
        %v1982 = vpop.f32.mrf.mxu0
        %v1983 = vpop.f32.mrf.mxu0
        %v1984 = vadd.f32 0.0, %v1983
        %1985 = vmatmul.bf16.gmra.mxu0 %v1744
        %v1986 = vpop.f32.mrf.mxu0
        %v1987 = vadd.f32 0.0, %v1986
        %v1988 = vpop.f32.mrf.mxu0
        %1989 = vmatmul.bf16.gmra.mxu0 %v1745
        %v1990 = vpop.f32.mrf.mxu0
        %v1991 = vadd.f32 0.0, %v1990
        %v1992 = vpop.f32.mrf.mxu0
        %v1993 = vadd.f32 0.0, %v1992
        %1994 = vmatmul.bf16.gmra.mxu0 %v1746
        %v1995 = vpop.f32.mrf.mxu0
        %v1996 = vpop.f32.mrf.mxu0
        %v1997 = vadd.f32 0.0, %v1996
        %1998 = vmatmul.bf16.gmra.mxu0 %v1747
        %v1999 = vpop.f32.mrf.mxu0
        %v2000 = vadd.f32 0.0, %v1999
        %v2001 = vpop.f32.mrf.mxu0
        %2002 = vmatmul.bf16.gmra.mxu0 %v1748
        %v2003 = vpop.f32.mrf.mxu0
        %v2004 = vadd.f32 0.0, %v2003
        %v2005 = vpop.f32.mrf.mxu0
        %v2006 = vadd.f32 0.0, %v2005
        %2007 = vmatmul.bf16.gmra.mxu0 %v1749
        %v2008 = vpop.f32.mrf.mxu0
        %v2009 = vpop.f32.mrf.mxu0
        %v2010 = vadd.f32 0.0, %v2009
        %2011 = vmatmul.bf16.gmra.mxu0 %v1750
        %v2012 = vpop.f32.mrf.mxu0
        %v2013 = vadd.f32 0.0, %v2012
        %v2014 = vpop.f32.mrf.mxu0
        %2015 = vdwg.mxu0
        %2016 = vmatpush.bf16.msra.mxu0 %v1877
        %2017 = vmatpush.bf16.msra.mxu0 %v1874
        %2018 = vmatpush.bf16.msra.mxu0 %v1871
        %2019 = vmatpush.bf16.msra.mxu0 %v1868
        %2020 = vmatpush.bf16.msra.mxu0 %v1865
        %2021 = vmatpush.bf16.msra.mxu0 %v1862
        %2022 = vmatpush.bf16.msra.mxu0 %v1859
        %2023 = vmatpush.bf16.msra.mxu0 %v1856
        %2024 = vmatmul.bf16.gmra.mxu0 %v1727
        %v2025 = vpop.f32.mrf.mxu0
        %v2026 = vadd.f32 0.0, %v2025
        %v2027 = vpop.f32.mrf.mxu0
        %v2028 = vadd.f32 0.0, %v2027
        %2029 = vmatmul.bf16.gmra.mxu0 %v1728
        %v2030 = vpop.f32.mrf.mxu0
        %v2031 = vadd.f32 0.0, %v2030
        %v2032 = vpop.f32.mrf.mxu0
        %v2033 = vadd.f32 0.0, %v2032
        %2034 = vmatmul.bf16.gmra.mxu0 %v1729
        %v2035 = vpop.f32.mrf.mxu0
        %v2036 = vadd.f32 0.0, %v2035
        %v2037 = vpop.f32.mrf.mxu0
        %v2038 = vadd.f32 0.0, %v2037
        %2039 = vmatmul.bf16.gmra.mxu0 %v1730
        %v2040 = vpop.f32.mrf.mxu0
        %v2041 = vadd.f32 0.0, %v2040
        %v2042 = vpop.f32.mrf.mxu0
        %v2043 = vadd.f32 0.0, %v2042
        %2044 = vmatmul.bf16.gmra.mxu0 %v1731
        %v2045 = vpop.f32.mrf.mxu0
        %v2046 = vadd.f32 0.0, %v2045
        %v2047 = vpop.f32.mrf.mxu0
        %v2048 = vadd.f32 0.0, %v2047
        %2049 = vmatmul.bf16.gmra.mxu0 %v1732
        %v2050 = vpop.f32.mrf.mxu0
        %v2051 = vadd.f32 0.0, %v2050
        %v2052 = vpop.f32.mrf.mxu0
        %v2053 = vadd.f32 0.0, %v2052
        %2054 = vmatmul.bf16.gmra.mxu0 %v1733
        %v2055 = vpop.f32.mrf.mxu0
        %v2056 = vadd.f32 0.0, %v2055
        %v2057 = vpop.f32.mrf.mxu0
        %v2058 = vadd.f32 0.0, %v2057
        %2059 = vmatmul.bf16.gmra.mxu0 %v1734
        %v2060 = vpop.f32.mrf.mxu0
        %v2061 = vadd.f32 0.0, %v2060
        %v2062 = vpop.f32.mrf.mxu0
        %v2063 = vadd.f32 0.0, %v2062
        %2064 = vmatmul.bf16.gmra.mxu0 %v1735
        %v2065 = vpop.f32.mrf.mxu0
        %v2066 = vadd.f32 0.0, %v2065
        %v2067 = vpop.f32.mrf.mxu0
        %v2068 = vadd.f32 0.0, %v2067
        %2069 = vmatmul.bf16.gmra.mxu0 %v1736
        %v2070 = vpop.f32.mrf.mxu0
        %v2071 = vadd.f32 0.0, %v2070
        %v2072 = vpop.f32.mrf.mxu0
        %v2073 = vadd.f32 0.0, %v2072
        %2074 = vmatmul.bf16.gmra.mxu0 %v1737
        %v2075 = vpop.f32.mrf.mxu0
        %v2076 = vadd.f32 0.0, %v2075
        %v2077 = vpop.f32.mrf.mxu0
        %v2078 = vadd.f32 0.0, %v2077
        %2079 = vmatmul.bf16.gmra.mxu0 %v1738
        %v2080 = vpop.f32.mrf.mxu0
        %v2081 = vadd.f32 0.0, %v2080
        %v2082 = vpop.f32.mrf.mxu0
        %v2083 = vadd.f32 0.0, %v2082
        %2084 = vmatmul.bf16.gmra.mxu0 %v1739
        %v2085 = vpop.f32.mrf.mxu0
        %v2086 = vadd.f32 0.0, %v2085
        %v2087 = vpop.f32.mrf.mxu0
        %v2088 = vadd.f32 0.0, %v2087
        %2089 = vmatmul.bf16.gmra.mxu0 %v1740
        %v2090 = vpop.f32.mrf.mxu0
        %v2091 = vadd.f32 0.0, %v2090
        %v2092 = vpop.f32.mrf.mxu0
        %v2093 = vadd.f32 0.0, %v2092
        %2094 = vmatmul.bf16.gmra.mxu0 %v1741
        %v2095 = vpop.f32.mrf.mxu0
        %v2096 = vadd.f32 0.0, %v2095
        %v2097 = vpop.f32.mrf.mxu0
        %v2098 = vadd.f32 0.0, %v2097
        %2099 = vmatmul.bf16.gmra.mxu0 %v1742
        %v2100 = vpop.f32.mrf.mxu0
        %v2101 = vadd.f32 0.0, %v2100
        %v2102 = vpop.f32.mrf.mxu0
        %v2103 = vadd.f32 0.0, %v2102
        %2104 = vmatmul.bf16.gmra.mxu0 %v1743
        %v2105 = vpop.f32.mrf.mxu0
        %v2106 = vadd.f32 0.0, %v2105
        %v2107 = vpop.f32.mrf.mxu0
        %v2108 = vadd.f32 0.0, %v2107
        %2109 = vmatmul.bf16.gmra.mxu0 %v1744
        %v2110 = vpop.f32.mrf.mxu0
        %v2111 = vadd.f32 0.0, %v2110
        %v2112 = vpop.f32.mrf.mxu0
        %v2113 = vadd.f32 0.0, %v2112
        %2114 = vmatmul.bf16.gmra.mxu0 %v1745
        %v2115 = vpop.f32.mrf.mxu0
        %v2116 = vadd.f32 0.0, %v2115
        %v2117 = vpop.f32.mrf.mxu0
        %v2118 = vadd.f32 0.0, %v2117
        %2119 = vmatmul.bf16.gmra.mxu0 %v1746
        %v2120 = vpop.f32.mrf.mxu0
        %v2121 = vadd.f32 0.0, %v2120
        %v2122 = vpop.f32.mrf.mxu0
        %v2123 = vadd.f32 0.0, %v2122
        %2124 = vmatmul.bf16.gmra.mxu0 %v1747
        %v2125 = vpop.f32.mrf.mxu0
        %v2126 = vadd.f32 0.0, %v2125
        %v2127 = vpop.f32.mrf.mxu0
        %v2128 = vadd.f32 0.0, %v2127
        %2129 = vmatmul.bf16.gmra.mxu0 %v1748
        %v2130 = vpop.f32.mrf.mxu0
        %v2131 = vadd.f32 0.0, %v2130
        %v2132 = vpop.f32.mrf.mxu0
        %v2133 = vadd.f32 0.0, %v2132
        %2134 = vmatmul.bf16.gmra.mxu0 %v1749
        %v2135 = vpop.f32.mrf.mxu0
        %v2136 = vadd.f32 0.0, %v2135
        %v2137 = vpop.f32.mrf.mxu0
        %v2138 = vadd.f32 0.0, %v2137
        %2139 = vmatmul.bf16.gmra.mxu0 %v1750
        %v2140 = vpop.f32.mrf.mxu0
        %v2141 = vadd.f32 0.0, %v2140
        %v2142 = vpop.f32.mrf.mxu0
        %v2143 = vadd.f32 0.0, %v2142
        %2144 = vdwg.mxu0
        %2145 = vmatpush.bf16.msra.mxu0 %v1878
        %2146 = vmatpush.bf16.msra.mxu0 %v1875
        %2147 = vmatpush.bf16.msra.mxu0 %v1872
        %2148 = vmatpush.bf16.msra.mxu0 %v1869
        %2149 = vmatpush.bf16.msra.mxu0 %v1866
        %2150 = vmatpush.bf16.msra.mxu0 %v1863
        %2151 = vmatpush.bf16.msra.mxu0 %v1860
        %2152 = vmatpush.bf16.msra.mxu0 %v1857
        %2153 = vmatmul.bf16.gmra.mxu0 %v1727
        %v2154 = vpop.f32.mrf.mxu0
        %v2155 = vadd.f32 0.0, %v2154
        %v2156 = vpop.f32.mrf.mxu0
        %v2157 = vadd.f32 0.0, %v2156
        %2158 = vmatmul.bf16.gmra.mxu0 %v1728
        %v2159 = vpop.f32.mrf.mxu0
        %v2160 = vadd.f32 0.0, %v2159
        %v2161 = vpop.f32.mrf.mxu0
        %v2162 = vadd.f32 0.0, %v2161
        %2163 = vmatmul.bf16.gmra.mxu0 %v1729
        %v2164 = vpop.f32.mrf.mxu0
        %v2165 = vadd.f32 0.0, %v2164
        %v2166 = vpop.f32.mrf.mxu0
        %v2167 = vadd.f32 0.0, %v2166
        %2168 = vmatmul.bf16.gmra.mxu0 %v1730
        %v2169 = vpop.f32.mrf.mxu0
        %v2170 = vadd.f32 0.0, %v2169
        %v2171 = vpop.f32.mrf.mxu0
        %v2172 = vadd.f32 0.0, %v2171
        %2173 = vmatmul.bf16.gmra.mxu0 %v1731
        %v2174 = vpop.f32.mrf.mxu0
        %v2175 = vadd.f32 0.0, %v2174
        %v2176 = vpop.f32.mrf.mxu0
        %v2177 = vadd.f32 0.0, %v2176
        %2178 = vmatmul.bf16.gmra.mxu0 %v1732
        %v2179 = vpop.f32.mrf.mxu0
        %v2180 = vadd.f32 0.0, %v2179
        %v2181 = vpop.f32.mrf.mxu0
        %v2182 = vadd.f32 0.0, %v2181
        %2183 = vmatmul.bf16.gmra.mxu0 %v1733
        %v2184 = vpop.f32.mrf.mxu0
        %v2185 = vadd.f32 0.0, %v2184
        %v2186 = vpop.f32.mrf.mxu0
        %v2187 = vadd.f32 0.0, %v2186
        %2188 = vmatmul.bf16.gmra.mxu0 %v1734
        %v2189 = vpop.f32.mrf.mxu0
        %v2190 = vadd.f32 0.0, %v2189
        %v2191 = vpop.f32.mrf.mxu0
        %v2192 = vadd.f32 0.0, %v2191
        %2193 = vmatmul.bf16.gmra.mxu0 %v1735
        %v2194 = vpop.f32.mrf.mxu0
        %v2195 = vadd.f32 0.0, %v2194
        %v2196 = vpop.f32.mrf.mxu0
        %v2197 = vadd.f32 0.0, %v2196
        %2198 = vmatmul.bf16.gmra.mxu0 %v1736
        %v2199 = vpop.f32.mrf.mxu0
        %v2200 = vadd.f32 0.0, %v2199
        %v2201 = vpop.f32.mrf.mxu0
        %v2202 = vadd.f32 0.0, %v2201
        %2203 = vmatmul.bf16.gmra.mxu0 %v1737
        %v2204 = vpop.f32.mrf.mxu0
        %v2205 = vadd.f32 0.0, %v2204
        %v2206 = vpop.f32.mrf.mxu0
        %v2207 = vadd.f32 0.0, %v2206
        %2208 = vmatmul.bf16.gmra.mxu0 %v1738
        %v2209 = vpop.f32.mrf.mxu0
        %v2210 = vadd.f32 0.0, %v2209
        %v2211 = vpop.f32.mrf.mxu0
        %v2212 = vadd.f32 0.0, %v2211
        %2213 = vmatmul.bf16.gmra.mxu0 %v1739
        %v2214 = vpop.f32.mrf.mxu0
        %v2215 = vadd.f32 0.0, %v2214
        %v2216 = vpop.f32.mrf.mxu0
        %v2217 = vadd.f32 0.0, %v2216
        %2218 = vmatmul.bf16.gmra.mxu0 %v1740
        %v2219 = vpop.f32.mrf.mxu0
        %v2220 = vadd.f32 0.0, %v2219
        %v2221 = vpop.f32.mrf.mxu0
        %v2222 = vadd.f32 0.0, %v2221
        %2223 = vmatmul.bf16.gmra.mxu0 %v1741
        %v2224 = vpop.f32.mrf.mxu0
        %v2225 = vadd.f32 0.0, %v2224
        %v2226 = vpop.f32.mrf.mxu0
        %v2227 = vadd.f32 0.0, %v2226
        %2228 = vmatmul.bf16.gmra.mxu0 %v1742
        %v2229 = vpop.f32.mrf.mxu0
        %v2230 = vadd.f32 0.0, %v2229
        %v2231 = vpop.f32.mrf.mxu0
        %v2232 = vadd.f32 0.0, %v2231
        %2233 = vmatmul.bf16.gmra.mxu0 %v1743
        %v2234 = vpop.f32.mrf.mxu0
        %v2235 = vadd.f32 0.0, %v2234
        %v2236 = vpop.f32.mrf.mxu0
        %v2237 = vadd.f32 0.0, %v2236
        %2238 = vmatmul.bf16.gmra.mxu0 %v1744
        %v2239 = vpop.f32.mrf.mxu0
        %v2240 = vadd.f32 0.0, %v2239
        %v2241 = vpop.f32.mrf.mxu0
        %v2242 = vadd.f32 0.0, %v2241
        %2243 = vmatmul.bf16.gmra.mxu0 %v1745
        %v2244 = vpop.f32.mrf.mxu0
        %v2245 = vadd.f32 0.0, %v2244
        %v2246 = vpop.f32.mrf.mxu0
        %v2247 = vadd.f32 0.0, %v2246
        %2248 = vmatmul.bf16.gmra.mxu0 %v1746
        %v2249 = vpop.f32.mrf.mxu0
        %v2250 = vadd.f32 0.0, %v2249
        %v2251 = vpop.f32.mrf.mxu0
        %v2252 = vadd.f32 0.0, %v2251
        %2253 = vmatmul.bf16.gmra.mxu0 %v1747
        %v2254 = vpop.f32.mrf.mxu0
        %v2255 = vadd.f32 0.0, %v2254
        %v2256 = vpop.f32.mrf.mxu0
        %v2257 = vadd.f32 0.0, %v2256
        %2258 = vmatmul.bf16.gmra.mxu0 %v1748
        %v2259 = vpop.f32.mrf.mxu0
        %v2260 = vadd.f32 0.0, %v2259
        %v2261 = vpop.f32.mrf.mxu0
        %v2262 = vadd.f32 0.0, %v2261
        %2263 = vmatmul.bf16.gmra.mxu0 %v1749
        %v2264 = vpop.f32.mrf.mxu0
        %v2265 = vadd.f32 0.0, %v2264
        %v2266 = vpop.f32.mrf.mxu0
        %v2267 = vadd.f32 0.0, %v2266
        %2268 = vmatmul.bf16.gmra.mxu0 %v1750
        %v2269 = vpop.f32.mrf.mxu0
        %v2270 = vadd.f32 0.0, %v2269
        %v2271 = vpop.f32.mrf.mxu0
        %v2272 = vadd.f32 0.0, %v2271
        %2273 = vdwg.mxu0
        %v2322 = vrot.slane %v2026, 1
        %v2323 = vrot.slane %v2028, 1
        %v2324 = vsel %vm1145, %v2322, %v2323
        %v2325 = vrot.slane %v2031, 1
        %v2326 = vsel %vm1145, %v2323, %v2325
        %v2327 = vrot.slane %v2033, 1
        %v2328 = vrot.slane %v2036, 1
        %v2329 = vsel %vm1145, %v2327, %v2328
        %v2330 = vrot.slane %v2038, 1
        %v2331 = vsel %vm1145, %v2328, %v2330
        %v2332 = vrot.slane %v2041, 1
        %v2333 = vrot.slane %v2043, 1
        %v2334 = vsel %vm1145, %v2332, %v2333
        %v2335 = vrot.slane %v2046, 1
        %v2336 = vsel %vm1145, %v2333, %v2335
        %v2337 = vrot.slane %v2048, 1
        %v2338 = vrot.slane %v2051, 1
        %v2339 = vsel %vm1145, %v2337, %v2338
        %v2340 = vrot.slane %v2053, 1
        %v2341 = vsel %vm1145, %v2338, %v2340
        %v2342 = vrot.slane %v2056, 1
        %v2343 = vrot.slane %v2058, 1
        %v2344 = vsel %vm1145, %v2342, %v2343
        %v2345 = vrot.slane %v2061, 1
        %v2346 = vsel %vm1145, %v2343, %v2345
        %v2347 = vrot.slane %v2063, 1
        %v2348 = vrot.slane %v2066, 1
        %v2349 = vsel %vm1145, %v2347, %v2348
        %v2350 = vrot.slane %v2068, 1
        %v2351 = vsel %vm1145, %v2348, %v2350
        %v2352 = vrot.slane %v2071, 1
        %v2353 = vrot.slane %v2073, 1
        %v2354 = vsel %vm1145, %v2352, %v2353
        %v2355 = vrot.slane %v2076, 1
        %v2356 = vsel %vm1145, %v2353, %v2355
        %v2357 = vrot.slane %v2078, 1
        %v2358 = vrot.slane %v2081, 1
        %v2359 = vsel %vm1145, %v2357, %v2358
        %v2360 = vrot.slane %v2083, 1
        %v2361 = vsel %vm1145, %v2358, %v2360
        %v2362 = vrot.slane %v2086, 1
        %v2363 = vrot.slane %v2088, 1
        %v2364 = vsel %vm1145, %v2362, %v2363
        %v2365 = vrot.slane %v2091, 1
        %v2366 = vsel %vm1145, %v2363, %v2365
        %v2367 = vrot.slane %v2093, 1
        %v2368 = vrot.slane %v2096, 1
        %v2369 = vsel %vm1145, %v2367, %v2368
        %v2370 = vrot.slane %v2098, 1
        %v2371 = vsel %vm1145, %v2368, %v2370
        %v2372 = vrot.slane %v2101, 1
        %v2373 = vrot.slane %v2103, 1
        %v2374 = vsel %vm1145, %v2372, %v2373
        %v2375 = vrot.slane %v2106, 1
        %v2376 = vsel %vm1145, %v2373, %v2375
        %v2377 = vrot.slane %v2108, 1
        %v2378 = vrot.slane %v2111, 1
        %v2379 = vsel %vm1145, %v2377, %v2378
        %v2380 = vrot.slane %v2113, 1
        %v2381 = vsel %vm1145, %v2378, %v2380
        %v2382 = vrot.slane %v2116, 1
        %v2383 = vrot.slane %v2118, 1
        %v2384 = vsel %vm1145, %v2382, %v2383
        %v2385 = vrot.slane %v2121, 1
        %v2386 = vsel %vm1145, %v2383, %v2385
        %v2387 = vrot.slane %v2123, 1
        %v2388 = vrot.slane %v2126, 1
        %v2389 = vsel %vm1145, %v2387, %v2388
        %v2390 = vrot.slane %v2128, 1
        %v2391 = vsel %vm1145, %v2388, %v2390
        %v2392 = vrot.slane %v2131, 1
        %v2393 = vrot.slane %v2133, 1
        %v2394 = vsel %vm1145, %v2392, %v2393
        %v2395 = vrot.slane %v2136, 1
        %v2396 = vsel %vm1145, %v2393, %v2395
        %v2397 = vrot.slane %v2138, 1
        %v2398 = vrot.slane %v2141, 1
        %v2399 = vsel %vm1145, %v2397, %v2398
        %v2400 = vrot.slane %v2143, 1
        %v2401 = vsel %vm1145, %v2398, %v2400
        %v2434 = vadd.f32 %v1913, %v2324
        %v2435 = vadd.f32 %v1915, %v2326
        %v2436 = vadd.f32 %v1919, %v2329
        %v2437 = vadd.f32 %v1922, %v2331
        %v2438 = vadd.f32 %v1926, %v2334
        %v2439 = vadd.f32 %v1928, %v2336
        %v2440 = vadd.f32 %v1932, %v2339
        %v2441 = vadd.f32 %v1935, %v2341
        %v2442 = vadd.f32 %v1939, %v2344
        %v2443 = vadd.f32 %v1941, %v2346
        %v2444 = vadd.f32 %v1945, %v2349
        %v2445 = vadd.f32 %v1948, %v2351
        %v2446 = vadd.f32 %v1952, %v2354
        %v2447 = vadd.f32 %v1954, %v2356
        %v2448 = vadd.f32 %v1958, %v2359
        %v2449 = vadd.f32 %v1961, %v2361
        %v2450 = vadd.f32 %v1965, %v2364
        %v2451 = vadd.f32 %v1967, %v2366
        %v2452 = vadd.f32 %v1971, %v2369
        %v2453 = vadd.f32 %v1974, %v2371
        %v2454 = vadd.f32 %v1978, %v2374
        %v2455 = vadd.f32 %v1980, %v2376
        %v2456 = vadd.f32 %v1984, %v2379
        %v2457 = vadd.f32 %v1987, %v2381
        %v2458 = vadd.f32 %v1991, %v2384
        %v2459 = vadd.f32 %v1993, %v2386
        %v2460 = vadd.f32 %v1997, %v2389
        %v2461 = vadd.f32 %v2000, %v2391
        %v2462 = vadd.f32 %v2004, %v2394
        %v2463 = vadd.f32 %v2006, %v2396
        %v2464 = vadd.f32 %v2010, %v2399
        %v2465 = vadd.f32 %v2013, %v2401
        %v2514 = vrot.slane %v2155, 2
        %v2515 = vrot.slane %v2157, 2
        %v2516 = vsel %vm1338, %v2514, %v2515
        %v2517 = vrot.slane %v2160, 2
        %v2518 = vsel %vm1338, %v2515, %v2517
        %v2519 = vrot.slane %v2162, 2
        %v2520 = vrot.slane %v2165, 2
        %v2521 = vsel %vm1338, %v2519, %v2520
        %v2522 = vrot.slane %v2167, 2
        %v2523 = vsel %vm1338, %v2520, %v2522
        %v2524 = vrot.slane %v2170, 2
        %v2525 = vrot.slane %v2172, 2
        %v2526 = vsel %vm1338, %v2524, %v2525
        %v2527 = vrot.slane %v2175, 2
        %v2528 = vsel %vm1338, %v2525, %v2527
        %v2529 = vrot.slane %v2177, 2
        %v2530 = vrot.slane %v2180, 2
        %v2531 = vsel %vm1338, %v2529, %v2530
        %v2532 = vrot.slane %v2182, 2
        %v2533 = vsel %vm1338, %v2530, %v2532
        %v2534 = vrot.slane %v2185, 2
        %v2535 = vrot.slane %v2187, 2
        %v2536 = vsel %vm1338, %v2534, %v2535
        %v2537 = vrot.slane %v2190, 2
        %v2538 = vsel %vm1338, %v2535, %v2537
        %v2539 = vrot.slane %v2192, 2
        %v2540 = vrot.slane %v2195, 2
        %v2541 = vsel %vm1338, %v2539, %v2540
        %v2542 = vrot.slane %v2197, 2
        %v2543 = vsel %vm1338, %v2540, %v2542
        %v2544 = vrot.slane %v2200, 2
        %v2545 = vrot.slane %v2202, 2
        %v2546 = vsel %vm1338, %v2544, %v2545
        %v2547 = vrot.slane %v2205, 2
        %v2548 = vsel %vm1338, %v2545, %v2547
        %v2549 = vrot.slane %v2207, 2
        %v2550 = vrot.slane %v2210, 2
        %v2551 = vsel %vm1338, %v2549, %v2550
        %v2552 = vrot.slane %v2212, 2
        %v2553 = vsel %vm1338, %v2550, %v2552
        %v2554 = vrot.slane %v2215, 2
        %v2555 = vrot.slane %v2217, 2
        %v2556 = vsel %vm1338, %v2554, %v2555
        %v2557 = vrot.slane %v2220, 2
        %v2558 = vsel %vm1338, %v2555, %v2557
        %v2559 = vrot.slane %v2222, 2
        %v2560 = vrot.slane %v2225, 2
        %v2561 = vsel %vm1338, %v2559, %v2560
        %v2562 = vrot.slane %v2227, 2
        %v2563 = vsel %vm1338, %v2560, %v2562
        %v2564 = vrot.slane %v2230, 2
        %v2565 = vrot.slane %v2232, 2
        %v2566 = vsel %vm1338, %v2564, %v2565
        %v2567 = vrot.slane %v2235, 2
        %v2568 = vsel %vm1338, %v2565, %v2567
        %v2569 = vrot.slane %v2237, 2
        %v2570 = vrot.slane %v2240, 2
        %v2571 = vsel %vm1338, %v2569, %v2570
        %v2572 = vrot.slane %v2242, 2
        %v2573 = vsel %vm1338, %v2570, %v2572
        %v2574 = vrot.slane %v2245, 2
        %v2575 = vrot.slane %v2247, 2
        %v2576 = vsel %vm1338, %v2574, %v2575
        %v2577 = vrot.slane %v2250, 2
        %v2578 = vsel %vm1338, %v2575, %v2577
        %v2579 = vrot.slane %v2252, 2
        %v2580 = vrot.slane %v2255, 2
        %v2581 = vsel %vm1338, %v2579, %v2580
        %v2582 = vrot.slane %v2257, 2
        %v2583 = vsel %vm1338, %v2580, %v2582
        %v2584 = vrot.slane %v2260, 2
        %v2585 = vrot.slane %v2262, 2
        %v2586 = vsel %vm1338, %v2584, %v2585
        %v2587 = vrot.slane %v2265, 2
        %v2588 = vsel %vm1338, %v2585, %v2587
        %v2589 = vrot.slane %v2267, 2
        %v2590 = vrot.slane %v2270, 2
        %v2591 = vsel %vm1338, %v2589, %v2590
        %v2592 = vrot.slane %v2272, 2
        %v2593 = vsel %vm1338, %v2590, %v2592
        %v2626 = vadd.f32 %v2434, %v2516
        %v2627 = vadd.f32 %v2435, %v2518
        %v2628 = vadd.f32 %v2436, %v2521
        %v2629 = vadd.f32 %v2437, %v2523
        %v2630 = vadd.f32 %v2438, %v2526
        %v2631 = vadd.f32 %v2439, %v2528
        %v2632 = vadd.f32 %v2440, %v2531
        %v2633 = vadd.f32 %v2441, %v2533
        %v2634 = vadd.f32 %v2442, %v2536
        %v2635 = vadd.f32 %v2443, %v2538
        %v2636 = vadd.f32 %v2444, %v2541
        %v2637 = vadd.f32 %v2445, %v2543
        %v2638 = vadd.f32 %v2446, %v2546
        %v2639 = vadd.f32 %v2447, %v2548
        %v2640 = vadd.f32 %v2448, %v2551
        %v2641 = vadd.f32 %v2449, %v2553
        %v2642 = vadd.f32 %v2450, %v2556
        %v2643 = vadd.f32 %v2451, %v2558
        %v2644 = vadd.f32 %v2452, %v2561
        %v2645 = vadd.f32 %v2453, %v2563
        %v2646 = vadd.f32 %v2454, %v2566
        %v2647 = vadd.f32 %v2455, %v2568
        %v2648 = vadd.f32 %v2456, %v2571
        %v2649 = vadd.f32 %v2457, %v2573
        %v2650 = vadd.f32 %v2458, %v2576
        %v2651 = vadd.f32 %v2459, %v2578
        %v2652 = vadd.f32 %v2460, %v2581
        %v2653 = vadd.f32 %v2461, %v2583
        %v2654 = vadd.f32 %v2462, %v2586
        %v2655 = vadd.f32 %v2463, %v2588
        %v2656 = vadd.f32 %v2464, %v2591
        %v2657 = vadd.f32 %v2465, %v2593
        %v2658 = vld [vmem:[%s191] sm:$0xff]
        %v2659 = vld [vmem:[%s191 + $0x8] sm:$0xff]
        %v2660 = vld [vmem:[%s191 + $0x10] sm:$0xff]
        %v2661 = vld [vmem:[%s191 + $0x18] sm:$0xff]
        %v2662 = vld [vmem:[%s191 + $0x20] sm:$0xff]
        %v2663 = vld [vmem:[%s191 + $0x28] sm:$0xff]
        %v2664 = vld [vmem:[%s191 + $0x30] sm:$0xff]
        %v2665 = vld [vmem:[%s191 + $0x38] sm:$0xff]
        %v2666 = vld [vmem:[%s191 + $0x40] sm:$0xff]
        %v2667 = vld [vmem:[%s191 + $0x48] sm:$0xff]
        %v2668 = vld [vmem:[%s191 + $0x50] sm:$0xff]
        %v2669 = vld [vmem:[%s191 + $0x58] sm:$0xff]
        %v2670 = vld [vmem:[%s191 + $0x60] sm:$0xff]
        %v2671 = vld [vmem:[%s191 + $0x68] sm:$0xff]
        %v2672 = vld [vmem:[%s191 + $0x70] sm:$0xff]
        %v2673 = vld [vmem:[%s191 + $0x78] sm:$0xff]
        %v2674 = vld [vmem:[%s191 + $0x80] sm:$0xff]
        %v2675 = vld [vmem:[%s191 + $0x88] sm:$0xff]
        %v2676 = vld [vmem:[%s191 + $0x90] sm:$0xff]
        %v2677 = vld [vmem:[%s191 + $0x98] sm:$0xff]
        %v2678 = vld [vmem:[%s191 + $0xa0] sm:$0xff]
        %v2679 = vld [vmem:[%s191 + $0xa8] sm:$0xff]
        %v2680 = vld [vmem:[%s191 + $0xb0] sm:$0xff]
        %v2681 = vld [vmem:[%s191 + $0xb8] sm:$0xff]
        %v2682 = vld [vmem:[%s191 + $0xc0] sm:$0xff]
        %v2683 = vld [vmem:[%s191 + $0xc8] sm:$0xff]
        %v2684 = vld [vmem:[%s191 + $0xd0] sm:$0xff]
        %v2685 = vld [vmem:[%s191 + $0xd8] sm:$0xff]
        %v2686 = vld [vmem:[%s191 + $0xe0] sm:$0xff]
        %v2687 = vld [vmem:[%s191 + $0xe8] sm:$0xff]
        %v2688 = vld [vmem:[%s191 + $0xf0] sm:$0xff]
        %v2689 = vld [vmem:[%s191 + $0xf8] sm:$0xff]
        %v2690 = vadd.f32 %v2658, %v2626
        %v2691 = vadd.f32 %v2659, %v2627
        %v2692 = vadd.f32 %v2660, %v2628
        %v2693 = vadd.f32 %v2661, %v2629
        %v2694 = vadd.f32 %v2662, %v2630
        %v2695 = vadd.f32 %v2663, %v2631
        %v2696 = vadd.f32 %v2664, %v2632
        %v2697 = vadd.f32 %v2665, %v2633
        %v2698 = vadd.f32 %v2666, %v2634
        %v2699 = vadd.f32 %v2667, %v2635
        %v2700 = vadd.f32 %v2668, %v2636
        %v2701 = vadd.f32 %v2669, %v2637
        %v2702 = vadd.f32 %v2670, %v2638
        %v2703 = vadd.f32 %v2671, %v2639
        %v2704 = vadd.f32 %v2672, %v2640
        %v2705 = vadd.f32 %v2673, %v2641
        %v2706 = vadd.f32 %v2674, %v2642
        %v2707 = vadd.f32 %v2675, %v2643
        %v2708 = vadd.f32 %v2676, %v2644
        %v2709 = vadd.f32 %v2677, %v2645
        %v2710 = vadd.f32 %v2678, %v2646
        %v2711 = vadd.f32 %v2679, %v2647
        %v2712 = vadd.f32 %v2680, %v2648
        %v2713 = vadd.f32 %v2681, %v2649
        %v2714 = vadd.f32 %v2682, %v2650
        %v2715 = vadd.f32 %v2683, %v2651
        %v2716 = vadd.f32 %v2684, %v2652
        %v2717 = vadd.f32 %v2685, %v2653
        %v2718 = vadd.f32 %v2686, %v2654
        %v2719 = vadd.f32 %v2687, %v2655
        %v2720 = vadd.f32 %v2688, %v2656
        %v2721 = vadd.f32 %v2689, %v2657
        %2722 = vst [vmem:[%s191] sm:$0xff] %v2690
        %2723 = vst [vmem:[%s191 + $0x8] sm:$0xff] %v2691
        %2724 = vst [vmem:[%s191 + $0x10] sm:$0xff] %v2692
        %2725 = vst [vmem:[%s191 + $0x18] sm:$0xff] %v2693
        %2726 = vst [vmem:[%s191 + $0x20] sm:$0xff] %v2694
        %2727 = vst [vmem:[%s191 + $0x28] sm:$0xff] %v2695
        %2728 = vst [vmem:[%s191 + $0x30] sm:$0xff] %v2696
        %2729 = vst [vmem:[%s191 + $0x38] sm:$0xff] %v2697
        %2730 = vst [vmem:[%s191 + $0x40] sm:$0xff] %v2698
        %2731 = vst [vmem:[%s191 + $0x48] sm:$0xff] %v2699
        %2732 = vst [vmem:[%s191 + $0x50] sm:$0xff] %v2700
        %2733 = vst [vmem:[%s191 + $0x58] sm:$0xff] %v2701
        %2734 = vst [vmem:[%s191 + $0x60] sm:$0xff] %v2702
        %2735 = vst [vmem:[%s191 + $0x68] sm:$0xff] %v2703
        %2736 = vst [vmem:[%s191 + $0x70] sm:$0xff] %v2704
        %2737 = vst [vmem:[%s191 + $0x78] sm:$0xff] %v2705
        %2738 = vst [vmem:[%s191 + $0x80] sm:$0xff] %v2706
        %2739 = vst [vmem:[%s191 + $0x88] sm:$0xff] %v2707
        %2740 = vst [vmem:[%s191 + $0x90] sm:$0xff] %v2708
        %2741 = vst [vmem:[%s191 + $0x98] sm:$0xff] %v2709
        %2742 = vst [vmem:[%s191 + $0xa0] sm:$0xff] %v2710
        %2743 = vst [vmem:[%s191 + $0xa8] sm:$0xff] %v2711
        %2744 = vst [vmem:[%s191 + $0xb0] sm:$0xff] %v2712
        %2745 = vst [vmem:[%s191 + $0xb8] sm:$0xff] %v2713
        %2746 = vst [vmem:[%s191 + $0xc0] sm:$0xff] %v2714
        %2747 = vst [vmem:[%s191 + $0xc8] sm:$0xff] %v2715
        %2748 = vst [vmem:[%s191 + $0xd0] sm:$0xff] %v2716
        %2749 = vst [vmem:[%s191 + $0xd8] sm:$0xff] %v2717
        %2750 = vst [vmem:[%s191 + $0xe0] sm:$0xff] %v2718
        %2751 = vst [vmem:[%s191 + $0xe8] sm:$0xff] %v2719
        %2752 = vst [vmem:[%s191 + $0xf0] sm:$0xff] %v2720
        %2753 = vst [vmem:[%s191 + $0xf8] sm:$0xff] %v2721
        %v2754 = vld [vmem:[%s201 + $0x18] sm:$0xf]
        %v2755 = vld [vmem:[%s201 + $0x1c] sm:$0xf]
        %v2756 = vld [vmem:[%s201 + $0x20] sm:$0xf]
        %v2757 = vld [vmem:[%s201 + $0x24] sm:$0xf]
        %v2758 = vld [vmem:[%s201 + $0x28] sm:$0xf]
        %v2759 = vld [vmem:[%s201 + $0x2c] sm:$0xf]
        %v2760 = vld [vmem:[%s201 + $0x30] sm:$0xf]
        %v2761 = vld [vmem:[%s201 + $0x34] sm:$0xf]
        %v2762 = vld [vmem:[%s201 + $0x38] sm:$0xf]
        %v2763 = vld [vmem:[%s201 + $0x3c] sm:$0xf]
        %v2764 = vld [vmem:[%s201 + $0x40] sm:$0xf]
        %v2765 = vld [vmem:[%s201 + $0x44] sm:$0xf]
        %v2766 = vld [vmem:[%s201 + $0x48] sm:$0xf]
        %v2767 = vld [vmem:[%s201 + $0x4c] sm:$0xf]
        %v2768 = vld [vmem:[%s201 + $0x50] sm:$0xf]
        %v2769 = vld [vmem:[%s201 + $0x54] sm:$0xf]
        %v2770 = vld [vmem:[%s201 + $0x58] sm:$0xf]
        %v2771 = vld [vmem:[%s201 + $0x5c] sm:$0xf]
        %v2772 = vld [vmem:[%s201 + $0x60] sm:$0xf]
        %v2773 = vld [vmem:[%s201 + $0x64] sm:$0xf]
        %v2774 = vld [vmem:[%s201 + $0x68] sm:$0xf]
        %v2775 = vld [vmem:[%s201 + $0x6c] sm:$0xf]
        %v2776 = vld [vmem:[%s201 + $0x70] sm:$0xf]
        %v2777 = vld [vmem:[%s201 + $0x74] sm:$0xf]
        %v2778 = vld [vmem:[%s201 + $0x78] sm:$0xf]
        %v2779 = vld [vmem:[%s201 + $0x7c] sm:$0xf]
        %v2780 = vld [vmem:[%s201 + $0x80] sm:$0xf]
        %v2781 = vld [vmem:[%s201 + $0x84] sm:$0xf]
        %v2782 = vld [vmem:[%s201 + $0x88] sm:$0xf]
        %v2783 = vld [vmem:[%s201 + $0x8c] sm:$0xf]
        %v2784 = vld [vmem:[%s201 + $0x90] sm:$0xf]
        %v2785 = vld [vmem:[%s201 + $0x94] sm:$0xf]
        %v2786 = vld [vmem:[%s201 + $0x98] sm:$0xf]
        %v2787 = vld [vmem:[%s201 + $0x9c] sm:$0xf]
        %v2788 = vld [vmem:[%s201 + $0xa0] sm:$0xf]
        %v2789 = vld [vmem:[%s201 + $0xa4] sm:$0xf]
        %v2790 = vld [vmem:[%s201 + $0xa8] sm:$0xf]
        %v2791 = vld [vmem:[%s201 + $0xac] sm:$0xf]
        %v2792 = vld [vmem:[%s201 + $0xb0] sm:$0xf]
        %v2793 = vld [vmem:[%s201 + $0xb4] sm:$0xf]
        %v2794 = vld [vmem:[%s201 + $0xb8] sm:$0xf]
        %v2795 = vld [vmem:[%s201 + $0xbc] sm:$0xf]
        %v2796 = vld [vmem:[%s201 + $0xc0] sm:$0xf]
        %v2797 = vld [vmem:[%s201 + $0xc4] sm:$0xf]
        %v2798 = vld [vmem:[%s201 + $0xc8] sm:$0xf]
        %v2799 = vld [vmem:[%s201 + $0xcc] sm:$0xf]
        %v2800 = vld [vmem:[%s201 + $0xd0] sm:$0xf]
        %v2801 = vld [vmem:[%s201 + $0xd4] sm:$0xf]
        %s2802 = scalar_lea.vmem %s1, 384
        %v2803 = vld [vmem:[%s2802] sm:$0xff]
        %v2804 = vld [vmem:[%s2802 + $0x8] sm:$0xf]
        %v2805 = vld [vmem:[%s2802 + $0xc] sm:$0xff]
        %v2806 = vld [vmem:[%s2802 + $0x14] sm:$0xf]
        %v2807 = vld [vmem:[%s2802 + $0x18] sm:$0xff]
        %v2808 = vld [vmem:[%s2802 + $0x20] sm:$0xf]
        %v2809 = vld [vmem:[%s2802 + $0x24] sm:$0xff]
        %v2810 = vld [vmem:[%s2802 + $0x2c] sm:$0xf]
        %v2811 = vld [vmem:[%s2802 + $0x30] sm:$0xff]
        %v2812 = vld [vmem:[%s2802 + $0x38] sm:$0xf]
        %v2813 = vld [vmem:[%s2802 + $0x3c] sm:$0xff]
        %v2814 = vld [vmem:[%s2802 + $0x44] sm:$0xf]
        %v2815 = vld [vmem:[%s2802 + $0x48] sm:$0xff]
        %v2816 = vld [vmem:[%s2802 + $0x50] sm:$0xf]
        %v2817 = vld [vmem:[%s2802 + $0x54] sm:$0xff]
        %v2818 = vld [vmem:[%s2802 + $0x5c] sm:$0xf]
        %v2819 = vld [vmem:[%s2802 + $0x60] sm:$0xff]
        %v2820 = vld [vmem:[%s2802 + $0x68] sm:$0xf]
        %v2821 = vld [vmem:[%s2802 + $0x6c] sm:$0xff]
        %v2822 = vld [vmem:[%s2802 + $0x74] sm:$0xf]
        %v2823 = vld [vmem:[%s2802 + $0x78] sm:$0xff]
        %v2824 = vld [vmem:[%s2802 + $0x80] sm:$0xf]
        %v2825 = vld [vmem:[%s2802 + $0x84] sm:$0xff]
        %v2826 = vld [vmem:[%s2802 + $0x8c] sm:$0xf]
        %v2827 = vld [vmem:[%s2802 + $0x90] sm:$0xff]
        %v2828 = vld [vmem:[%s2802 + $0x98] sm:$0xf]
        %v2829 = vld [vmem:[%s2802 + $0x9c] sm:$0xff]
        %v2830 = vld [vmem:[%s2802 + $0xa4] sm:$0xf]
        %v2831 = vld [vmem:[%s2802 + $0xa8] sm:$0xff]
        %v2832 = vld [vmem:[%s2802 + $0xb0] sm:$0xf]
        %v2833 = vld [vmem:[%s2802 + $0xb4] sm:$0xff]
        %v2834 = vld [vmem:[%s2802 + $0xbc] sm:$0xf]
        %v2883 = vunpack.c.l.b16 %v2754
        %v2884 = vunpack.c.l.b16 %v2755
        %v2885 = vunpack.c.l.b16 %v2756
        %v2886 = vunpack.c.l.b16 %v2757
        %v2887 = vunpack.c.l.b16 %v2758
        %v2888 = vunpack.c.l.b16 %v2759
        %v2889 = vunpack.c.l.b16 %v2760
        %v2890 = vunpack.c.l.b16 %v2761
        %v2891 = vunpack.c.l.b16 %v2762
        %v2892 = vunpack.c.l.b16 %v2763
        %v2893 = vunpack.c.l.b16 %v2764
        %v2894 = vunpack.c.l.b16 %v2765
        %v2895 = vunpack.c.l.b16 %v2766
        %v2896 = vunpack.c.l.b16 %v2767
        %v2897 = vunpack.c.l.b16 %v2768
        %v2898 = vunpack.c.l.b16 %v2769
        %v2899 = vunpack.c.l.b16 %v2770
        %v2900 = vunpack.c.l.b16 %v2771
        %v2901 = vunpack.c.l.b16 %v2772
        %v2902 = vunpack.c.l.b16 %v2773
        %v2903 = vunpack.c.l.b16 %v2774
        %v2904 = vunpack.c.l.b16 %v2775
        %v2905 = vunpack.c.l.b16 %v2776
        %v2906 = vunpack.c.l.b16 %v2777
        %v2907 = vunpack.c.l.b16 %v2778
        %v2908 = vunpack.c.l.b16 %v2779
        %v2909 = vunpack.c.l.b16 %v2780
        %v2910 = vunpack.c.l.b16 %v2781
        %v2911 = vunpack.c.l.b16 %v2782
        %v2912 = vunpack.c.l.b16 %v2783
        %v2913 = vunpack.c.l.b16 %v2784
        %v2914 = vunpack.c.l.b16 %v2785
        %v2915 = vunpack.c.l.b16 %v2786
        %v2916 = vunpack.c.l.b16 %v2787
        %v2917 = vunpack.c.l.b16 %v2788
        %v2918 = vunpack.c.l.b16 %v2789
        %v2919 = vunpack.c.l.b16 %v2790
        %v2920 = vunpack.c.l.b16 %v2791
        %v2921 = vunpack.c.l.b16 %v2792
        %v2922 = vunpack.c.l.b16 %v2793
        %v2923 = vunpack.c.l.b16 %v2794
        %v2924 = vunpack.c.l.b16 %v2795
        %v2925 = vunpack.c.l.b16 %v2796
        %v2926 = vunpack.c.l.b16 %v2797
        %v2927 = vunpack.c.l.b16 %v2798
        %v2928 = vunpack.c.l.b16 %v2799
        %v2929 = vunpack.c.l.b16 %v2800
        %v2930 = vunpack.c.l.b16 %v2801
        %v2931 = vpack.c.b16 %v2884, %v2883
        %v2932 = vpack.c.b16 %v2886, %v2885
        %v2933 = vpack.c.b16 %v2888, %v2887
        %v2934 = vpack.c.b16 %v2890, %v2889
        %v2935 = vpack.c.b16 %v2892, %v2891
        %v2936 = vpack.c.b16 %v2894, %v2893
        %v2937 = vpack.c.b16 %v2896, %v2895
        %v2938 = vpack.c.b16 %v2898, %v2897
        %v2939 = vpack.c.b16 %v2900, %v2899
        %v2940 = vpack.c.b16 %v2902, %v2901
        %v2941 = vpack.c.b16 %v2904, %v2903
        %v2942 = vpack.c.b16 %v2906, %v2905
        %v2943 = vpack.c.b16 %v2908, %v2907
        %v2944 = vpack.c.b16 %v2910, %v2909
        %v2945 = vpack.c.b16 %v2912, %v2911
        %v2946 = vpack.c.b16 %v2914, %v2913
        %v2947 = vpack.c.b16 %v2916, %v2915
        %v2948 = vpack.c.b16 %v2918, %v2917
        %v2949 = vpack.c.b16 %v2920, %v2919
        %v2950 = vpack.c.b16 %v2922, %v2921
        %v2951 = vpack.c.b16 %v2924, %v2923
        %v2952 = vpack.c.b16 %v2926, %v2925
        %v2953 = vpack.c.b16 %v2928, %v2927
        %v2954 = vpack.c.b16 %v2930, %v2929
        %v3011 = vunpack.c.l.b16 %v2803
        %v3012 = vunpack.c.h.b16 %v2803
        %v3013 = vunpack.c.l.b16 %v2804
        %v3014 = vunpack.c.l.b16 %v2805
        %v3015 = vunpack.c.h.b16 %v2805
        %v3016 = vunpack.c.l.b16 %v2806
        %v3017 = vunpack.c.l.b16 %v2807
        %v3018 = vunpack.c.h.b16 %v2807
        %v3019 = vunpack.c.l.b16 %v2808
        %v3020 = vunpack.c.l.b16 %v2809
        %v3021 = vunpack.c.h.b16 %v2809
        %v3022 = vunpack.c.l.b16 %v2810
        %v3023 = vunpack.c.l.b16 %v2811
        %v3024 = vunpack.c.h.b16 %v2811
        %v3025 = vunpack.c.l.b16 %v2812
        %v3026 = vunpack.c.l.b16 %v2813
        %v3027 = vunpack.c.h.b16 %v2813
        %v3028 = vunpack.c.l.b16 %v2814
        %v3029 = vunpack.c.l.b16 %v2815
        %v3030 = vunpack.c.h.b16 %v2815
        %v3031 = vunpack.c.l.b16 %v2816
        %v3032 = vunpack.c.l.b16 %v2817
        %v3033 = vunpack.c.h.b16 %v2817
        %v3034 = vunpack.c.l.b16 %v2818
        %v3035 = vunpack.c.l.b16 %v2819
        %v3036 = vunpack.c.h.b16 %v2819
        %v3037 = vunpack.c.l.b16 %v2820
        %v3038 = vunpack.c.l.b16 %v2821
        %v3039 = vunpack.c.h.b16 %v2821
        %v3040 = vunpack.c.l.b16 %v2822
        %v3041 = vunpack.c.l.b16 %v2823
        %v3042 = vunpack.c.h.b16 %v2823
        %v3043 = vunpack.c.l.b16 %v2824
        %v3044 = vunpack.c.l.b16 %v2825
        %v3045 = vunpack.c.h.b16 %v2825
        %v3046 = vunpack.c.l.b16 %v2826
        %v3047 = vunpack.c.l.b16 %v2827
        %v3048 = vunpack.c.h.b16 %v2827
        %v3049 = vunpack.c.l.b16 %v2828
        %v3050 = vunpack.c.l.b16 %v2829
        %v3051 = vunpack.c.h.b16 %v2829
        %v3052 = vunpack.c.l.b16 %v2830
        %v3053 = vunpack.c.l.b16 %v2831
        %v3054 = vunpack.c.h.b16 %v2831
        %v3055 = vunpack.c.l.b16 %v2832
        %v3056 = vunpack.c.l.b16 %v2833
        %v3057 = vunpack.c.h.b16 %v2833
        %v3058 = vunpack.c.l.b16 %v2834
        %v3059 = vpack.c.b16 %v3014, %v3011
        %v3060 = vpack.c.b16 %v3015, %v3012
        %v3061 = vpack.c.b16 %v3016, %v3013
        %v3062 = vpack.c.b16 %v3020, %v3017
        %v3063 = vpack.c.b16 %v3021, %v3018
        %v3064 = vpack.c.b16 %v3022, %v3019
        %v3065 = vpack.c.b16 %v3026, %v3023
        %v3066 = vpack.c.b16 %v3027, %v3024
        %v3067 = vpack.c.b16 %v3028, %v3025
        %v3068 = vpack.c.b16 %v3032, %v3029
        %v3069 = vpack.c.b16 %v3033, %v3030
        %v3070 = vpack.c.b16 %v3034, %v3031
        %v3071 = vpack.c.b16 %v3038, %v3035
        %v3072 = vpack.c.b16 %v3039, %v3036
        %v3073 = vpack.c.b16 %v3040, %v3037
        %v3074 = vpack.c.b16 %v3044, %v3041
        %v3075 = vpack.c.b16 %v3045, %v3042
        %v3076 = vpack.c.b16 %v3046, %v3043
        %v3077 = vpack.c.b16 %v3050, %v3047
        %v3078 = vpack.c.b16 %v3051, %v3048
        %v3079 = vpack.c.b16 %v3052, %v3049
        %v3080 = vpack.c.b16 %v3056, %v3053
        %v3081 = vpack.c.b16 %v3057, %v3054
        %v3082 = vpack.c.b16 %v3058, %v3055
        %3107 = vmatpush.bf16.msra.mxu0 %v3080
        %3108 = vmatpush.bf16.msra.mxu0 %v3077
        %3109 = vmatpush.bf16.msra.mxu0 %v3074
        %3110 = vmatpush.bf16.msra.mxu0 %v3071
        %3111 = vmatpush.bf16.msra.mxu0 %v3068
        %3112 = vmatpush.bf16.msra.mxu0 %v3065
        %3113 = vmatpush.bf16.msra.mxu0 %v3062
        %3114 = vmatpush.bf16.msra.mxu0 %v3059
        %3115 = vmatmul.bf16.gmra.mxu0 %v2931
        %v3116 = vpop.f32.mrf.mxu0
        %v3117 = vadd.f32 0.0, %v3116
        %v3118 = vpop.f32.mrf.mxu0
        %v3119 = vadd.f32 0.0, %v3118
        %3120 = vmatmul.bf16.gmra.mxu0 %v2932
        %v3121 = vpop.f32.mrf.mxu0
        %v3122 = vpop.f32.mrf.mxu0
        %v3123 = vadd.f32 0.0, %v3122
        %3124 = vmatmul.bf16.gmra.mxu0 %v2933
        %v3125 = vpop.f32.mrf.mxu0
        %v3126 = vadd.f32 0.0, %v3125
        %v3127 = vpop.f32.mrf.mxu0
        %3128 = vmatmul.bf16.gmra.mxu0 %v2934
        %v3129 = vpop.f32.mrf.mxu0
        %v3130 = vadd.f32 0.0, %v3129
        %v3131 = vpop.f32.mrf.mxu0
        %v3132 = vadd.f32 0.0, %v3131
        %3133 = vmatmul.bf16.gmra.mxu0 %v2935
        %v3134 = vpop.f32.mrf.mxu0
        %v3135 = vpop.f32.mrf.mxu0
        %v3136 = vadd.f32 0.0, %v3135
        %3137 = vmatmul.bf16.gmra.mxu0 %v2936
        %v3138 = vpop.f32.mrf.mxu0
        %v3139 = vadd.f32 0.0, %v3138
        %v3140 = vpop.f32.mrf.mxu0
        %3141 = vmatmul.bf16.gmra.mxu0 %v2937
        %v3142 = vpop.f32.mrf.mxu0
        %v3143 = vadd.f32 0.0, %v3142
        %v3144 = vpop.f32.mrf.mxu0
        %v3145 = vadd.f32 0.0, %v3144
        %3146 = vmatmul.bf16.gmra.mxu0 %v2938
        %v3147 = vpop.f32.mrf.mxu0
        %v3148 = vpop.f32.mrf.mxu0
        %v3149 = vadd.f32 0.0, %v3148
        %3150 = vmatmul.bf16.gmra.mxu0 %v2939
        %v3151 = vpop.f32.mrf.mxu0
        %v3152 = vadd.f32 0.0, %v3151
        %v3153 = vpop.f32.mrf.mxu0
        %3154 = vmatmul.bf16.gmra.mxu0 %v2940
        %v3155 = vpop.f32.mrf.mxu0
        %v3156 = vadd.f32 0.0, %v3155
        %v3157 = vpop.f32.mrf.mxu0
        %v3158 = vadd.f32 0.0, %v3157
        %3159 = vmatmul.bf16.gmra.mxu0 %v2941
        %v3160 = vpop.f32.mrf.mxu0
        %v3161 = vpop.f32.mrf.mxu0
        %v3162 = vadd.f32 0.0, %v3161
        %3163 = vmatmul.bf16.gmra.mxu0 %v2942
        %v3164 = vpop.f32.mrf.mxu0
        %v3165 = vadd.f32 0.0, %v3164
        %v3166 = vpop.f32.mrf.mxu0
        %3167 = vmatmul.bf16.gmra.mxu0 %v2943
        %v3168 = vpop.f32.mrf.mxu0
        %v3169 = vadd.f32 0.0, %v3168
        %v3170 = vpop.f32.mrf.mxu0
        %v3171 = vadd.f32 0.0, %v3170
        %3172 = vmatmul.bf16.gmra.mxu0 %v2944
        %v3173 = vpop.f32.mrf.mxu0
        %v3174 = vpop.f32.mrf.mxu0
        %v3175 = vadd.f32 0.0, %v3174
        %3176 = vmatmul.bf16.gmra.mxu0 %v2945
        %v3177 = vpop.f32.mrf.mxu0
        %v3178 = vadd.f32 0.0, %v3177
        %v3179 = vpop.f32.mrf.mxu0
        %3180 = vmatmul.bf16.gmra.mxu0 %v2946
        %v3181 = vpop.f32.mrf.mxu0
        %v3182 = vadd.f32 0.0, %v3181
        %v3183 = vpop.f32.mrf.mxu0
        %v3184 = vadd.f32 0.0, %v3183
        %3185 = vmatmul.bf16.gmra.mxu0 %v2947
        %v3186 = vpop.f32.mrf.mxu0
        %v3187 = vpop.f32.mrf.mxu0
        %v3188 = vadd.f32 0.0, %v3187
        %3189 = vmatmul.bf16.gmra.mxu0 %v2948
        %v3190 = vpop.f32.mrf.mxu0
        %v3191 = vadd.f32 0.0, %v3190
        %v3192 = vpop.f32.mrf.mxu0
        %3193 = vmatmul.bf16.gmra.mxu0 %v2949
        %v3194 = vpop.f32.mrf.mxu0
        %v3195 = vadd.f32 0.0, %v3194
        %v3196 = vpop.f32.mrf.mxu0
        %v3197 = vadd.f32 0.0, %v3196
        %3198 = vmatmul.bf16.gmra.mxu0 %v2950
        %v3199 = vpop.f32.mrf.mxu0
        %v3200 = vpop.f32.mrf.mxu0
        %v3201 = vadd.f32 0.0, %v3200
        %3202 = vmatmul.bf16.gmra.mxu0 %v2951
        %v3203 = vpop.f32.mrf.mxu0
        %v3204 = vadd.f32 0.0, %v3203
        %v3205 = vpop.f32.mrf.mxu0
        %3206 = vmatmul.bf16.gmra.mxu0 %v2952
        %v3207 = vpop.f32.mrf.mxu0
        %v3208 = vadd.f32 0.0, %v3207
        %v3209 = vpop.f32.mrf.mxu0
        %v3210 = vadd.f32 0.0, %v3209
        %3211 = vmatmul.bf16.gmra.mxu0 %v2953
        %v3212 = vpop.f32.mrf.mxu0
        %v3213 = vpop.f32.mrf.mxu0
        %v3214 = vadd.f32 0.0, %v3213
        %3215 = vmatmul.bf16.gmra.mxu0 %v2954
        %v3216 = vpop.f32.mrf.mxu0
        %v3217 = vadd.f32 0.0, %v3216
        %v3218 = vpop.f32.mrf.mxu0
        %3219 = vdwg.mxu0
        %3220 = vmatpush.bf16.msra.mxu0 %v3081
        %3221 = vmatpush.bf16.msra.mxu0 %v3078
        %3222 = vmatpush.bf16.msra.mxu0 %v3075
        %3223 = vmatpush.bf16.msra.mxu0 %v3072
        %3224 = vmatpush.bf16.msra.mxu0 %v3069
        %3225 = vmatpush.bf16.msra.mxu0 %v3066
        %3226 = vmatpush.bf16.msra.mxu0 %v3063
        %3227 = vmatpush.bf16.msra.mxu0 %v3060
        %3228 = vmatmul.bf16.gmra.mxu0 %v2931
        %v3229 = vpop.f32.mrf.mxu0
        %v3230 = vadd.f32 0.0, %v3229
        %v3231 = vpop.f32.mrf.mxu0
        %v3232 = vadd.f32 0.0, %v3231
        %3233 = vmatmul.bf16.gmra.mxu0 %v2932
        %v3234 = vpop.f32.mrf.mxu0
        %v3235 = vadd.f32 0.0, %v3234
        %v3236 = vpop.f32.mrf.mxu0
        %v3237 = vadd.f32 0.0, %v3236
        %3238 = vmatmul.bf16.gmra.mxu0 %v2933
        %v3239 = vpop.f32.mrf.mxu0
        %v3240 = vadd.f32 0.0, %v3239
        %v3241 = vpop.f32.mrf.mxu0
        %v3242 = vadd.f32 0.0, %v3241
        %3243 = vmatmul.bf16.gmra.mxu0 %v2934
        %v3244 = vpop.f32.mrf.mxu0
        %v3245 = vadd.f32 0.0, %v3244
        %v3246 = vpop.f32.mrf.mxu0
        %v3247 = vadd.f32 0.0, %v3246
        %3248 = vmatmul.bf16.gmra.mxu0 %v2935
        %v3249 = vpop.f32.mrf.mxu0
        %v3250 = vadd.f32 0.0, %v3249
        %v3251 = vpop.f32.mrf.mxu0
        %v3252 = vadd.f32 0.0, %v3251
        %3253 = vmatmul.bf16.gmra.mxu0 %v2936
        %v3254 = vpop.f32.mrf.mxu0
        %v3255 = vadd.f32 0.0, %v3254
        %v3256 = vpop.f32.mrf.mxu0
        %v3257 = vadd.f32 0.0, %v3256
        %3258 = vmatmul.bf16.gmra.mxu0 %v2937
        %v3259 = vpop.f32.mrf.mxu0
        %v3260 = vadd.f32 0.0, %v3259
        %v3261 = vpop.f32.mrf.mxu0
        %v3262 = vadd.f32 0.0, %v3261
        %3263 = vmatmul.bf16.gmra.mxu0 %v2938
        %v3264 = vpop.f32.mrf.mxu0
        %v3265 = vadd.f32 0.0, %v3264
        %v3266 = vpop.f32.mrf.mxu0
        %v3267 = vadd.f32 0.0, %v3266
        %3268 = vmatmul.bf16.gmra.mxu0 %v2939
        %v3269 = vpop.f32.mrf.mxu0
        %v3270 = vadd.f32 0.0, %v3269
        %v3271 = vpop.f32.mrf.mxu0
        %v3272 = vadd.f32 0.0, %v3271
        %3273 = vmatmul.bf16.gmra.mxu0 %v2940
        %v3274 = vpop.f32.mrf.mxu0
        %v3275 = vadd.f32 0.0, %v3274
        %v3276 = vpop.f32.mrf.mxu0
        %v3277 = vadd.f32 0.0, %v3276
        %3278 = vmatmul.bf16.gmra.mxu0 %v2941
        %v3279 = vpop.f32.mrf.mxu0
        %v3280 = vadd.f32 0.0, %v3279
        %v3281 = vpop.f32.mrf.mxu0
        %v3282 = vadd.f32 0.0, %v3281
        %3283 = vmatmul.bf16.gmra.mxu0 %v2942
        %v3284 = vpop.f32.mrf.mxu0
        %v3285 = vadd.f32 0.0, %v3284
        %v3286 = vpop.f32.mrf.mxu0
        %v3287 = vadd.f32 0.0, %v3286
        %3288 = vmatmul.bf16.gmra.mxu0 %v2943
        %v3289 = vpop.f32.mrf.mxu0
        %v3290 = vadd.f32 0.0, %v3289
        %v3291 = vpop.f32.mrf.mxu0
        %v3292 = vadd.f32 0.0, %v3291
        %3293 = vmatmul.bf16.gmra.mxu0 %v2944
        %v3294 = vpop.f32.mrf.mxu0
        %v3295 = vadd.f32 0.0, %v3294
        %v3296 = vpop.f32.mrf.mxu0
        %v3297 = vadd.f32 0.0, %v3296
        %3298 = vmatmul.bf16.gmra.mxu0 %v2945
        %v3299 = vpop.f32.mrf.mxu0
        %v3300 = vadd.f32 0.0, %v3299
        %v3301 = vpop.f32.mrf.mxu0
        %v3302 = vadd.f32 0.0, %v3301
        %3303 = vmatmul.bf16.gmra.mxu0 %v2946
        %v3304 = vpop.f32.mrf.mxu0
        %v3305 = vadd.f32 0.0, %v3304
        %v3306 = vpop.f32.mrf.mxu0
        %v3307 = vadd.f32 0.0, %v3306
        %3308 = vmatmul.bf16.gmra.mxu0 %v2947
        %v3309 = vpop.f32.mrf.mxu0
        %v3310 = vadd.f32 0.0, %v3309
        %v3311 = vpop.f32.mrf.mxu0
        %v3312 = vadd.f32 0.0, %v3311
        %3313 = vmatmul.bf16.gmra.mxu0 %v2948
        %v3314 = vpop.f32.mrf.mxu0
        %v3315 = vadd.f32 0.0, %v3314
        %v3316 = vpop.f32.mrf.mxu0
        %v3317 = vadd.f32 0.0, %v3316
        %3318 = vmatmul.bf16.gmra.mxu0 %v2949
        %v3319 = vpop.f32.mrf.mxu0
        %v3320 = vadd.f32 0.0, %v3319
        %v3321 = vpop.f32.mrf.mxu0
        %v3322 = vadd.f32 0.0, %v3321
        %3323 = vmatmul.bf16.gmra.mxu0 %v2950
        %v3324 = vpop.f32.mrf.mxu0
        %v3325 = vadd.f32 0.0, %v3324
        %v3326 = vpop.f32.mrf.mxu0
        %v3327 = vadd.f32 0.0, %v3326
        %3328 = vmatmul.bf16.gmra.mxu0 %v2951
        %v3329 = vpop.f32.mrf.mxu0
        %v3330 = vadd.f32 0.0, %v3329
        %v3331 = vpop.f32.mrf.mxu0
        %v3332 = vadd.f32 0.0, %v3331
        %3333 = vmatmul.bf16.gmra.mxu0 %v2952
        %v3334 = vpop.f32.mrf.mxu0
        %v3335 = vadd.f32 0.0, %v3334
        %v3336 = vpop.f32.mrf.mxu0
        %v3337 = vadd.f32 0.0, %v3336
        %3338 = vmatmul.bf16.gmra.mxu0 %v2953
        %v3339 = vpop.f32.mrf.mxu0
        %v3340 = vadd.f32 0.0, %v3339
        %v3341 = vpop.f32.mrf.mxu0
        %v3342 = vadd.f32 0.0, %v3341
        %3343 = vmatmul.bf16.gmra.mxu0 %v2954
        %v3344 = vpop.f32.mrf.mxu0
        %v3345 = vadd.f32 0.0, %v3344
        %v3346 = vpop.f32.mrf.mxu0
        %v3347 = vadd.f32 0.0, %v3346
        %3348 = vdwg.mxu0
        %3349 = vmatpush.bf16.msra.mxu0 %v3082
        %3350 = vmatpush.bf16.msra.mxu0 %v3079
        %3351 = vmatpush.bf16.msra.mxu0 %v3076
        %3352 = vmatpush.bf16.msra.mxu0 %v3073
        %3353 = vmatpush.bf16.msra.mxu0 %v3070
        %3354 = vmatpush.bf16.msra.mxu0 %v3067
        %3355 = vmatpush.bf16.msra.mxu0 %v3064
        %3356 = vmatpush.bf16.msra.mxu0 %v3061
        %3357 = vmatmul.bf16.gmra.mxu0 %v2931
        %v3358 = vpop.f32.mrf.mxu0
        %v3359 = vadd.f32 0.0, %v3358
        %v3360 = vpop.f32.mrf.mxu0
        %v3361 = vadd.f32 0.0, %v3360
        %3362 = vmatmul.bf16.gmra.mxu0 %v2932
        %v3363 = vpop.f32.mrf.mxu0
        %v3364 = vadd.f32 0.0, %v3363
        %v3365 = vpop.f32.mrf.mxu0
        %v3366 = vadd.f32 0.0, %v3365
        %3367 = vmatmul.bf16.gmra.mxu0 %v2933
        %v3368 = vpop.f32.mrf.mxu0
        %v3369 = vadd.f32 0.0, %v3368
        %v3370 = vpop.f32.mrf.mxu0
        %v3371 = vadd.f32 0.0, %v3370
        %3372 = vmatmul.bf16.gmra.mxu0 %v2934
        %v3373 = vpop.f32.mrf.mxu0
        %v3374 = vadd.f32 0.0, %v3373
        %v3375 = vpop.f32.mrf.mxu0
        %v3376 = vadd.f32 0.0, %v3375
        %3377 = vmatmul.bf16.gmra.mxu0 %v2935
        %v3378 = vpop.f32.mrf.mxu0
        %v3379 = vadd.f32 0.0, %v3378
        %v3380 = vpop.f32.mrf.mxu0
        %v3381 = vadd.f32 0.0, %v3380
        %3382 = vmatmul.bf16.gmra.mxu0 %v2936
        %v3383 = vpop.f32.mrf.mxu0
        %v3384 = vadd.f32 0.0, %v3383
        %v3385 = vpop.f32.mrf.mxu0
        %v3386 = vadd.f32 0.0, %v3385
        %3387 = vmatmul.bf16.gmra.mxu0 %v2937
        %v3388 = vpop.f32.mrf.mxu0
        %v3389 = vadd.f32 0.0, %v3388
        %v3390 = vpop.f32.mrf.mxu0
        %v3391 = vadd.f32 0.0, %v3390
        %3392 = vmatmul.bf16.gmra.mxu0 %v2938
        %v3393 = vpop.f32.mrf.mxu0
        %v3394 = vadd.f32 0.0, %v3393
        %v3395 = vpop.f32.mrf.mxu0
        %v3396 = vadd.f32 0.0, %v3395
        %3397 = vmatmul.bf16.gmra.mxu0 %v2939
        %v3398 = vpop.f32.mrf.mxu0
        %v3399 = vadd.f32 0.0, %v3398
        %v3400 = vpop.f32.mrf.mxu0
        %v3401 = vadd.f32 0.0, %v3400
        %3402 = vmatmul.bf16.gmra.mxu0 %v2940
        %v3403 = vpop.f32.mrf.mxu0
        %v3404 = vadd.f32 0.0, %v3403
        %v3405 = vpop.f32.mrf.mxu0
        %v3406 = vadd.f32 0.0, %v3405
        %3407 = vmatmul.bf16.gmra.mxu0 %v2941
        %v3408 = vpop.f32.mrf.mxu0
        %v3409 = vadd.f32 0.0, %v3408
        %v3410 = vpop.f32.mrf.mxu0
        %v3411 = vadd.f32 0.0, %v3410
        %3412 = vmatmul.bf16.gmra.mxu0 %v2942
        %v3413 = vpop.f32.mrf.mxu0
        %v3414 = vadd.f32 0.0, %v3413
        %v3415 = vpop.f32.mrf.mxu0
        %v3416 = vadd.f32 0.0, %v3415
        %3417 = vmatmul.bf16.gmra.mxu0 %v2943
        %v3418 = vpop.f32.mrf.mxu0
        %v3419 = vadd.f32 0.0, %v3418
        %v3420 = vpop.f32.mrf.mxu0
        %v3421 = vadd.f32 0.0, %v3420
        %3422 = vmatmul.bf16.gmra.mxu0 %v2944
        %v3423 = vpop.f32.mrf.mxu0
        %v3424 = vadd.f32 0.0, %v3423
        %v3425 = vpop.f32.mrf.mxu0
        %v3426 = vadd.f32 0.0, %v3425
        %3427 = vmatmul.bf16.gmra.mxu0 %v2945
        %v3428 = vpop.f32.mrf.mxu0
        %v3429 = vadd.f32 0.0, %v3428
        %v3430 = vpop.f32.mrf.mxu0
        %v3431 = vadd.f32 0.0, %v3430
        %3432 = vmatmul.bf16.gmra.mxu0 %v2946
        %v3433 = vpop.f32.mrf.mxu0
        %v3434 = vadd.f32 0.0, %v3433
        %v3435 = vpop.f32.mrf.mxu0
        %v3436 = vadd.f32 0.0, %v3435
        %3437 = vmatmul.bf16.gmra.mxu0 %v2947
        %v3438 = vpop.f32.mrf.mxu0
        %v3439 = vadd.f32 0.0, %v3438
        %v3440 = vpop.f32.mrf.mxu0
        %v3441 = vadd.f32 0.0, %v3440
        %3442 = vmatmul.bf16.gmra.mxu0 %v2948
        %v3443 = vpop.f32.mrf.mxu0
        %v3444 = vadd.f32 0.0, %v3443
        %v3445 = vpop.f32.mrf.mxu0
        %v3446 = vadd.f32 0.0, %v3445
        %3447 = vmatmul.bf16.gmra.mxu0 %v2949
        %v3448 = vpop.f32.mrf.mxu0
        %v3449 = vadd.f32 0.0, %v3448
        %v3450 = vpop.f32.mrf.mxu0
        %v3451 = vadd.f32 0.0, %v3450
        %3452 = vmatmul.bf16.gmra.mxu0 %v2950
        %v3453 = vpop.f32.mrf.mxu0
        %v3454 = vadd.f32 0.0, %v3453
        %v3455 = vpop.f32.mrf.mxu0
        %v3456 = vadd.f32 0.0, %v3455
        %3457 = vmatmul.bf16.gmra.mxu0 %v2951
        %v3458 = vpop.f32.mrf.mxu0
        %v3459 = vadd.f32 0.0, %v3458
        %v3460 = vpop.f32.mrf.mxu0
        %v3461 = vadd.f32 0.0, %v3460
        %3462 = vmatmul.bf16.gmra.mxu0 %v2952
        %v3463 = vpop.f32.mrf.mxu0
        %v3464 = vadd.f32 0.0, %v3463
        %v3465 = vpop.f32.mrf.mxu0
        %v3466 = vadd.f32 0.0, %v3465
        %3467 = vmatmul.bf16.gmra.mxu0 %v2953
        %v3468 = vpop.f32.mrf.mxu0
        %v3469 = vadd.f32 0.0, %v3468
        %v3470 = vpop.f32.mrf.mxu0
        %v3471 = vadd.f32 0.0, %v3470
        %3472 = vmatmul.bf16.gmra.mxu0 %v2954
        %v3473 = vpop.f32.mrf.mxu0
        %v3474 = vadd.f32 0.0, %v3473
        %v3475 = vpop.f32.mrf.mxu0
        %v3476 = vadd.f32 0.0, %v3475
        %3477 = vdwg.mxu0
        %v3526 = vrot.slane %v3230, 1
        %v3527 = vrot.slane %v3232, 1
        %v3528 = vsel %vm1145, %v3526, %v3527
        %v3529 = vrot.slane %v3235, 1
        %v3530 = vsel %vm1145, %v3527, %v3529
        %v3531 = vrot.slane %v3237, 1
        %v3532 = vrot.slane %v3240, 1
        %v3533 = vsel %vm1145, %v3531, %v3532
        %v3534 = vrot.slane %v3242, 1
        %v3535 = vsel %vm1145, %v3532, %v3534
        %v3536 = vrot.slane %v3245, 1
        %v3537 = vrot.slane %v3247, 1
        %v3538 = vsel %vm1145, %v3536, %v3537
        %v3539 = vrot.slane %v3250, 1
        %v3540 = vsel %vm1145, %v3537, %v3539
        %v3541 = vrot.slane %v3252, 1
        %v3542 = vrot.slane %v3255, 1
        %v3543 = vsel %vm1145, %v3541, %v3542
        %v3544 = vrot.slane %v3257, 1
        %v3545 = vsel %vm1145, %v3542, %v3544
        %v3546 = vrot.slane %v3260, 1
        %v3547 = vrot.slane %v3262, 1
        %v3548 = vsel %vm1145, %v3546, %v3547
        %v3549 = vrot.slane %v3265, 1
        %v3550 = vsel %vm1145, %v3547, %v3549
        %v3551 = vrot.slane %v3267, 1
        %v3552 = vrot.slane %v3270, 1
        %v3553 = vsel %vm1145, %v3551, %v3552
        %v3554 = vrot.slane %v3272, 1
        %v3555 = vsel %vm1145, %v3552, %v3554
        %v3556 = vrot.slane %v3275, 1
        %v3557 = vrot.slane %v3277, 1
        %v3558 = vsel %vm1145, %v3556, %v3557
        %v3559 = vrot.slane %v3280, 1
        %v3560 = vsel %vm1145, %v3557, %v3559
        %v3561 = vrot.slane %v3282, 1
        %v3562 = vrot.slane %v3285, 1
        %v3563 = vsel %vm1145, %v3561, %v3562
        %v3564 = vrot.slane %v3287, 1
        %v3565 = vsel %vm1145, %v3562, %v3564
        %v3566 = vrot.slane %v3290, 1
        %v3567 = vrot.slane %v3292, 1
        %v3568 = vsel %vm1145, %v3566, %v3567
        %v3569 = vrot.slane %v3295, 1
        %v3570 = vsel %vm1145, %v3567, %v3569
        %v3571 = vrot.slane %v3297, 1
        %v3572 = vrot.slane %v3300, 1
        %v3573 = vsel %vm1145, %v3571, %v3572
        %v3574 = vrot.slane %v3302, 1
        %v3575 = vsel %vm1145, %v3572, %v3574
        %v3576 = vrot.slane %v3305, 1
        %v3577 = vrot.slane %v3307, 1
        %v3578 = vsel %vm1145, %v3576, %v3577
        %v3579 = vrot.slane %v3310, 1
        %v3580 = vsel %vm1145, %v3577, %v3579
        %v3581 = vrot.slane %v3312, 1
        %v3582 = vrot.slane %v3315, 1
        %v3583 = vsel %vm1145, %v3581, %v3582
        %v3584 = vrot.slane %v3317, 1
        %v3585 = vsel %vm1145, %v3582, %v3584
        %v3586 = vrot.slane %v3320, 1
        %v3587 = vrot.slane %v3322, 1
        %v3588 = vsel %vm1145, %v3586, %v3587
        %v3589 = vrot.slane %v3325, 1
        %v3590 = vsel %vm1145, %v3587, %v3589
        %v3591 = vrot.slane %v3327, 1
        %v3592 = vrot.slane %v3330, 1
        %v3593 = vsel %vm1145, %v3591, %v3592
        %v3594 = vrot.slane %v3332, 1
        %v3595 = vsel %vm1145, %v3592, %v3594
        %v3596 = vrot.slane %v3335, 1
        %v3597 = vrot.slane %v3337, 1
        %v3598 = vsel %vm1145, %v3596, %v3597
        %v3599 = vrot.slane %v3340, 1
        %v3600 = vsel %vm1145, %v3597, %v3599
        %v3601 = vrot.slane %v3342, 1
        %v3602 = vrot.slane %v3345, 1
        %v3603 = vsel %vm1145, %v3601, %v3602
        %v3604 = vrot.slane %v3347, 1
        %v3605 = vsel %vm1145, %v3602, %v3604
        %v3638 = vadd.f32 %v3117, %v3528
        %v3639 = vadd.f32 %v3119, %v3530
        %v3640 = vadd.f32 %v3123, %v3533
        %v3641 = vadd.f32 %v3126, %v3535
        %v3642 = vadd.f32 %v3130, %v3538
        %v3643 = vadd.f32 %v3132, %v3540
        %v3644 = vadd.f32 %v3136, %v3543
        %v3645 = vadd.f32 %v3139, %v3545
        %v3646 = vadd.f32 %v3143, %v3548
        %v3647 = vadd.f32 %v3145, %v3550
        %v3648 = vadd.f32 %v3149, %v3553
        %v3649 = vadd.f32 %v3152, %v3555
        %v3650 = vadd.f32 %v3156, %v3558
        %v3651 = vadd.f32 %v3158, %v3560
        %v3652 = vadd.f32 %v3162, %v3563
        %v3653 = vadd.f32 %v3165, %v3565
        %v3654 = vadd.f32 %v3169, %v3568
        %v3655 = vadd.f32 %v3171, %v3570
        %v3656 = vadd.f32 %v3175, %v3573
        %v3657 = vadd.f32 %v3178, %v3575
        %v3658 = vadd.f32 %v3182, %v3578
        %v3659 = vadd.f32 %v3184, %v3580
        %v3660 = vadd.f32 %v3188, %v3583
        %v3661 = vadd.f32 %v3191, %v3585
        %v3662 = vadd.f32 %v3195, %v3588
        %v3663 = vadd.f32 %v3197, %v3590
        %v3664 = vadd.f32 %v3201, %v3593
        %v3665 = vadd.f32 %v3204, %v3595
        %v3666 = vadd.f32 %v3208, %v3598
        %v3667 = vadd.f32 %v3210, %v3600
        %v3668 = vadd.f32 %v3214, %v3603
        %v3669 = vadd.f32 %v3217, %v3605
        %v3718 = vrot.slane %v3359, 2
        %v3719 = vrot.slane %v3361, 2
        %v3720 = vsel %vm1338, %v3718, %v3719
        %v3721 = vrot.slane %v3364, 2
        %v3722 = vsel %vm1338, %v3719, %v3721
        %v3723 = vrot.slane %v3366, 2
        %v3724 = vrot.slane %v3369, 2
        %v3725 = vsel %vm1338, %v3723, %v3724
        %v3726 = vrot.slane %v3371, 2
        %v3727 = vsel %vm1338, %v3724, %v3726
        %v3728 = vrot.slane %v3374, 2
        %v3729 = vrot.slane %v3376, 2
        %v3730 = vsel %vm1338, %v3728, %v3729
        %v3731 = vrot.slane %v3379, 2
        %v3732 = vsel %vm1338, %v3729, %v3731
        %v3733 = vrot.slane %v3381, 2
        %v3734 = vrot.slane %v3384, 2
        %v3735 = vsel %vm1338, %v3733, %v3734
        %v3736 = vrot.slane %v3386, 2
        %v3737 = vsel %vm1338, %v3734, %v3736
        %v3738 = vrot.slane %v3389, 2
        %v3739 = vrot.slane %v3391, 2
        %v3740 = vsel %vm1338, %v3738, %v3739
        %v3741 = vrot.slane %v3394, 2
        %v3742 = vsel %vm1338, %v3739, %v3741
        %v3743 = vrot.slane %v3396, 2
        %v3744 = vrot.slane %v3399, 2
        %v3745 = vsel %vm1338, %v3743, %v3744
        %v3746 = vrot.slane %v3401, 2
        %v3747 = vsel %vm1338, %v3744, %v3746
        %v3748 = vrot.slane %v3404, 2
        %v3749 = vrot.slane %v3406, 2
        %v3750 = vsel %vm1338, %v3748, %v3749
        %v3751 = vrot.slane %v3409, 2
        %v3752 = vsel %vm1338, %v3749, %v3751
        %v3753 = vrot.slane %v3411, 2
        %v3754 = vrot.slane %v3414, 2
        %v3755 = vsel %vm1338, %v3753, %v3754
        %v3756 = vrot.slane %v3416, 2
        %v3757 = vsel %vm1338, %v3754, %v3756
        %v3758 = vrot.slane %v3419, 2
        %v3759 = vrot.slane %v3421, 2
        %v3760 = vsel %vm1338, %v3758, %v3759
        %v3761 = vrot.slane %v3424, 2
        %v3762 = vsel %vm1338, %v3759, %v3761
        %v3763 = vrot.slane %v3426, 2
        %v3764 = vrot.slane %v3429, 2
        %v3765 = vsel %vm1338, %v3763, %v3764
        %v3766 = vrot.slane %v3431, 2
        %v3767 = vsel %vm1338, %v3764, %v3766
        %v3768 = vrot.slane %v3434, 2
        %v3769 = vrot.slane %v3436, 2
        %v3770 = vsel %vm1338, %v3768, %v3769
        %v3771 = vrot.slane %v3439, 2
        %v3772 = vsel %vm1338, %v3769, %v3771
        %v3773 = vrot.slane %v3441, 2
        %v3774 = vrot.slane %v3444, 2
        %v3775 = vsel %vm1338, %v3773, %v3774
        %v3776 = vrot.slane %v3446, 2
        %v3777 = vsel %vm1338, %v3774, %v3776
        %v3778 = vrot.slane %v3449, 2
        %v3779 = vrot.slane %v3451, 2
        %v3780 = vsel %vm1338, %v3778, %v3779
        %v3781 = vrot.slane %v3454, 2
        %v3782 = vsel %vm1338, %v3779, %v3781
        %v3783 = vrot.slane %v3456, 2
        %v3784 = vrot.slane %v3459, 2
        %v3785 = vsel %vm1338, %v3783, %v3784
        %v3786 = vrot.slane %v3461, 2
        %v3787 = vsel %vm1338, %v3784, %v3786
        %v3788 = vrot.slane %v3464, 2
        %v3789 = vrot.slane %v3466, 2
        %v3790 = vsel %vm1338, %v3788, %v3789
        %v3791 = vrot.slane %v3469, 2
        %v3792 = vsel %vm1338, %v3789, %v3791
        %v3793 = vrot.slane %v3471, 2
        %v3794 = vrot.slane %v3474, 2
        %v3795 = vsel %vm1338, %v3793, %v3794
        %v3796 = vrot.slane %v3476, 2
        %v3797 = vsel %vm1338, %v3794, %v3796
        %v3830 = vadd.f32 %v3638, %v3720
        %v3831 = vadd.f32 %v3639, %v3722
        %v3832 = vadd.f32 %v3640, %v3725
        %v3833 = vadd.f32 %v3641, %v3727
        %v3834 = vadd.f32 %v3642, %v3730
        %v3835 = vadd.f32 %v3643, %v3732
        %v3836 = vadd.f32 %v3644, %v3735
        %v3837 = vadd.f32 %v3645, %v3737
        %v3838 = vadd.f32 %v3646, %v3740
        %v3839 = vadd.f32 %v3647, %v3742
        %v3840 = vadd.f32 %v3648, %v3745
        %v3841 = vadd.f32 %v3649, %v3747
        %v3842 = vadd.f32 %v3650, %v3750
        %v3843 = vadd.f32 %v3651, %v3752
        %v3844 = vadd.f32 %v3652, %v3755
        %v3845 = vadd.f32 %v3653, %v3757
        %v3846 = vadd.f32 %v3654, %v3760
        %v3847 = vadd.f32 %v3655, %v3762
        %v3848 = vadd.f32 %v3656, %v3765
        %v3849 = vadd.f32 %v3657, %v3767
        %v3850 = vadd.f32 %v3658, %v3770
        %v3851 = vadd.f32 %v3659, %v3772
        %v3852 = vadd.f32 %v3660, %v3775
        %v3853 = vadd.f32 %v3661, %v3777
        %v3854 = vadd.f32 %v3662, %v3780
        %v3855 = vadd.f32 %v3663, %v3782
        %v3856 = vadd.f32 %v3664, %v3785
        %v3857 = vadd.f32 %v3665, %v3787
        %v3858 = vadd.f32 %v3666, %v3790
        %v3859 = vadd.f32 %v3667, %v3792
        %v3860 = vadd.f32 %v3668, %v3795
        %v3861 = vadd.f32 %v3669, %v3797
        %v3862 = vld [vmem:[%s191] sm:$0xff]
        %v3863 = vld [vmem:[%s191 + $0x8] sm:$0xff]
        %v3864 = vld [vmem:[%s191 + $0x10] sm:$0xff]
        %v3865 = vld [vmem:[%s191 + $0x18] sm:$0xff]
        %v3866 = vld [vmem:[%s191 + $0x20] sm:$0xff]
        %v3867 = vld [vmem:[%s191 + $0x28] sm:$0xff]
        %v3868 = vld [vmem:[%s191 + $0x30] sm:$0xff]
        %v3869 = vld [vmem:[%s191 + $0x38] sm:$0xff]
        %v3870 = vld [vmem:[%s191 + $0x40] sm:$0xff]
        %v3871 = vld [vmem:[%s191 + $0x48] sm:$0xff]
        %v3872 = vld [vmem:[%s191 + $0x50] sm:$0xff]
        %v3873 = vld [vmem:[%s191 + $0x58] sm:$0xff]
        %v3874 = vld [vmem:[%s191 + $0x60] sm:$0xff]
        %v3875 = vld [vmem:[%s191 + $0x68] sm:$0xff]
        %v3876 = vld [vmem:[%s191 + $0x70] sm:$0xff]
        %v3877 = vld [vmem:[%s191 + $0x78] sm:$0xff]
        %v3878 = vld [vmem:[%s191 + $0x80] sm:$0xff]
        %v3879 = vld [vmem:[%s191 + $0x88] sm:$0xff]
        %v3880 = vld [vmem:[%s191 + $0x90] sm:$0xff]
        %v3881 = vld [vmem:[%s191 + $0x98] sm:$0xff]
        %v3882 = vld [vmem:[%s191 + $0xa0] sm:$0xff]
        %v3883 = vld [vmem:[%s191 + $0xa8] sm:$0xff]
        %v3884 = vld [vmem:[%s191 + $0xb0] sm:$0xff]
        %v3885 = vld [vmem:[%s191 + $0xb8] sm:$0xff]
        %v3886 = vld [vmem:[%s191 + $0xc0] sm:$0xff]
        %v3887 = vld [vmem:[%s191 + $0xc8] sm:$0xff]
        %v3888 = vld [vmem:[%s191 + $0xd0] sm:$0xff]
        %v3889 = vld [vmem:[%s191 + $0xd8] sm:$0xff]
        %v3890 = vld [vmem:[%s191 + $0xe0] sm:$0xff]
        %v3891 = vld [vmem:[%s191 + $0xe8] sm:$0xff]
        %v3892 = vld [vmem:[%s191 + $0xf0] sm:$0xff]
        %v3893 = vld [vmem:[%s191 + $0xf8] sm:$0xff]
        %v3894 = vadd.f32 %v3862, %v3830
        %v3895 = vadd.f32 %v3863, %v3831
        %v3896 = vadd.f32 %v3864, %v3832
        %v3897 = vadd.f32 %v3865, %v3833
        %v3898 = vadd.f32 %v3866, %v3834
        %v3899 = vadd.f32 %v3867, %v3835
        %v3900 = vadd.f32 %v3868, %v3836
        %v3901 = vadd.f32 %v3869, %v3837
        %v3902 = vadd.f32 %v3870, %v3838
        %v3903 = vadd.f32 %v3871, %v3839
        %v3904 = vadd.f32 %v3872, %v3840
        %v3905 = vadd.f32 %v3873, %v3841
        %v3906 = vadd.f32 %v3874, %v3842
        %v3907 = vadd.f32 %v3875, %v3843
        %v3908 = vadd.f32 %v3876, %v3844
        %v3909 = vadd.f32 %v3877, %v3845
        %v3910 = vadd.f32 %v3878, %v3846
        %v3911 = vadd.f32 %v3879, %v3847
        %v3912 = vadd.f32 %v3880, %v3848
        %v3913 = vadd.f32 %v3881, %v3849
        %v3914 = vadd.f32 %v3882, %v3850
        %v3915 = vadd.f32 %v3883, %v3851
        %v3916 = vadd.f32 %v3884, %v3852
        %v3917 = vadd.f32 %v3885, %v3853
        %v3918 = vadd.f32 %v3886, %v3854
        %v3919 = vadd.f32 %v3887, %v3855
        %v3920 = vadd.f32 %v3888, %v3856
        %v3921 = vadd.f32 %v3889, %v3857
        %v3922 = vadd.f32 %v3890, %v3858
        %v3923 = vadd.f32 %v3891, %v3859
        %v3924 = vadd.f32 %v3892, %v3860
        %v3925 = vadd.f32 %v3893, %v3861
        %3926 = vst [vmem:[%s191] sm:$0xff] %v3894
        %3927 = vst [vmem:[%s191 + $0x8] sm:$0xff] %v3895
        %3928 = vst [vmem:[%s191 + $0x10] sm:$0xff] %v3896
        %3929 = vst [vmem:[%s191 + $0x18] sm:$0xff] %v3897
        %3930 = vst [vmem:[%s191 + $0x20] sm:$0xff] %v3898
        %3931 = vst [vmem:[%s191 + $0x28] sm:$0xff] %v3899
        %3932 = vst [vmem:[%s191 + $0x30] sm:$0xff] %v3900
        %3933 = vst [vmem:[%s191 + $0x38] sm:$0xff] %v3901
        %3934 = vst [vmem:[%s191 + $0x40] sm:$0xff] %v3902
        %3935 = vst [vmem:[%s191 + $0x48] sm:$0xff] %v3903
        %3936 = vst [vmem:[%s191 + $0x50] sm:$0xff] %v3904
        %3937 = vst [vmem:[%s191 + $0x58] sm:$0xff] %v3905
        %3938 = vst [vmem:[%s191 + $0x60] sm:$0xff] %v3906
        %3939 = vst [vmem:[%s191 + $0x68] sm:$0xff] %v3907
        %3940 = vst [vmem:[%s191 + $0x70] sm:$0xff] %v3908
        %3941 = vst [vmem:[%s191 + $0x78] sm:$0xff] %v3909
        %3942 = vst [vmem:[%s191 + $0x80] sm:$0xff] %v3910
        %3943 = vst [vmem:[%s191 + $0x88] sm:$0xff] %v3911
        %3944 = vst [vmem:[%s191 + $0x90] sm:$0xff] %v3912
        %3945 = vst [vmem:[%s191 + $0x98] sm:$0xff] %v3913
        %3946 = vst [vmem:[%s191 + $0xa0] sm:$0xff] %v3914
        %3947 = vst [vmem:[%s191 + $0xa8] sm:$0xff] %v3915
        %3948 = vst [vmem:[%s191 + $0xb0] sm:$0xff] %v3916
        %3949 = vst [vmem:[%s191 + $0xb8] sm:$0xff] %v3917
        %3950 = vst [vmem:[%s191 + $0xc0] sm:$0xff] %v3918
        %3951 = vst [vmem:[%s191 + $0xc8] sm:$0xff] %v3919
        %3952 = vst [vmem:[%s191 + $0xd0] sm:$0xff] %v3920
        %3953 = vst [vmem:[%s191 + $0xd8] sm:$0xff] %v3921
        %3954 = vst [vmem:[%s191 + $0xe0] sm:$0xff] %v3922
        %3955 = vst [vmem:[%s191 + $0xe8] sm:$0xff] %v3923
        %3956 = vst [vmem:[%s191 + $0xf0] sm:$0xff] %v3924
        %3957 = vst [vmem:[%s191 + $0xf8] sm:$0xff] %v3925
        %s3958 = sand.u32 %s95, 1
        %s3959 = scalar_lea.sflag [#allocation3], %s3958
        %s3960 = sand.u32 %s95, 1
        %s3961 = smul.addr %s3960, 256
        %s3962 = scalar_lea.vmem [#allocation2], %s3961
        %p3963 = scmp.lt.s32.totalorder %s19, 1
        %s3964 = scalar_select %p3963, %s19, 1
        %s3965 = scalar_lea.vmem %s4, %s3964
        // Predicated region
        $region33: #{depth_regression_forward.2} parent=31 // pred_check
          %p3966 = pneg %p105
        $region34: #{depth_regression_forward.2} parent=31 // pred_check_branch
          %3968 = sbr.rel (%p3966) target = $region36
        $region35: #{depth_regression_forward.2} parent=31 // pred_region
          %3970 = vsyncadd %s3959, 0
          %s3971 = smul.addr %s19, 32
          %s3972 = smul.addr %s3971, 8
          %s3973 = scalar_lea.hbm %s3, %s3972
          %s3974 = sshll.u32 %s3962, 4
          %s3975 = int_to_ptr.vmem [resolvable:$true] %s3974
          %s3976 = sshll.u32 %s3973, 4
          %s3977 = int_to_ptr.hbm [resolvable:$true] %s3976
          %3982 = dma.vmem_to_hbm [thread:$0]  %s3975, 4096, %s3977, %s3959, 128, 128, 8
        $region36: #{depth_regression_forward.2} parent=31 // pred_fallthru
          _
        // Predicated region
        $region37: #{depth_regression_forward.2} parent=31 // pred_check
          %p3983 = pneg %p131
        $region38: #{depth_regression_forward.2} parent=31 // pred_check_branch
          %3985 = sbr.rel (%p3983) target = $region40
        $region39: #{depth_regression_forward.2} parent=31 // pred_region
          _
        $region40: #{depth_regression_forward.2} parent=31 // pred_fallthru
          _
      $region32: #{depth_regression_forward.2} parent=5 // pred_fallthru
        _
      %p3986 = scmp.le.s32.totalorder 2, %s14
      // Predicated region
      $region41: #{depth_regression_forward.2} parent=5 // pred_check
        %p3987 = pneg %p3986
      $region42: #{depth_regression_forward.2} parent=5 // pred_check_branch
        %3989 = sbr.rel (%p3987) target = $region44
      $region43: #{depth_regression_forward.2} parent=5 // pred_region
        %s3990 = ssub.s32 %s14, 2
        // Predicated region
        $region45: #{depth_regression_forward.2} parent=43 // pred_check
          %p3991 = pneg %p111
        $region46: #{depth_regression_forward.2} parent=43 // pred_check_branch
          %3993 = sbr.rel (%p3991) target = $region48
        $region47: #{depth_regression_forward.2} parent=43 // pred_region
          %s3994 = sand.u32 %s96, 1
          %s3995 = scalar_lea.sflag [#allocation3], %s3994
          %s3996 = sand.u32 %s96, 1
          %s3997 = smul.addr %s3996, 256
          %s3998 = scalar_lea.vmem [#allocation2], %s3997
          %4000 = dma.done %s3995, 4096
        $region48: #{depth_regression_forward.2} parent=43 // pred_fallthru
          _
        // Predicated region
        $region49: #{depth_regression_forward.2} parent=43 // pred_check
          %p4001 = pneg %p137
        $region50: #{depth_regression_forward.2} parent=43 // pred_check_branch
          %4003 = sbr.rel (%p4001) target = $region52
        $region51: #{depth_regression_forward.2} parent=43 // pred_region
          %p4004 = scmp.lt.s32.totalorder %s20, 1
          %s4005 = scalar_select %p4004, %s20, 1
          %s4006 = scalar_lea.vmem %s4, %s4005
        $region52: #{depth_regression_forward.2} parent=43 // pred_fallthru
          _
      $region44: #{depth_regression_forward.2} parent=5 // pred_fallthru
        _
    $region6: #{depth_regression_forward.2} parent=1 // loop_footer
      %s18 = sadd.s32 1, %s14
    $region7: #{depth_regression_forward.2} parent=1 // loop_footer_branch
      %13 = sbr.rel target = $region3
    $region8: #{depth_regression_forward.2} parent=1 // loop_exit
      _
    %4007 = vsyncpa [#allocation3], 1
    %s4008 = scalar_lea.sflag [#allocation3], 1
    %4009 = vsyncpa %s4008, 1

</llo_original>
